<compile_context>
chip_gen: v7x
topology: tpu7x:2x2x1
jax: 0.10.0
libtpu: 0.0.40
codegen_flags: <defaults>
</compile_context>

<pallas_src>
import functools
import math

import jax
import jax.numpy as jnp
from jax.experimental import pallas as pl
from jax.experimental.pallas import tpu as pltpu


def _layernorm(v, g, b, eps=1e-5):
    # v: (N, E), g/b: (1, E)
    mu = jnp.mean(v, axis=-1, keepdims=True)
    var = jnp.mean((v - mu) ** 2, axis=-1, keepdims=True)
    return (v - mu) * jax.lax.rsqrt(var + eps) * g + b


def block_kernel(x_ref, ln1g_ref, ln1b_ref, wqkv_ref, ln2g_ref, ln2b_ref,
                 w1_ref, fb1_ref, w2_ref, fb2_ref, o_ref, *,
                 batch_block, seq_len, num_heads, compute_dtype, approx_recip,
                 ffn_chunk):
    bb, T, H = batch_block, seq_len, num_heads
    rows, E = x_ref.shape                       # rows = bb * T (folded batch rows)
    assert rows == bb * T
    hs = E // H
    cdt = compute_dtype

    # Residual stream / LN statistics always in f32, even for bf16 inputs.
    x = x_ref[...].astype(jnp.float32)                                   # (rows, E)

    # ---- pre-attention LayerNorm + fused QKV projection (one wide matmul) ----
    xn = _layernorm(x, ln1g_ref[...], ln1b_ref[...])
    # Q columns of wqkv were pre-scaled by 1/sqrt(E) in prepare_block_params, so
    # scores come out of the MXU already scaled (PyTorch scales by E**-0.5).
    qkv = jnp.dot(xn.astype(cdt), wqkv_ref[...],
                  preferred_element_type=jnp.float32)                    # (rows, 3E) f32

    # Causal additive bias, built ONCE (finite -1e30: robust vs. -inf).
    ri = jax.lax.broadcasted_iota(jnp.int32, (T, T), 0)
    ci = jax.lax.broadcasted_iota(jnp.int32, (T, T), 1)
    mask_bias = jnp.where(ci <= ri, 0.0, -1e30).astype(jnp.float32)

    # ---- multi-head causal attention: all heads batched into ONE pair of
    #      einsums (batch axis = H*bb) so the MXU pipelines every head's
    #      score/PV matmul instead of draining per head. ----
    def split_heads(slab):
        # (rows, E) -> (H*bb, T, hs) using only lane slices + leading-dim reshapes.
        parts = [slab[:, h * hs:(h + 1) * hs].reshape(1, bb, T, hs)
                 for h in range(H)]
        return jnp.concatenate(parts, axis=0).reshape(H * bb, T, hs)

    qh = split_heads(qkv[:, :E].astype(cdt))
    kh = split_heads(qkv[:, E:2 * E].astype(cdt))
    vh = split_heads(qkv[:, 2 * E:].astype(cdt))

    s = jnp.einsum('bqd,bkd->bqk', qh, kh,
                   preferred_element_type=jnp.float32) + mask_bias       # (H*bb, T, T)
    m = jnp.max(s, axis=-1, keepdims=True)
    p = jnp.exp(s - m)
    # approx reciprocal (EUP slot) for the optimized path; exact in the f32 path.
    p = p * pl.reciprocal(jnp.sum(p, axis=-1, keepdims=True), approx=approx_recip)
    ctx = jnp.einsum('bqk,bkd->bqd', p.astype(cdt), vh,
                     preferred_element_type=jnp.float32)                 # (H*bb, T, hs)

    # Heads back to contiguous columns: one in-register concat -> a single
    # lane-dense (rows, E) slab.  No per-head masked stores, no VMEM scratch.
    ctx = ctx.reshape(H, bb * T, hs)
    attn = jnp.concatenate([ctx[h] for h in range(H)], axis=-1)          # (rows, E)

    # Dropout layers are identity (eval mode).
    x1 = x + attn                                                        # residual 1

    # ---- pre-FF LayerNorm + MLP, hidden dim in lane-aligned chunks ----
    xn2 = _layernorm(x1, ln2g_ref[...], ln2b_ref[...]).astype(cdt)
    ffd = w1_ref.shape[1]
    ff = None
    for c0 in range(0, ffd, ffn_chunk):
        c1 = min(c0 + ffn_chunk, ffd)
        hid = jnp.dot(xn2, w1_ref[:, c0:c1], preferred_element_type=jnp.float32)
        # bias + ReLU + cast fused: the (rows, chunk) activation lives in bf16.
        hid = jnp.maximum(hid + fb1_ref[:, c0:c1], 0.0).astype(cdt)
        contrib = jnp.dot(hid, w2_ref[c0:c1, :], preferred_element_type=jnp.float32)
        ff = contrib if ff is None else ff + contrib
    ff = ff + fb2_ref[...]

    o_ref[...] = (x1 + ff).astype(o_ref.dtype)                           # residual 2


def _pick_batch_block(B, T, max_rows=2048, min_grid=2, row_align=256):
    """Largest divisor bb of B with bb*T <= max_rows, preferring a grid of >=2
    steps (so the 'parallel' axis shards across both v7x TensorCores) and
    rows aligned to the MXU M-cadence when possible."""
    divisors = [d for d in range(1, B + 1) if B % d == 0]
    fits = [d for d in divisors if d * T <= max_rows] or [1]
    pref = [d for d in fits if B // d >= min_grid] or fits
    aligned = [d for d in pref if (d * T) % row_align == 0]
    return max(aligned) if aligned else max(pref)


def _vmem_limit_bytes():
    # ~3/4 of physical VMEM (96 MiB on v5e/v6e, 48 MiB on v7x); safe fallback.
    try:
        cap = pltpu.get_tpu_info().vmem_capacity_bytes
    except Exception:
        cap = 64 * 1024 * 1024
    return int(cap * 3 // 4)


def prepare_block_params(params, *, num_heads, compute_dtype=jnp.bfloat16):
    """One-time parameter preprocessing (hoisted out of the forward path).

    Per-head (H, E, hs) Q/K/V weights are fused into a single (E, 3E) matrix
    (head outputs land contiguously on the last dim), the PyTorch 1/sqrt(E)
    score scale is folded into the Q columns, and matmul weights are cast to
    the MXU compute dtype.  Call once; reuse for every forward."""
    (ln1g, ln1b, wq, wk, wv, ln2g, ln2b, w1, b1, w2, b2) = params
    E = wq.shape[1]
    scale = 1.0 / math.sqrt(E)
    wq_f = jnp.transpose(wq, (1, 0, 2)).reshape(E, E) * scale
    wk_f = jnp.transpose(wk, (1, 0, 2)).reshape(E, E)
    wv_f = jnp.transpose(wv, (1, 0, 2)).reshape(E, E)
    wqkv = jnp.concatenate([wq_f, wk_f, wv_f], axis=1).astype(compute_dtype)  # (E, 3E)
    return (ln1g, ln1b, wqkv, ln2g, ln2b,
            w1.astype(compute_dtype), b1, w2.astype(compute_dtype), b2)


def block_forward(x, prepared_params, *, num_heads, compute_dtype=jnp.bfloat16,
                  approx_recip=None, batch_block=None, ffn_chunk=1024):
    B, T, E = x.shape
    H = num_heads
    assert E % H == 0
    if approx_recip is None:
        approx_recip = jnp.dtype(compute_dtype) != jnp.dtype(jnp.float32)
    bb = batch_block if batch_block is not None else _pick_batch_block(B, T)
    assert B % bb == 0, (B, bb)
    rows = bb * T

    (ln1g, ln1b, wqkv, ln2g, ln2b, w1c, b1, w2c, b2) = prepared_params
    ffd = w1c.shape[1]

    # 2D row-major view of x / output: trivial index maps and a guaranteed
    # lane-dense (rows, E) output store.
    x2d = x.reshape(B * T, E)

    kernel = functools.partial(
        block_kernel, batch_block=bb, seq_len=T, num_heads=H,
        compute_dtype=compute_dtype, approx_recip=bool(approx_recip),
        ffn_chunk=min(ffn_chunk, ffd))

    # Advisory cost estimate for XLA scheduling around the custom call.
    flops = 2 * B * T * E * (11 * E + 2 * T)          # QKV + scores + PV + FFN
    transcendentals = B * H * T * T + 4 * B * T       # exp + rsqrt/reciprocal
    wbytes = 11 * E * E * jnp.dtype(compute_dtype).itemsize
    bytes_accessed = 2 * B * T * E * x.dtype.itemsize + wbytes + 9 * E * 4

    def build(single_buffer_weights):
        def const_spec(a):
            nd = a.ndim
            if single_buffer_weights:
                # Grid-invariant params: single-buffer so weights are resident
                # once instead of double-buffered (halves weight VMEM).
                return pl.BlockSpec(a.shape, lambda i, _nd=nd: (0,) * _nd,
                                    pipeline_mode=pl.Buffered(1))
            return pl.BlockSpec(a.shape, lambda i, _nd=nd: (0,) * _nd)

        in_specs = [
            pl.BlockSpec((rows, E), lambda i: (i, 0)),   # x rows slab
            const_spec(ln1g), const_spec(ln1b),
            const_spec(wqkv),
            const_spec(ln2g), const_spec(ln2b),
            const_spec(w1c), const_spec(b1),
            const_spec(w2c), const_spec(b2),
        ]
        out_spec = pl.BlockSpec((rows, E), lambda i: (i, 0))

        return pl.pallas_call(
            kernel,
            out_shape=jax.ShapeDtypeStruct((B * T, E), x.dtype),
            grid=(B // bb,),
            in_specs=in_specs,
            out_specs=out_spec,
            compiler_params=pltpu.CompilerParams(
                dimension_semantics=("parallel",),
                vmem_limit_bytes=_vmem_limit_bytes()),
            cost_estimate=pl.CostEstimate(
                flops=int(flops),
                transcendentals=int(transcendentals),
                bytes_accessed=int(bytes_accessed)),
        )

    args = (x2d, ln1g, ln1b, wqkv, ln2g, ln2b, w1c, b1, w2c, b2)
    try:
        out2d = build(True)(*args)
    except Exception:
        # Fallback for jax versions that reject Buffered(1): default buffering.
        out2d = build(False)(*args)
    return out2d.reshape(B, T, E)


def make_params(key, embed_size, num_heads):
    H = num_heads
    hs = embed_size // H
    keys = jax.random.split(key, 8)
    scale_in = 1.0 / math.sqrt(embed_size)
    # per-head projection weights, stacked on leading head axis: (H, E, hs)
    wq = jax.random.normal(keys[0], (H, embed_size, hs), jnp.float32) * scale_in
    wk = jax.random.normal(keys[1], (H, embed_size, hs), jnp.float32) * scale_in
    wv = jax.random.normal(keys[2], (H, embed_size, hs), jnp.float32) * scale_in
    # FF weights stored [in, out] so x @ W + b
    w1 = jax.random.normal(keys[3], (embed_size, 4 * embed_size), jnp.float32) * scale_in
    b1 = jax.random.normal(keys[4], (1, 4 * embed_size), jnp.float32) * 0.01
    w2 = jax.random.normal(keys[5], (4 * embed_size, embed_size), jnp.float32) * (1.0 / math.sqrt(4 * embed_size))
    b2 = jax.random.normal(keys[6], (1, embed_size), jnp.float32) * 0.01
    # LayerNorm affine params (PyTorch default init: gamma=1, beta=0)
    ln1g = jnp.ones((1, embed_size), jnp.float32)
    ln1b = jnp.zeros((1, embed_size), jnp.float32)
    ln2g = jnp.ones((1, embed_size), jnp.float32)
    ln2b = jnp.zeros((1, embed_size), jnp.float32)
    return (ln1g, ln1b, wq, wk, wv, ln2g, ln2b, w1, b1, w2, b2)


def block_reference(x, params, *, num_heads):
    """Pure-JAX f32 reference mirroring the PyTorch forward (eval mode)."""
    (ln1g, ln1b, wq, wk, wv, ln2g, ln2b, w1, b1, w2, b2) = params
    B, T, E = x.shape
    H = num_heads

    def ln(v, g, b, eps=1e-5):
        mu = jnp.mean(v, axis=-1, keepdims=True)
        var = jnp.mean((v - mu) ** 2, axis=-1, keepdims=True)
        return (v - mu) / jnp.sqrt(var + eps) * g + b

    xn = ln(x, ln1g, ln1b)
    mask = jnp.tril(jnp.ones((T, T), bool))
    heads = []
    for h in range(H):
        q = xn @ wq[h]
        k = xn @ wk[h]
        v = xn @ wv[h]
        s = q @ jnp.swapaxes(k, -1, -2)
        s = jnp.where(mask, s, -jnp.inf) / math.sqrt(E)
        p = jax.nn.softmax(s, axis=-1)
        heads.append(p @ v)
    x1 = x + jnp.concatenate(heads, axis=-1)
    xn2 = ln(x1, ln2g, ln2b)
    hid = jnp.maximum(xn2 @ w1 + b1, 0.0)
    return x1 + hid @ w2 + b2


if __name__ == "__main__":
    B, T, E, H = 2, 8, 32, 4
    key = jax.random.PRNGKey(0)
    kx, kp = jax.random.split(key)
    x = jax.random.normal(kx, (B, T, E), jnp.float32)
    params = make_params(kp, E, H)

    ref = block_reference(x, params, num_heads=H)

    # Exactness check: f32 compute path (exact reciprocal) vs. the reference.
    prep_f32 = prepare_block_params(params, num_heads=H, compute_dtype=jnp.float32)
    out_f32 = jax.block_until_ready(
        block_forward(x, prep_f32, num_heads=H, compute_dtype=jnp.float32))
    assert out_f32.shape == (B, T, E)
    err_f32 = float(jnp.max(jnp.abs(out_f32 - ref)))
    assert err_f32 < 5e-4, err_f32

    # Optimized default path: bf16 MXU operands, f32 accumulation, approx recip
    # on the softmax denominator (rows sum to 1 +/- ~1e-3; inference-grade).
    prep_bf16 = prepare_block_params(params, num_heads=H, compute_dtype=jnp.bfloat16)
    out = jax.block_until_ready(block_forward(x, prep_bf16, num_heads=H))
    assert out.shape == (B, T, E)
    err_bf16 = float(jnp.max(jnp.abs(out.astype(jnp.float32) - ref)))
    assert err_bf16 < 2e-1, err_bf16   # bf16 rounding only; logic verified by f32 path

    print("KERNEL_OK")
</pallas_src>

<mosaic_0001>
module attributes {stable_mosaic.version = 11 : i64} {
  func.func @block_kernel(%arg0: i32, %arg1: memref<8x32xf32, #tpu.memory_space<vmem>>, %arg2: memref<1x32xf32, #tpu.memory_space<vmem>>, %arg3: memref<1x32xf32, #tpu.memory_space<vmem>>, %arg4: memref<32x96xf32, #tpu.memory_space<vmem>>, %arg5: memref<1x32xf32, #tpu.memory_space<vmem>>, %arg6: memref<1x32xf32, #tpu.memory_space<vmem>>, %arg7: memref<32x128xf32, #tpu.memory_space<vmem>>, %arg8: memref<1x128xf32, #tpu.memory_space<vmem>>, %arg9: memref<128x32xf32, #tpu.memory_space<vmem>>, %arg10: memref<1x32xf32, #tpu.memory_space<vmem>>, %arg11: memref<8x32xf32, #tpu.memory_space<vmem>>) attributes {dimension_semantics = [#tpu.dimension_semantics<parallel>], iteration_bounds = array<i64: 2>, scalar_prefetch = 0 : i64, scratch_operands = 0 : i64, tpu.core_type = #tpu.core_type<tc>, window_params = [{transform_indices = @transform_0, window_bounds = array<i64: 8, 32>}, {pipeline_mode = #tpu.pipeline_mode<synchronous>, transform_indices = @transform_1, window_bounds = array<i64: 1, 32>}, {pipeline_mode = #tpu.pipeline_mode<synchronous>, transform_indices = @transform_2, window_bounds = array<i64: 1, 32>}, {pipeline_mode = #tpu.pipeline_mode<synchronous>, transform_indices = @transform_3, window_bounds = array<i64: 32, 96>}, {pipeline_mode = #tpu.pipeline_mode<synchronous>, transform_indices = @transform_4, window_bounds = array<i64: 1, 32>}, {pipeline_mode = #tpu.pipeline_mode<synchronous>, transform_indices = @transform_5, window_bounds = array<i64: 1, 32>}, {pipeline_mode = #tpu.pipeline_mode<synchronous>, transform_indices = @transform_6, window_bounds = array<i64: 32, 128>}, {pipeline_mode = #tpu.pipeline_mode<synchronous>, transform_indices = @transform_7, window_bounds = array<i64: 1, 128>}, {pipeline_mode = #tpu.pipeline_mode<synchronous>, transform_indices = @transform_8, window_bounds = array<i64: 128, 32>}, {pipeline_mode = #tpu.pipeline_mode<synchronous>, transform_indices = @transform_9, window_bounds = array<i64: 1, 32>}, {transform_indices = @transform_10, window_bounds = array<i64: 8, 32>}]} {
    %c0 = arith.constant 0 : index
    %c0_0 = arith.constant 0 : index
    %0 = vector.load %arg1[%c0, %c0_0] : memref<8x32xf32, #tpu.memory_space<vmem>>, vector<8x32xf32>
    %c0_1 = arith.constant 0 : index
    %c0_2 = arith.constant 0 : index
    %1 = vector.load %arg2[%c0_1, %c0_2] : memref<1x32xf32, #tpu.memory_space<vmem>>, vector<1x32xf32>
    %c0_3 = arith.constant 0 : index
    %c0_4 = arith.constant 0 : index
    %2 = vector.load %arg3[%c0_3, %c0_4] : memref<1x32xf32, #tpu.memory_space<vmem>>, vector<1x32xf32>
    %cst = arith.constant dense<0.000000e+00> : vector<8xf32>
    %3 = vector.multi_reduction <add>, %0, %cst [1] : vector<8x32xf32> to vector<8xf32>
    %4 = vector.shape_cast %3 : vector<8xf32> to vector<8x1xf32>
    %cst_5 = arith.constant 3.200000e+01 : f32
    %5 = vector.broadcast %cst_5 : f32 to vector<8x1xf32>
    %6 = arith.divf %4, %5 : vector<8x1xf32>
    %7 = vector.broadcast %6 : vector<8x1xf32> to vector<8x32xf32>
    %8 = arith.subf %0, %7 : vector<8x32xf32>
    %9 = arith.mulf %8, %8 : vector<8x32xf32>
    %cst_6 = arith.constant dense<0.000000e+00> : vector<8xf32>
    %10 = vector.multi_reduction <add>, %9, %cst_6 [1] : vector<8x32xf32> to vector<8xf32>
    %11 = vector.shape_cast %10 : vector<8xf32> to vector<8x1xf32>
    %cst_7 = arith.constant 3.200000e+01 : f32
    %12 = vector.broadcast %cst_7 : f32 to vector<8x1xf32>
    %13 = arith.divf %11, %12 : vector<8x1xf32>
    %14 = vector.broadcast %6 : vector<8x1xf32> to vector<8x32xf32>
    %15 = arith.subf %0, %14 : vector<8x32xf32>
    %cst_8 = arith.constant 9.99999974E-6 : f32
    %16 = vector.broadcast %cst_8 : f32 to vector<8x1xf32>
    %17 = arith.addf %13, %16 : vector<8x1xf32>
    %18 = math.rsqrt %17 : vector<8x1xf32>
    %19 = vector.broadcast %18 : vector<8x1xf32> to vector<8x32xf32>
    %20 = arith.mulf %15, %19 : vector<8x32xf32>
    %21 = vector.broadcast %1 : vector<1x32xf32> to vector<8x32xf32>
    %22 = arith.mulf %20, %21 : vector<8x32xf32>
    %23 = vector.broadcast %2 : vector<1x32xf32> to vector<8x32xf32>
    %24 = arith.addf %22, %23 : vector<8x32xf32>
    %c0_9 = arith.constant 0 : index
    %c0_10 = arith.constant 0 : index
    %25 = vector.load %arg4[%c0_9, %c0_10] : memref<32x96xf32, #tpu.memory_space<vmem>>, vector<32x96xf32>
    %cst_11 = arith.constant dense<0.000000e+00> : vector<8x96xf32>
    %26 = tpu.matmul %24, %25, %cst_11 {dimension_numbers = #tpu.dot_dimension_numbers<[1], [0], [0], [1], [0, 0, 1, 1], [], []>} : vector<8x32xf32>, vector<32x96xf32>, vector<8x96xf32> -> vector<8x96xf32>
    %27 = tpu.iota {dimensions = array<i32: 0>} : vector<8x8xi32>
    %28 = tpu.iota {dimensions = array<i32: 1>} : vector<8x8xi32>
    %29 = arith.cmpi sle, %28, %27 : vector<8x8xi32>
    %cst_12 = arith.constant 0.000000e+00 : f32
    %cst_13 = arith.constant -1.000000e+30 : f32
    %30 = vector.broadcast %cst_12 : f32 to vector<8x8xf32>
    %31 = vector.broadcast %cst_13 : f32 to vector<8x8xf32>
    %32 = arith.select %29, %30, %31 : vector<8x8xi1>, vector<8x8xf32>
    %33 = vector.extract_strided_slice %26 {offsets = [0, 0], sizes = [8, 32], strides = [1, 1]} : vector<8x96xf32> to vector<8x32xf32>
    %34 = vector.extract_strided_slice %33 {offsets = [0, 0], sizes = [8, 8], strides = [1, 1]} : vector<8x32xf32> to vector<8x8xf32>
    %35 = vector.shape_cast %34 : vector<8x8xf32> to vector<1x1x8x8xf32>
    %36 = vector.extract_strided_slice %33 {offsets = [0, 8], sizes = [8, 8], strides = [1, 1]} : vector<8x32xf32> to vector<8x8xf32>
    %37 = vector.shape_cast %36 : vector<8x8xf32> to vector<1x1x8x8xf32>
    %38 = vector.extract_strided_slice %33 {offsets = [0, 16], sizes = [8, 8], strides = [1, 1]} : vector<8x32xf32> to vector<8x8xf32>
    %39 = vector.shape_cast %38 : vector<8x8xf32> to vector<1x1x8x8xf32>
    %40 = vector.extract_strided_slice %33 {offsets = [0, 24], sizes = [8, 8], strides = [1, 1]} : vector<8x32xf32> to vector<8x8xf32>
    %41 = vector.shape_cast %40 : vector<8x8xf32> to vector<1x1x8x8xf32>
    %42 = tpu.concatenate %35, %37, %39, %41 in 0 : vector<1x1x8x8xf32>, vector<1x1x8x8xf32>, vector<1x1x8x8xf32>, vector<1x1x8x8xf32> -> vector<4x1x8x8xf32>
    %43 = vector.shape_cast %42 : vector<4x1x8x8xf32> to vector<4x8x8xf32>
    %44 = vector.extract_strided_slice %26 {offsets = [0, 32], sizes = [8, 32], strides = [1, 1]} : vector<8x96xf32> to vector<8x32xf32>
    %45 = vector.extract_strided_slice %44 {offsets = [0, 0], sizes = [8, 8], strides = [1, 1]} : vector<8x32xf32> to vector<8x8xf32>
    %46 = vector.shape_cast %45 : vector<8x8xf32> to vector<1x1x8x8xf32>
    %47 = vector.extract_strided_slice %44 {offsets = [0, 8], sizes = [8, 8], strides = [1, 1]} : vector<8x32xf32> to vector<8x8xf32>
    %48 = vector.shape_cast %47 : vector<8x8xf32> to vector<1x1x8x8xf32>
    %49 = vector.extract_strided_slice %44 {offsets = [0, 16], sizes = [8, 8], strides = [1, 1]} : vector<8x32xf32> to vector<8x8xf32>
    %50 = vector.shape_cast %49 : vector<8x8xf32> to vector<1x1x8x8xf32>
    %51 = vector.extract_strided_slice %44 {offsets = [0, 24], sizes = [8, 8], strides = [1, 1]} : vector<8x32xf32> to vector<8x8xf32>
    %52 = vector.shape_cast %51 : vector<8x8xf32> to vector<1x1x8x8xf32>
    %53 = tpu.concatenate %46, %48, %50, %52 in 0 : vector<1x1x8x8xf32>, vector<1x1x8x8xf32>, vector<1x1x8x8xf32>, vector<1x1x8x8xf32> -> vector<4x1x8x8xf32>
    %54 = vector.shape_cast %53 : vector<4x1x8x8xf32> to vector<4x8x8xf32>
    %55 = vector.extract_strided_slice %26 {offsets = [0, 64], sizes = [8, 32], strides = [1, 1]} : vector<8x96xf32> to vector<8x32xf32>
    %56 = vector.extract_strided_slice %55 {offsets = [0, 0], sizes = [8, 8], strides = [1, 1]} : vector<8x32xf32> to vector<8x8xf32>
    %57 = vector.shape_cast %56 : vector<8x8xf32> to vector<1x1x8x8xf32>
    %58 = vector.extract_strided_slice %55 {offsets = [0, 8], sizes = [8, 8], strides = [1, 1]} : vector<8x32xf32> to vector<8x8xf32>
    %59 = vector.shape_cast %58 : vector<8x8xf32> to vector<1x1x8x8xf32>
    %60 = vector.extract_strided_slice %55 {offsets = [0, 16], sizes = [8, 8], strides = [1, 1]} : vector<8x32xf32> to vector<8x8xf32>
    %61 = vector.shape_cast %60 : vector<8x8xf32> to vector<1x1x8x8xf32>
    %62 = vector.extract_strided_slice %55 {offsets = [0, 24], sizes = [8, 8], strides = [1, 1]} : vector<8x32xf32> to vector<8x8xf32>
    %63 = vector.shape_cast %62 : vector<8x8xf32> to vector<1x1x8x8xf32>
    %64 = tpu.concatenate %57, %59, %61, %63 in 0 : vector<1x1x8x8xf32>, vector<1x1x8x8xf32>, vector<1x1x8x8xf32>, vector<1x1x8x8xf32> -> vector<4x1x8x8xf32>
    %65 = vector.shape_cast %64 : vector<4x1x8x8xf32> to vector<4x8x8xf32>
    "tpu.trace_start"() <{level = 10 : i32, message = "bqd,bkd->bqk"}> : () -> ()
    %cst_14 = arith.constant dense<0.000000e+00> : vector<4x8x8xf32>
    %66 = tpu.matmul %43, %54, %cst_14 {dimension_numbers = #tpu.dot_dimension_numbers<[2], [2], [1], [1], [0, 0, 0, 1, 1, 1], [0], [0]>} : vector<4x8x8xf32>, vector<4x8x8xf32>, vector<4x8x8xf32> -> vector<4x8x8xf32>
    "tpu.trace_stop"() : () -> ()
    %67 = vector.shape_cast %32 : vector<8x8xf32> to vector<1x8x8xf32>
    %68 = vector.broadcast %67 : vector<1x8x8xf32> to vector<4x8x8xf32>
    %69 = arith.addf %66, %68 : vector<4x8x8xf32>
    %cst_15 = arith.constant dense<0xFF800000> : vector<4x8xf32>
    %70 = vector.multi_reduction <maximumf>, %69, %cst_15 [2] : vector<4x8x8xf32> to vector<4x8xf32>
    %71 = vector.shape_cast %70 : vector<4x8xf32> to vector<4x8x1xf32>
    %72 = vector.broadcast %71 : vector<4x8x1xf32> to vector<4x8x8xf32>
    %73 = arith.subf %69, %72 : vector<4x8x8xf32>
    %74 = math.exp %73 : vector<4x8x8xf32>
    %cst_16 = arith.constant dense<0.000000e+00> : vector<4x8xf32>
    %75 = vector.multi_reduction <add>, %74, %cst_16 [2] : vector<4x8x8xf32> to vector<4x8xf32>
    %76 = vector.shape_cast %75 : vector<4x8xf32> to vector<4x8x1xf32>
    %77 = tpu.reciprocal %76 : vector<4x8x1xf32> -> vector<4x8x1xf32>
    %78 = vector.broadcast %77 : vector<4x8x1xf32> to vector<4x8x8xf32>
    %79 = arith.mulf %74, %78 : vector<4x8x8xf32>
    "tpu.trace_start"() <{level = 10 : i32, message = "bqk,bkd->bqd"}> : () -> ()
    %cst_17 = arith.constant dense<0.000000e+00> : vector<4x8x8xf32>
    %80 = tpu.matmul %79, %65, %cst_17 {dimension_numbers = #tpu.dot_dimension_numbers<[2], [1], [1], [2], [0, 0, 0, 1, 1, 2], [0], [0]>} : vector<4x8x8xf32>, vector<4x8x8xf32>, vector<4x8x8xf32> -> vector<4x8x8xf32>
    "tpu.trace_stop"() : () -> ()
    %81 = vector.extract_strided_slice %80 {offsets = [0, 0, 0], sizes = [1, 8, 8], strides = [1, 1, 1]} : vector<4x8x8xf32> to vector<1x8x8xf32>
    %82 = vector.shape_cast %81 : vector<1x8x8xf32> to vector<8x8xf32>
    %83 = vector.extract_strided_slice %80 {offsets = [1, 0, 0], sizes = [1, 8, 8], strides = [1, 1, 1]} : vector<4x8x8xf32> to vector<1x8x8xf32>
    %84 = vector.shape_cast %83 : vector<1x8x8xf32> to vector<8x8xf32>
    %85 = vector.extract_strided_slice %80 {offsets = [2, 0, 0], sizes = [1, 8, 8], strides = [1, 1, 1]} : vector<4x8x8xf32> to vector<1x8x8xf32>
    %86 = vector.shape_cast %85 : vector<1x8x8xf32> to vector<8x8xf32>
    %87 = vector.extract_strided_slice %80 {offsets = [3, 0, 0], sizes = [1, 8, 8], strides = [1, 1, 1]} : vector<4x8x8xf32> to vector<1x8x8xf32>
    %88 = vector.shape_cast %87 : vector<1x8x8xf32> to vector<8x8xf32>
    %89 = tpu.concatenate %82, %84, %86, %88 in 1 : vector<8x8xf32>, vector<8x8xf32>, vector<8x8xf32>, vector<8x8xf32> -> vector<8x32xf32>
    %90 = arith.addf %0, %89 : vector<8x32xf32>
    %c0_18 = arith.constant 0 : index
    %c0_19 = arith.constant 0 : index
    %91 = vector.load %arg5[%c0_18, %c0_19] : memref<1x32xf32, #tpu.memory_space<vmem>>, vector<1x32xf32>
    %c0_20 = arith.constant 0 : index
    %c0_21 = arith.constant 0 : index
    %92 = vector.load %arg6[%c0_20, %c0_21] : memref<1x32xf32, #tpu.memory_space<vmem>>, vector<1x32xf32>
    %cst_22 = arith.constant dense<0.000000e+00> : vector<8xf32>
    %93 = vector.multi_reduction <add>, %90, %cst_22 [1] : vector<8x32xf32> to vector<8xf32>
    %94 = vector.shape_cast %93 : vector<8xf32> to vector<8x1xf32>
    %cst_23 = arith.constant 3.200000e+01 : f32
    %95 = vector.broadcast %cst_23 : f32 to vector<8x1xf32>
    %96 = arith.divf %94, %95 : vector<8x1xf32>
    %97 = vector.broadcast %96 : vector<8x1xf32> to vector<8x32xf32>
    %98 = arith.subf %90, %97 : vector<8x32xf32>
    %99 = arith.mulf %98, %98 : vector<8x32xf32>
    %cst_24 = arith.constant dense<0.000000e+00> : vector<8xf32>
    %100 = vector.multi_reduction <add>, %99, %cst_24 [1] : vector<8x32xf32> to vector<8xf32>
    %101 = vector.shape_cast %100 : vector<8xf32> to vector<8x1xf32>
    %cst_25 = arith.constant 3.200000e+01 : f32
    %102 = vector.broadcast %cst_25 : f32 to vector<8x1xf32>
    %103 = arith.divf %101, %102 : vector<8x1xf32>
    %104 = vector.broadcast %96 : vector<8x1xf32> to vector<8x32xf32>
    %105 = arith.subf %90, %104 : vector<8x32xf32>
    %cst_26 = arith.constant 9.99999974E-6 : f32
    %106 = vector.broadcast %cst_26 : f32 to vector<8x1xf32>
    %107 = arith.addf %103, %106 : vector<8x1xf32>
    %108 = math.rsqrt %107 : vector<8x1xf32>
    %109 = vector.broadcast %108 : vector<8x1xf32> to vector<8x32xf32>
    %110 = arith.mulf %105, %109 : vector<8x32xf32>
    %111 = vector.broadcast %91 : vector<1x32xf32> to vector<8x32xf32>
    %112 = arith.mulf %110, %111 : vector<8x32xf32>
    %113 = vector.broadcast %92 : vector<1x32xf32> to vector<8x32xf32>
    %114 = arith.addf %112, %113 : vector<8x32xf32>
    %c0_27 = arith.constant 0 : index
    %c0_28 = arith.constant 0 : index
    %115 = vector.load %arg7[%c0_27, %c0_28] : memref<32x128xf32, #tpu.memory_space<vmem>>, vector<32x128xf32>
    %cst_29 = arith.constant dense<0.000000e+00> : vector<8x128xf32>
    %116 = tpu.matmul %114, %115, %cst_29 {dimension_numbers = #tpu.dot_dimension_numbers<[1], [0], [0], [1], [0, 0, 1, 1], [], []>} : vector<8x32xf32>, vector<32x128xf32>, vector<8x128xf32> -> vector<8x128xf32>
    %c0_30 = arith.constant 0 : index
    %c0_31 = arith.constant 0 : index
    %117 = vector.load %arg8[%c0_30, %c0_31] : memref<1x128xf32, #tpu.memory_space<vmem>>, vector<1x128xf32>
    %118 = vector.broadcast %117 : vector<1x128xf32> to vector<8x128xf32>
    %119 = arith.addf %116, %118 : vector<8x128xf32>
    %cst_32 = arith.constant 0.000000e+00 : f32
    %120 = vector.broadcast %cst_32 : f32 to vector<8x128xf32>
    %121 = arith.maximumf %119, %120 : vector<8x128xf32>
    %c0_33 = arith.constant 0 : index
    %c0_34 = arith.constant 0 : index
    %122 = vector.load %arg9[%c0_33, %c0_34] : memref<128x32xf32, #tpu.memory_space<vmem>>, vector<128x32xf32>
    %cst_35 = arith.constant dense<0.000000e+00> : vector<8x32xf32>
    %123 = tpu.matmul %121, %122, %cst_35 {dimension_numbers = #tpu.dot_dimension_numbers<[1], [0], [0], [1], [0, 0, 1, 1], [], []>} : vector<8x128xf32>, vector<128x32xf32>, vector<8x32xf32> -> vector<8x32xf32>
    %c0_36 = arith.constant 0 : index
    %c0_37 = arith.constant 0 : index
    %124 = vector.load %arg10[%c0_36, %c0_37] : memref<1x32xf32, #tpu.memory_space<vmem>>, vector<1x32xf32>
    %125 = vector.broadcast %124 : vector<1x32xf32> to vector<8x32xf32>
    %126 = arith.addf %123, %125 : vector<8x32xf32>
    %127 = arith.addf %90, %126 : vector<8x32xf32>
    %c0_38 = arith.constant 0 : index
    %c0_39 = arith.constant 0 : index
    %128 = vector.load %arg11[%c0_38, %c0_39] : memref<8x32xf32, #tpu.memory_space<vmem>>, vector<8x32xf32>
    tpu.vector_store %arg11[%c0_38, %c0_39], %127 {strides = array<i32>} : memref<8x32xf32, #tpu.memory_space<vmem>>, vector<8x32xf32>,
    return
  }
  func.func @transform_0(%arg0: i32) -> (i32, i32) {
    %c0_i32 = arith.constant 0 : i32
    %c0_i32_0 = arith.constant 0 : i32
    return %arg0, %c0_i32 : i32, i32
  }
  func.func @transform_1(%arg0: i32) -> (i32, i32) {
    %c0_i32 = arith.constant 0 : i32
    %c0_i32_0 = arith.constant 0 : i32
    %c0_i32_1 = arith.constant 0 : i32
    return %c0_i32, %c0_i32_0 : i32, i32
  }
  func.func @transform_2(%arg0: i32) -> (i32, i32) {
    %c0_i32 = arith.constant 0 : i32
    %c0_i32_0 = arith.constant 0 : i32
    %c0_i32_1 = arith.constant 0 : i32
    return %c0_i32, %c0_i32_0 : i32, i32
  }
  func.func @transform_3(%arg0: i32) -> (i32, i32) {
    %c0_i32 = arith.constant 0 : i32
    %c0_i32_0 = arith.constant 0 : i32
    %c0_i32_1 = arith.constant 0 : i32
    return %c0_i32, %c0_i32_0 : i32, i32
  }
  func.func @transform_4(%arg0: i32) -> (i32, i32) {
    %c0_i32 = arith.constant 0 : i32
    %c0_i32_0 = arith.constant 0 : i32
    %c0_i32_1 = arith.constant 0 : i32
    return %c0_i32, %c0_i32_0 : i32, i32
  }
  func.func @transform_5(%arg0: i32) -> (i32, i32) {
    %c0_i32 = arith.constant 0 : i32
    %c0_i32_0 = arith.constant 0 : i32
    %c0_i32_1 = arith.constant 0 : i32
    return %c0_i32, %c0_i32_0 : i32, i32
  }
  func.func @transform_6(%arg0: i32) -> (i32, i32) {
    %c0_i32 = arith.constant 0 : i32
    %c0_i32_0 = arith.constant 0 : i32
    %c0_i32_1 = arith.constant 0 : i32
    return %c0_i32, %c0_i32_0 : i32, i32
  }
  func.func @transform_7(%arg0: i32) -> (i32, i32) {
    %c0_i32 = arith.constant 0 : i32
    %c0_i32_0 = arith.constant 0 : i32
    %c0_i32_1 = arith.constant 0 : i32
    return %c0_i32, %c0_i32_0 : i32, i32
  }
  func.func @transform_8(%arg0: i32) -> (i32, i32) {
    %c0_i32 = arith.constant 0 : i32
    %c0_i32_0 = arith.constant 0 : i32
    %c0_i32_1 = arith.constant 0 : i32
    return %c0_i32, %c0_i32_0 : i32, i32
  }
  func.func @transform_9(%arg0: i32) -> (i32, i32) {
    %c0_i32 = arith.constant 0 : i32
    %c0_i32_0 = arith.constant 0 : i32
    %c0_i32_1 = arith.constant 0 : i32
    return %c0_i32, %c0_i32_0 : i32, i32
  }
  func.func @transform_10(%arg0: i32) -> (i32, i32) {
    %c0_i32 = arith.constant 0 : i32
    %c0_i32_0 = arith.constant 0 : i32
    return %arg0, %c0_i32 : i32, i32
  }
}

module attributes {stable_mosaic.version = 11 : i64} {
  func.func @block_kernel(%arg0: i32, %arg1: memref<8x32xf32, #tpu.memory_space<vmem>>, %arg2: memref<1x32xf32, #tpu.memory_space<vmem>>, %arg3: memref<1x32xf32, #tpu.memory_space<vmem>>, %arg4: memref<32x96xf32, #tpu.memory_space<vmem>>, %arg5: memref<1x32xf32, #tpu.memory_space<vmem>>, %arg6: memref<1x32xf32, #tpu.memory_space<vmem>>, %arg7: memref<32x128xf32, #tpu.memory_space<vmem>>, %arg8: memref<1x128xf32, #tpu.memory_space<vmem>>, %arg9: memref<128x32xf32, #tpu.memory_space<vmem>>, %arg10: memref<1x32xf32, #tpu.memory_space<vmem>>, %arg11: memref<8x32xf32, #tpu.memory_space<vmem>>) attributes {dimension_semantics = [#tpu.dimension_semantics<parallel>], iteration_bounds = array<i64: 2>, scalar_prefetch = 0 : i64, scratch_operands = 0 : i64, tpu.core_type = #tpu.core_type<tc>, window_params = [{transform_indices = @transform_0, window_bounds = array<i64: 8, 32>}, {pipeline_mode = #tpu.pipeline_mode<synchronous>, transform_indices = @transform_1, window_bounds = array<i64: 1, 32>}, {pipeline_mode = #tpu.pipeline_mode<synchronous>, transform_indices = @transform_2, window_bounds = array<i64: 1, 32>}, {pipeline_mode = #tpu.pipeline_mode<synchronous>, transform_indices = @transform_3, window_bounds = array<i64: 32, 96>}, {pipeline_mode = #tpu.pipeline_mode<synchronous>, transform_indices = @transform_4, window_bounds = array<i64: 1, 32>}, {pipeline_mode = #tpu.pipeline_mode<synchronous>, transform_indices = @transform_5, window_bounds = array<i64: 1, 32>}, {pipeline_mode = #tpu.pipeline_mode<synchronous>, transform_indices = @transform_6, window_bounds = array<i64: 32, 128>}, {pipeline_mode = #tpu.pipeline_mode<synchronous>, transform_indices = @transform_7, window_bounds = array<i64: 1, 128>}, {pipeline_mode = #tpu.pipeline_mode<synchronous>, transform_indices = @transform_8, window_bounds = array<i64: 128, 32>}, {pipeline_mode = #tpu.pipeline_mode<synchronous>, transform_indices = @transform_9, window_bounds = array<i64: 1, 32>}, {transform_indices = @transform_10, window_bounds = array<i64: 8, 32>}]} {
    %c0 = arith.constant 0 : index
    %c0_0 = arith.constant 0 : index
    %0 = vector.load %arg1[%c0, %c0_0] : memref<8x32xf32, #tpu.memory_space<vmem>>, vector<8x32xf32>
    %c0_1 = arith.constant 0 : index
    %c0_2 = arith.constant 0 : index
    %1 = vector.load %arg2[%c0_1, %c0_2] : memref<1x32xf32, #tpu.memory_space<vmem>>, vector<1x32xf32>
    %c0_3 = arith.constant 0 : index
    %c0_4 = arith.constant 0 : index
    %2 = vector.load %arg3[%c0_3, %c0_4] : memref<1x32xf32, #tpu.memory_space<vmem>>, vector<1x32xf32>
    %cst = arith.constant dense<0.000000e+00> : vector<8xf32>
    %3 = vector.multi_reduction <add>, %0, %cst [1] : vector<8x32xf32> to vector<8xf32>
    %4 = vector.shape_cast %3 : vector<8xf32> to vector<8x1xf32>
    %cst_5 = arith.constant 3.200000e+01 : f32
    %5 = vector.broadcast %cst_5 : f32 to vector<8x1xf32>
    %6 = arith.divf %4, %5 : vector<8x1xf32>
    %7 = vector.broadcast %6 : vector<8x1xf32> to vector<8x32xf32>
    %8 = arith.subf %0, %7 : vector<8x32xf32>
    %9 = arith.mulf %8, %8 : vector<8x32xf32>
    %cst_6 = arith.constant dense<0.000000e+00> : vector<8xf32>
    %10 = vector.multi_reduction <add>, %9, %cst_6 [1] : vector<8x32xf32> to vector<8xf32>
    %11 = vector.shape_cast %10 : vector<8xf32> to vector<8x1xf32>
    %cst_7 = arith.constant 3.200000e+01 : f32
    %12 = vector.broadcast %cst_7 : f32 to vector<8x1xf32>
    %13 = arith.divf %11, %12 : vector<8x1xf32>
    %14 = vector.broadcast %6 : vector<8x1xf32> to vector<8x32xf32>
    %15 = arith.subf %0, %14 : vector<8x32xf32>
    %cst_8 = arith.constant 9.99999974E-6 : f32
    %16 = vector.broadcast %cst_8 : f32 to vector<8x1xf32>
    %17 = arith.addf %13, %16 : vector<8x1xf32>
    %18 = math.rsqrt %17 : vector<8x1xf32>
    %19 = vector.broadcast %18 : vector<8x1xf32> to vector<8x32xf32>
    %20 = arith.mulf %15, %19 : vector<8x32xf32>
    %21 = vector.broadcast %1 : vector<1x32xf32> to vector<8x32xf32>
    %22 = arith.mulf %20, %21 : vector<8x32xf32>
    %23 = vector.broadcast %2 : vector<1x32xf32> to vector<8x32xf32>
    %24 = arith.addf %22, %23 : vector<8x32xf32>
    %c0_9 = arith.constant 0 : index
    %c0_10 = arith.constant 0 : index
    %25 = vector.load %arg4[%c0_9, %c0_10] : memref<32x96xf32, #tpu.memory_space<vmem>>, vector<32x96xf32>
    %cst_11 = arith.constant dense<0.000000e+00> : vector<8x96xf32>
    %26 = tpu.matmul %24, %25, %cst_11 {dimension_numbers = #tpu.dot_dimension_numbers<[1], [0], [0], [1], [0, 0, 1, 1], [], []>} : vector<8x32xf32>, vector<32x96xf32>, vector<8x96xf32> -> vector<8x96xf32>
    %27 = tpu.iota {dimensions = array<i32: 0>} : vector<8x8xi32>
    %28 = tpu.iota {dimensions = array<i32: 1>} : vector<8x8xi32>
    %29 = arith.cmpi sle, %28, %27 : vector<8x8xi32>
    %cst_12 = arith.constant 0.000000e+00 : f32
    %cst_13 = arith.constant -1.000000e+30 : f32
    %30 = vector.broadcast %cst_12 : f32 to vector<8x8xf32>
    %31 = vector.broadcast %cst_13 : f32 to vector<8x8xf32>
    %32 = arith.select %29, %30, %31 : vector<8x8xi1>, vector<8x8xf32>
    %33 = vector.extract_strided_slice %26 {offsets = [0, 0], sizes = [8, 32], strides = [1, 1]} : vector<8x96xf32> to vector<8x32xf32>
    %34 = vector.extract_strided_slice %33 {offsets = [0, 0], sizes = [8, 8], strides = [1, 1]} : vector<8x32xf32> to vector<8x8xf32>
    %35 = vector.shape_cast %34 : vector<8x8xf32> to vector<1x1x8x8xf32>
    %36 = vector.extract_strided_slice %33 {offsets = [0, 8], sizes = [8, 8], strides = [1, 1]} : vector<8x32xf32> to vector<8x8xf32>
    %37 = vector.shape_cast %36 : vector<8x8xf32> to vector<1x1x8x8xf32>
    %38 = vector.extract_strided_slice %33 {offsets = [0, 16], sizes = [8, 8], strides = [1, 1]} : vector<8x32xf32> to vector<8x8xf32>
    %39 = vector.shape_cast %38 : vector<8x8xf32> to vector<1x1x8x8xf32>
    %40 = vector.extract_strided_slice %33 {offsets = [0, 24], sizes = [8, 8], strides = [1, 1]} : vector<8x32xf32> to vector<8x8xf32>
    %41 = vector.shape_cast %40 : vector<8x8xf32> to vector<1x1x8x8xf32>
    %42 = tpu.concatenate %35, %37, %39, %41 in 0 : vector<1x1x8x8xf32>, vector<1x1x8x8xf32>, vector<1x1x8x8xf32>, vector<1x1x8x8xf32> -> vector<4x1x8x8xf32>
    %43 = vector.shape_cast %42 : vector<4x1x8x8xf32> to vector<4x8x8xf32>
    %44 = vector.extract_strided_slice %26 {offsets = [0, 32], sizes = [8, 32], strides = [1, 1]} : vector<8x96xf32> to vector<8x32xf32>
    %45 = vector.extract_strided_slice %44 {offsets = [0, 0], sizes = [8, 8], strides = [1, 1]} : vector<8x32xf32> to vector<8x8xf32>
    %46 = vector.shape_cast %45 : vector<8x8xf32> to vector<1x1x8x8xf32>
    %47 = vector.extract_strided_slice %44 {offsets = [0, 8], sizes = [8, 8], strides = [1, 1]} : vector<8x32xf32> to vector<8x8xf32>
    %48 = vector.shape_cast %47 : vector<8x8xf32> to vector<1x1x8x8xf32>
    %49 = vector.extract_strided_slice %44 {offsets = [0, 16], sizes = [8, 8], strides = [1, 1]} : vector<8x32xf32> to vector<8x8xf32>
    %50 = vector.shape_cast %49 : vector<8x8xf32> to vector<1x1x8x8xf32>
    %51 = vector.extract_strided_slice %44 {offsets = [0, 24], sizes = [8, 8], strides = [1, 1]} : vector<8x32xf32> to vector<8x8xf32>
    %52 = vector.shape_cast %51 : vector<8x8xf32> to vector<1x1x8x8xf32>
    %53 = tpu.concatenate %46, %48, %50, %52 in 0 : vector<1x1x8x8xf32>, vector<1x1x8x8xf32>, vector<1x1x8x8xf32>, vector<1x1x8x8xf32> -> vector<4x1x8x8xf32>
    %54 = vector.shape_cast %53 : vector<4x1x8x8xf32> to vector<4x8x8xf32>
    %55 = vector.extract_strided_slice %26 {offsets = [0, 64], sizes = [8, 32], strides = [1, 1]} : vector<8x96xf32> to vector<8x32xf32>
    %56 = vector.extract_strided_slice %55 {offsets = [0, 0], sizes = [8, 8], strides = [1, 1]} : vector<8x32xf32> to vector<8x8xf32>
    %57 = vector.shape_cast %56 : vector<8x8xf32> to vector<1x1x8x8xf32>
    %58 = vector.extract_strided_slice %55 {offsets = [0, 8], sizes = [8, 8], strides = [1, 1]} : vector<8x32xf32> to vector<8x8xf32>
    %59 = vector.shape_cast %58 : vector<8x8xf32> to vector<1x1x8x8xf32>
    %60 = vector.extract_strided_slice %55 {offsets = [0, 16], sizes = [8, 8], strides = [1, 1]} : vector<8x32xf32> to vector<8x8xf32>
    %61 = vector.shape_cast %60 : vector<8x8xf32> to vector<1x1x8x8xf32>
    %62 = vector.extract_strided_slice %55 {offsets = [0, 24], sizes = [8, 8], strides = [1, 1]} : vector<8x32xf32> to vector<8x8xf32>
    %63 = vector.shape_cast %62 : vector<8x8xf32> to vector<1x1x8x8xf32>
    %64 = tpu.concatenate %57, %59, %61, %63 in 0 : vector<1x1x8x8xf32>, vector<1x1x8x8xf32>, vector<1x1x8x8xf32>, vector<1x1x8x8xf32> -> vector<4x1x8x8xf32>
    %65 = vector.shape_cast %64 : vector<4x1x8x8xf32> to vector<4x8x8xf32>
    "tpu.trace_start"() <{level = 10 : i32, message = "bqd,bkd->bqk"}> : () -> ()
    %cst_14 = arith.constant dense<0.000000e+00> : vector<4x8x8xf32>
    %66 = tpu.matmul %43, %54, %cst_14 {dimension_numbers = #tpu.dot_dimension_numbers<[2], [2], [1], [1], [0, 0, 0, 1, 1, 1], [0], [0]>} : vector<4x8x8xf32>, vector<4x8x8xf32>, vector<4x8x8xf32> -> vector<4x8x8xf32>
    "tpu.trace_stop"() : () -> ()
    %67 = vector.shape_cast %32 : vector<8x8xf32> to vector<1x8x8xf32>
    %68 = vector.broadcast %67 : vector<1x8x8xf32> to vector<4x8x8xf32>
    %69 = arith.addf %66, %68 : vector<4x8x8xf32>
    %cst_15 = arith.constant dense<0xFF800000> : vector<4x8xf32>
    %70 = vector.multi_reduction <maximumf>, %69, %cst_15 [2] : vector<4x8x8xf32> to vector<4x8xf32>
    %71 = vector.shape_cast %70 : vector<4x8xf32> to vector<4x8x1xf32>
    %72 = vector.broadcast %71 : vector<4x8x1xf32> to vector<4x8x8xf32>
    %73 = arith.subf %69, %72 : vector<4x8x8xf32>
    %74 = math.exp %73 : vector<4x8x8xf32>
    %cst_16 = arith.constant dense<0.000000e+00> : vector<4x8xf32>
    %75 = vector.multi_reduction <add>, %74, %cst_16 [2] : vector<4x8x8xf32> to vector<4x8xf32>
    %76 = vector.shape_cast %75 : vector<4x8xf32> to vector<4x8x1xf32>
    %77 = tpu.reciprocal %76 : vector<4x8x1xf32> -> vector<4x8x1xf32>
    %78 = vector.broadcast %77 : vector<4x8x1xf32> to vector<4x8x8xf32>
    %79 = arith.mulf %74, %78 : vector<4x8x8xf32>
    "tpu.trace_start"() <{level = 10 : i32, message = "bqk,bkd->bqd"}> : () -> ()
    %cst_17 = arith.constant dense<0.000000e+00> : vector<4x8x8xf32>
    %80 = tpu.matmul %79, %65, %cst_17 {dimension_numbers = #tpu.dot_dimension_numbers<[2], [1], [1], [2], [0, 0, 0, 1, 1, 2], [0], [0]>} : vector<4x8x8xf32>, vector<4x8x8xf32>, vector<4x8x8xf32> -> vector<4x8x8xf32>
    "tpu.trace_stop"() : () -> ()
    %81 = vector.extract_strided_slice %80 {offsets = [0, 0, 0], sizes = [1, 8, 8], strides = [1, 1, 1]} : vector<4x8x8xf32> to vector<1x8x8xf32>
    %82 = vector.shape_cast %81 : vector<1x8x8xf32> to vector<8x8xf32>
    %83 = vector.extract_strided_slice %80 {offsets = [1, 0, 0], sizes = [1, 8, 8], strides = [1, 1, 1]} : vector<4x8x8xf32> to vector<1x8x8xf32>
    %84 = vector.shape_cast %83 : vector<1x8x8xf32> to vector<8x8xf32>
    %85 = vector.extract_strided_slice %80 {offsets = [2, 0, 0], sizes = [1, 8, 8], strides = [1, 1, 1]} : vector<4x8x8xf32> to vector<1x8x8xf32>
    %86 = vector.shape_cast %85 : vector<1x8x8xf32> to vector<8x8xf32>
    %87 = vector.extract_strided_slice %80 {offsets = [3, 0, 0], sizes = [1, 8, 8], strides = [1, 1, 1]} : vector<4x8x8xf32> to vector<1x8x8xf32>
    %88 = vector.shape_cast %87 : vector<1x8x8xf32> to vector<8x8xf32>
    %89 = tpu.concatenate %82, %84, %86, %88 in 1 : vector<8x8xf32>, vector<8x8xf32>, vector<8x8xf32>, vector<8x8xf32> -> vector<8x32xf32>
    %90 = arith.addf %0, %89 : vector<8x32xf32>
    %c0_18 = arith.constant 0 : index
    %c0_19 = arith.constant 0 : index
    %91 = vector.load %arg5[%c0_18, %c0_19] : memref<1x32xf32, #tpu.memory_space<vmem>>, vector<1x32xf32>
    %c0_20 = arith.constant 0 : index
    %c0_21 = arith.constant 0 : index
    %92 = vector.load %arg6[%c0_20, %c0_21] : memref<1x32xf32, #tpu.memory_space<vmem>>, vector<1x32xf32>
    %cst_22 = arith.constant dense<0.000000e+00> : vector<8xf32>
    %93 = vector.multi_reduction <add>, %90, %cst_22 [1] : vector<8x32xf32> to vector<8xf32>
    %94 = vector.shape_cast %93 : vector<8xf32> to vector<8x1xf32>
    %cst_23 = arith.constant 3.200000e+01 : f32
    %95 = vector.broadcast %cst_23 : f32 to vector<8x1xf32>
    %96 = arith.divf %94, %95 : vector<8x1xf32>
    %97 = vector.broadcast %96 : vector<8x1xf32> to vector<8x32xf32>
    %98 = arith.subf %90, %97 : vector<8x32xf32>
    %99 = arith.mulf %98, %98 : vector<8x32xf32>
    %cst_24 = arith.constant dense<0.000000e+00> : vector<8xf32>
    %100 = vector.multi_reduction <add>, %99, %cst_24 [1] : vector<8x32xf32> to vector<8xf32>
    %101 = vector.shape_cast %100 : vector<8xf32> to vector<8x1xf32>
    %cst_25 = arith.constant 3.200000e+01 : f32
    %102 = vector.broadcast %cst_25 : f32 to vector<8x1xf32>
    %103 = arith.divf %101, %102 : vector<8x1xf32>
    %104 = vector.broadcast %96 : vector<8x1xf32> to vector<8x32xf32>
    %105 = arith.subf %90, %104 : vector<8x32xf32>
    %cst_26 = arith.constant 9.99999974E-6 : f32
    %106 = vector.broadcast %cst_26 : f32 to vector<8x1xf32>
    %107 = arith.addf %103, %106 : vector<8x1xf32>
    %108 = math.rsqrt %107 : vector<8x1xf32>
    %109 = vector.broadcast %108 : vector<8x1xf32> to vector<8x32xf32>
    %110 = arith.mulf %105, %109 : vector<8x32xf32>
    %111 = vector.broadcast %91 : vector<1x32xf32> to vector<8x32xf32>
    %112 = arith.mulf %110, %111 : vector<8x32xf32>
    %113 = vector.broadcast %92 : vector<1x32xf32> to vector<8x32xf32>
    %114 = arith.addf %112, %113 : vector<8x32xf32>
    %c0_27 = arith.constant 0 : index
    %c0_28 = arith.constant 0 : index
    %115 = vector.load %arg7[%c0_27, %c0_28] : memref<32x128xf32, #tpu.memory_space<vmem>>, vector<32x128xf32>
    %cst_29 = arith.constant dense<0.000000e+00> : vector<8x128xf32>
    %116 = tpu.matmul %114, %115, %cst_29 {dimension_numbers = #tpu.dot_dimension_numbers<[1], [0], [0], [1], [0, 0, 1, 1], [], []>} : vector<8x32xf32>, vector<32x128xf32>, vector<8x128xf32> -> vector<8x128xf32>
    %c0_30 = arith.constant 0 : index
    %c0_31 = arith.constant 0 : index
    %117 = vector.load %arg8[%c0_30, %c0_31] : memref<1x128xf32, #tpu.memory_space<vmem>>, vector<1x128xf32>
    %118 = vector.broadcast %117 : vector<1x128xf32> to vector<8x128xf32>
    %119 = arith.addf %116, %118 : vector<8x128xf32>
    %cst_32 = arith.constant 0.000000e+00 : f32
    %120 = vector.broadcast %cst_32 : f32 to vector<8x128xf32>
    %121 = arith.maximumf %119, %120 : vector<8x128xf32>
    %c0_33 = arith.constant 0 : index
    %c0_34 = arith.constant 0 : index
    %122 = vector.load %arg9[%c0_33, %c0_34] : memref<128x32xf32, #tpu.memory_space<vmem>>, vector<128x32xf32>
    %cst_35 = arith.constant dense<0.000000e+00> : vector<8x32xf32>
    %123 = tpu.matmul %121, %122, %cst_35 {dimension_numbers = #tpu.dot_dimension_numbers<[1], [0], [0], [1], [0, 0, 1, 1], [], []>} : vector<8x128xf32>, vector<128x32xf32>, vector<8x32xf32> -> vector<8x32xf32>
    %c0_36 = arith.constant 0 : index
    %c0_37 = arith.constant 0 : index
    %124 = vector.load %arg10[%c0_36, %c0_37] : memref<1x32xf32, #tpu.memory_space<vmem>>, vector<1x32xf32>
    %125 = vector.broadcast %124 : vector<1x32xf32> to vector<8x32xf32>
    %126 = arith.addf %123, %125 : vector<8x32xf32>
    %127 = arith.addf %90, %126 : vector<8x32xf32>
    %c0_38 = arith.constant 0 : index
    %c0_39 = arith.constant 0 : index
    %128 = vector.load %arg11[%c0_38, %c0_39] : memref<8x32xf32, #tpu.memory_space<vmem>>, vector<8x32xf32>
    tpu.vector_store %arg11[%c0_38, %c0_39], %127 {strides = array<i32>} : memref<8x32xf32, #tpu.memory_space<vmem>>, vector<8x32xf32>,
    return
  }
  func.func @transform_0(%arg0: i32) -> (i32, i32) {
    %c0_i32 = arith.constant 0 : i32
    %c0_i32_0 = arith.constant 0 : i32
    return %arg0, %c0_i32 : i32, i32
  }
  func.func @transform_1(%arg0: i32) -> (i32, i32) {
    %c0_i32 = arith.constant 0 : i32
    %c0_i32_0 = arith.constant 0 : i32
    %c0_i32_1 = arith.constant 0 : i32
    return %c0_i32, %c0_i32_0 : i32, i32
  }
  func.func @transform_2(%arg0: i32) -> (i32, i32) {
    %c0_i32 = arith.constant 0 : i32
    %c0_i32_0 = arith.constant 0 : i32
    %c0_i32_1 = arith.constant 0 : i32
    return %c0_i32, %c0_i32_0 : i32, i32
  }
  func.func @transform_3(%arg0: i32) -> (i32, i32) {
    %c0_i32 = arith.constant 0 : i32
    %c0_i32_0 = arith.constant 0 : i32
    %c0_i32_1 = arith.constant 0 : i32
    return %c0_i32, %c0_i32_0 : i32, i32
  }
  func.func @transform_4(%arg0: i32) -> (i32, i32) {
    %c0_i32 = arith.constant 0 : i32
    %c0_i32_0 = arith.constant 0 : i32
    %c0_i32_1 = arith.constant 0 : i32
    return %c0_i32, %c0_i32_0 : i32, i32
  }
  func.func @transform_5(%arg0: i32) -> (i32, i32) {
    %c0_i32 = arith.constant 0 : i32
    %c0_i32_0 = arith.constant 0 : i32
    %c0_i32_1 = arith.constant 0 : i32
    return %c0_i32, %c0_i32_0 : i32, i32
  }
  func.func @transform_6(%arg0: i32) -> (i32, i32) {
    %c0_i32 = arith.constant 0 : i32
    %c0_i32_0 = arith.constant 0 : i32
    %c0_i32_1 = arith.constant 0 : i32
    return %c0_i32, %c0_i32_0 : i32, i32
  }
  func.func @transform_7(%arg0: i32) -> (i32, i32) {
    %c0_i32 = arith.constant 0 : i32
    %c0_i32_0 = arith.constant 0 : i32
    %c0_i32_1 = arith.constant 0 : i32
    return %c0_i32, %c0_i32_0 : i32, i32
  }
  func.func @transform_8(%arg0: i32) -> (i32, i32) {
    %c0_i32 = arith.constant 0 : i32
    %c0_i32_0 = arith.constant 0 : i32
    %c0_i32_1 = arith.constant 0 : i32
    return %c0_i32, %c0_i32_0 : i32, i32
  }
  func.func @transform_9(%arg0: i32) -> (i32, i32) {
    %c0_i32 = arith.constant 0 : i32
    %c0_i32_0 = arith.constant 0 : i32
    %c0_i32_1 = arith.constant 0 : i32
    return %c0_i32, %c0_i32_0 : i32, i32
  }
  func.func @transform_10(%arg0: i32) -> (i32, i32) {
    %c0_i32 = arith.constant 0 : i32
    %c0_i32_0 = arith.constant 0 : i32
    return %arg0, %c0_i32 : i32, i32
  }
}

</mosaic_0001>

<llo_original>
// kernel: tpu_custom_call.1
$region0: #{tpu_custom_call.1}
  #allocation0 [shape = 'u32[]', space=smem, size = 0x4, offset = 0x4, fixed_abs, tag = 'smem constant byte address 0x4 - core index']
  #allocation1 [shape = 'u32[144,128]{1,0:T(1,128)}', space=vmem, size = 0x12000, scoped, tag = 'internal scratch']
  %s0 = inlined_call_operand.vmem [shape: f32[16,32], index: 0, kind: input, shape index: {}]
  %s1 = inlined_call_operand.vmem [shape: f32[1,32], index: 1, kind: input, shape index: {}]
  %s2 = inlined_call_operand.vmem [shape: f32[1,32], index: 2, kind: input, shape index: {}]
  %s3 = inlined_call_operand.vmem [shape: f32[32,96], index: 3, kind: input, shape index: {}]
  %s4 = inlined_call_operand.vmem [shape: f32[1,32], index: 4, kind: input, shape index: {}]
  %s5 = inlined_call_operand.vmem [shape: f32[1,32], index: 5, kind: input, shape index: {}]
  %s6 = inlined_call_operand.vmem [shape: f32[32,128], index: 6, kind: input, shape index: {}]
  %s7 = inlined_call_operand.vmem [shape: f32[1,128], index: 7, kind: input, shape index: {}]
  %s8 = inlined_call_operand.vmem [shape: f32[128,32], index: 8, kind: input, shape index: {}]
  %s9 = inlined_call_operand.vmem [shape: f32[1,32], index: 9, kind: input, shape index: {}]
  %s10 = inlined_call_operand.hbm [shape: f32[16,32], index: 10, kind: output, shape index: {}]
  %s11 = sld [smem:[#allocation0]]
  $region73: #{tpu_custom_call.1} parent=0
    _
  %s13 = ssub.s32 1, %s11
  %s14 = scalar_select 0, %s13, %s11
  $region1: #{tpu_custom_call.1} parent=0
    #allocation2 [shape = 'u8[8192]{0}', space=vmem, size = 0x2000, scoped, tag = 'output window, operand 0']
    #allocation3 [shape = 's32[2]{0}', space=sflag, size = 0x8, scoped, tag = 'scoped memory for tpu_custom_call.1']
    %15 = vsyncpa [#allocation3], 0
    %s16 = scalar_lea.sflag [#allocation3], 1
    %17 = vsyncpa %s16, 0
    loop: start=0, step=1, limit=4
    $region2: #{tpu_custom_call.1} parent=1 // loop_pre_header
      _
    $region3: #{tpu_custom_call.1} parent=1 // loop_header
      %s19 = sphi 0, %s23
      %p20 = scmp.ge.s32.totalorder %s19, 4
      %s29 = sphi 0, %s31
      %s32 = sphi 0, %s29
      %s33 = sphi 0, %s32
      %s49 = sphi 0, %s33
      %s53 = sphi 0, %s53
      %s55 = sphi 0, %s53
      %s56 = sphi 0, %s55
      %s70 = sphi 0, %s56
      %s74 = sphi 0, %s74
      %s76 = sphi 0, %s74
      %s77 = sphi 0, %s76
      %s91 = sphi 0, %s77
      %s95 = sphi 0, %s95
      %s97 = sphi 0, %s95
      %s98 = sphi 0, %s97
      %s112 = sphi 0, %s98
      %s116 = sphi 0, %s116
      %s118 = sphi 0, %s116
      %s119 = sphi 0, %s118
      %s133 = sphi 0, %s119
      %s137 = sphi 0, %s137
      %s139 = sphi 0, %s137
      %s140 = sphi 0, %s139
      %s154 = sphi 0, %s140
      %s158 = sphi 0, %s158
      %s160 = sphi 0, %s158
      %s161 = sphi 0, %s160
      %s175 = sphi 0, %s161
      %s179 = sphi 0, %s179
      %s181 = sphi 0, %s179
      %s182 = sphi 0, %s181
      %s196 = sphi 0, %s182
      %s200 = sphi 0, %s200
      %s202 = sphi 0, %s200
      %s203 = sphi 0, %s202
      %s217 = sphi 0, %s203
      %s221 = sphi 0, %s221
      %s223 = sphi 0, %s221
      %s224 = sphi 0, %s223
      %s238 = sphi 0, %s224
      %s244 = sphi 0, %s246
      %s247 = sphi 0, %s244
      %s248 = sphi 0, %s247
      %s264 = sphi 0, %s248
    $region4: #{tpu_custom_call.1} parent=1 // loop_header_branch
      %22 = sbr.rel (%p20) target = $region8
    $region5: #{tpu_custom_call.1} parent=1 // loop_body
      %s24 = ssub.s32 %s19, 1
      %s25 = ssub.s32 %s19, 2
      %s26 = sadd.s32 %s19, 1
      %s27 = ssub.s32 %s19, %s26
      %p28 = scmp.eq.s32.totalorder %s27, 0
      %s30 = sadd.s32 %s29, 1
      %s31 = scalar_select %p28, %s29, %s30
      %p34 = pneg %p28
      %p35 = scmp.eq.s32.totalorder %s19, 1
      %p36 = por %p34, %p35
      %p37 = scmp.ne.s32.totalorder %s29, %s32
      %p38 = scmp.eq.s32.totalorder %s19, 0
      %p39 = por %p37, %p38
      %p40 = scmp.ne.s32.totalorder %s29, %s32
      %p41 = scmp.eq.s32.totalorder %s24, 1
      %p42 = por %p40, %p41
      %p43 = scmp.ne.s32.totalorder %s32, %s33
      %p44 = scmp.eq.s32.totalorder %s24, 0
      %p45 = por %p43, %p44
      %p46 = scmp.ne.s32.totalorder %s32, %s33
      %p47 = scmp.eq.s32.totalorder %s25, 1
      %p48 = por %p46, %p47
      %p50 = scmp.ne.s32.totalorder %s33, %s49
      %p51 = scmp.eq.s32.totalorder %s25, 0
      %p52 = por %p50, %p51
      %s54 = sadd.s32 %s53, 1
      %p57 = scmp.eq.s32.totalorder %s19, 1
      %p58 = scmp.ne.s32.totalorder %s53, %s55
      %p59 = scmp.eq.s32.totalorder %s19, 0
      %p60 = por %p58, %p59
      %p61 = scmp.ne.s32.totalorder %s53, %s55
      %p62 = scmp.eq.s32.totalorder %s24, 1
      %p63 = por %p61, %p62
      %p64 = scmp.ne.s32.totalorder %s55, %s56
      %p65 = scmp.eq.s32.totalorder %s24, 0
      %p66 = por %p64, %p65
      %p67 = scmp.ne.s32.totalorder %s55, %s56
      %p68 = scmp.eq.s32.totalorder %s25, 1
      %p69 = por %p67, %p68
      %p71 = scmp.ne.s32.totalorder %s56, %s70
      %p72 = scmp.eq.s32.totalorder %s25, 0
      %p73 = por %p71, %p72
      %s75 = sadd.s32 %s74, 1
      %p78 = scmp.eq.s32.totalorder %s19, 1
      %p79 = scmp.ne.s32.totalorder %s74, %s76
      %p80 = scmp.eq.s32.totalorder %s19, 0
      %p81 = por %p79, %p80
      %p82 = scmp.ne.s32.totalorder %s74, %s76
      %p83 = scmp.eq.s32.totalorder %s24, 1
      %p84 = por %p82, %p83
      %p85 = scmp.ne.s32.totalorder %s76, %s77
      %p86 = scmp.eq.s32.totalorder %s24, 0
      %p87 = por %p85, %p86
      %p88 = scmp.ne.s32.totalorder %s76, %s77
      %p89 = scmp.eq.s32.totalorder %s25, 1
      %p90 = por %p88, %p89
      %p92 = scmp.ne.s32.totalorder %s77, %s91
      %p93 = scmp.eq.s32.totalorder %s25, 0
      %p94 = por %p92, %p93
      %s96 = sadd.s32 %s95, 1
      %p99 = scmp.eq.s32.totalorder %s19, 1
      %p100 = scmp.ne.s32.totalorder %s95, %s97
      %p101 = scmp.eq.s32.totalorder %s19, 0
      %p102 = por %p100, %p101
      %p103 = scmp.ne.s32.totalorder %s95, %s97
      %p104 = scmp.eq.s32.totalorder %s24, 1
      %p105 = por %p103, %p104
      %p106 = scmp.ne.s32.totalorder %s97, %s98
      %p107 = scmp.eq.s32.totalorder %s24, 0
      %p108 = por %p106, %p107
      %p109 = scmp.ne.s32.totalorder %s97, %s98
      %p110 = scmp.eq.s32.totalorder %s25, 1
      %p111 = por %p109, %p110
      %p113 = scmp.ne.s32.totalorder %s98, %s112
      %p114 = scmp.eq.s32.totalorder %s25, 0
      %p115 = por %p113, %p114
      %s117 = sadd.s32 %s116, 1
      %p120 = scmp.eq.s32.totalorder %s19, 1
      %p121 = scmp.ne.s32.totalorder %s116, %s118
      %p122 = scmp.eq.s32.totalorder %s19, 0
      %p123 = por %p121, %p122
      %p124 = scmp.ne.s32.totalorder %s116, %s118
      %p125 = scmp.eq.s32.totalorder %s24, 1
      %p126 = por %p124, %p125
      %p127 = scmp.ne.s32.totalorder %s118, %s119
      %p128 = scmp.eq.s32.totalorder %s24, 0
      %p129 = por %p127, %p128
      %p130 = scmp.ne.s32.totalorder %s118, %s119
      %p131 = scmp.eq.s32.totalorder %s25, 1
      %p132 = por %p130, %p131
      %p134 = scmp.ne.s32.totalorder %s119, %s133
      %p135 = scmp.eq.s32.totalorder %s25, 0
      %p136 = por %p134, %p135
      %s138 = sadd.s32 %s137, 1
      %p141 = scmp.eq.s32.totalorder %s19, 1
      %p142 = scmp.ne.s32.totalorder %s137, %s139
      %p143 = scmp.eq.s32.totalorder %s19, 0
      %p144 = por %p142, %p143
      %p145 = scmp.ne.s32.totalorder %s137, %s139
      %p146 = scmp.eq.s32.totalorder %s24, 1
      %p147 = por %p145, %p146
      %p148 = scmp.ne.s32.totalorder %s139, %s140
      %p149 = scmp.eq.s32.totalorder %s24, 0
      %p150 = por %p148, %p149
      %p151 = scmp.ne.s32.totalorder %s139, %s140
      %p152 = scmp.eq.s32.totalorder %s25, 1
      %p153 = por %p151, %p152
      %p155 = scmp.ne.s32.totalorder %s140, %s154
      %p156 = scmp.eq.s32.totalorder %s25, 0
      %p157 = por %p155, %p156
      %s159 = sadd.s32 %s158, 1
      %p162 = scmp.eq.s32.totalorder %s19, 1
      %p163 = scmp.ne.s32.totalorder %s158, %s160
      %p164 = scmp.eq.s32.totalorder %s19, 0
      %p165 = por %p163, %p164
      %p166 = scmp.ne.s32.totalorder %s158, %s160
      %p167 = scmp.eq.s32.totalorder %s24, 1
      %p168 = por %p166, %p167
      %p169 = scmp.ne.s32.totalorder %s160, %s161
      %p170 = scmp.eq.s32.totalorder %s24, 0
      %p171 = por %p169, %p170
      %p172 = scmp.ne.s32.totalorder %s160, %s161
      %p173 = scmp.eq.s32.totalorder %s25, 1
      %p174 = por %p172, %p173
      %p176 = scmp.ne.s32.totalorder %s161, %s175
      %p177 = scmp.eq.s32.totalorder %s25, 0
      %p178 = por %p176, %p177
      %s180 = sadd.s32 %s179, 1
      %p183 = scmp.eq.s32.totalorder %s19, 1
      %p184 = scmp.ne.s32.totalorder %s179, %s181
      %p185 = scmp.eq.s32.totalorder %s19, 0
      %p186 = por %p184, %p185
      %p187 = scmp.ne.s32.totalorder %s179, %s181
      %p188 = scmp.eq.s32.totalorder %s24, 1
      %p189 = por %p187, %p188
      %p190 = scmp.ne.s32.totalorder %s181, %s182
      %p191 = scmp.eq.s32.totalorder %s24, 0
      %p192 = por %p190, %p191
      %p193 = scmp.ne.s32.totalorder %s181, %s182
      %p194 = scmp.eq.s32.totalorder %s25, 1
      %p195 = por %p193, %p194
      %p197 = scmp.ne.s32.totalorder %s182, %s196
      %p198 = scmp.eq.s32.totalorder %s25, 0
      %p199 = por %p197, %p198
      %s201 = sadd.s32 %s200, 1
      %p204 = scmp.eq.s32.totalorder %s19, 1
      %p205 = scmp.ne.s32.totalorder %s200, %s202
      %p206 = scmp.eq.s32.totalorder %s19, 0
      %p207 = por %p205, %p206
      %p208 = scmp.ne.s32.totalorder %s200, %s202
      %p209 = scmp.eq.s32.totalorder %s24, 1
      %p210 = por %p208, %p209
      %p211 = scmp.ne.s32.totalorder %s202, %s203
      %p212 = scmp.eq.s32.totalorder %s24, 0
      %p213 = por %p211, %p212
      %p214 = scmp.ne.s32.totalorder %s202, %s203
      %p215 = scmp.eq.s32.totalorder %s25, 1
      %p216 = por %p214, %p215
      %p218 = scmp.ne.s32.totalorder %s203, %s217
      %p219 = scmp.eq.s32.totalorder %s25, 0
      %p220 = por %p218, %p219
      %s222 = sadd.s32 %s221, 1
      %p225 = scmp.eq.s32.totalorder %s19, 1
      %p226 = scmp.ne.s32.totalorder %s221, %s223
      %p227 = scmp.eq.s32.totalorder %s19, 0
      %p228 = por %p226, %p227
      %p229 = scmp.ne.s32.totalorder %s221, %s223
      %p230 = scmp.eq.s32.totalorder %s24, 1
      %p231 = por %p229, %p230
      %p232 = scmp.ne.s32.totalorder %s223, %s224
      %p233 = scmp.eq.s32.totalorder %s24, 0
      %p234 = por %p232, %p233
      %p235 = scmp.ne.s32.totalorder %s223, %s224
      %p236 = scmp.eq.s32.totalorder %s25, 1
      %p237 = por %p235, %p236
      %p239 = scmp.ne.s32.totalorder %s224, %s238
      %p240 = scmp.eq.s32.totalorder %s25, 0
      %p241 = por %p239, %p240
      %s242 = ssub.s32 %s19, %s26
      %p243 = scmp.eq.s32.totalorder %s242, 0
      %s245 = sadd.s32 %s244, 1
      %s246 = scalar_select %p243, %s244, %s245
      %p249 = pneg %p243
      %p250 = scmp.eq.s32.totalorder %s19, 1
      %p251 = por %p249, %p250
      %p252 = scmp.ne.s32.totalorder %s244, %s247
      %p253 = scmp.eq.s32.totalorder %s19, 0
      %p254 = por %p252, %p253
      %p255 = scmp.ne.s32.totalorder %s244, %s247
      %p256 = scmp.eq.s32.totalorder %s24, 1
      %p257 = por %p255, %p256
      %p258 = scmp.ne.s32.totalorder %s247, %s248
      %p259 = scmp.eq.s32.totalorder %s24, 0
      %p260 = por %p258, %p259
      %p261 = scmp.ne.s32.totalorder %s247, %s248
      %p262 = scmp.eq.s32.totalorder %s25, 1
      %p263 = por %p261, %p262
      %p265 = scmp.ne.s32.totalorder %s248, %s264
      %p266 = scmp.eq.s32.totalorder %s25, 0
      %p267 = por %p265, %p266
      %p268 = scmp.le.s32.totalorder 1, %s19
      %p269 = scmp.lt.s32.totalorder %s19, 3
      %p270 = pnand %p268, %p269
      %p271 = pneg %p270
      // Predicated region
      $region9: #{tpu_custom_call.1} parent=5 // pred_check
        _
      $region10: #{tpu_custom_call.1} parent=5 // pred_check_branch
        %273 = sbr.rel (%p270) target = $region12
      $region11: #{tpu_custom_call.1} parent=5 // pred_region
        %s274 = ssub.s32 %s19, 1
        // Predicated region
        $region13: #{tpu_custom_call.1} parent=11 // pred_check
          %p275 = pneg %p66
        $region14: #{tpu_custom_call.1} parent=11 // pred_check_branch
          %277 = sbr.rel (%p275) target = $region16
        $region15: #{tpu_custom_call.1} parent=11 // pred_region
          _
        $region16: #{tpu_custom_call.1} parent=11 // pred_fallthru
          _
        // Predicated region
        $region17: #{tpu_custom_call.1} parent=11 // pred_check
          %p278 = pneg %p87
        $region18: #{tpu_custom_call.1} parent=11 // pred_check_branch
          %280 = sbr.rel (%p278) target = $region20
        $region19: #{tpu_custom_call.1} parent=11 // pred_region
          _
        $region20: #{tpu_custom_call.1} parent=11 // pred_fallthru
          _
        // Predicated region
        $region21: #{tpu_custom_call.1} parent=11 // pred_check
          %p281 = pneg %p108
        $region22: #{tpu_custom_call.1} parent=11 // pred_check_branch
          %283 = sbr.rel (%p281) target = $region24
        $region23: #{tpu_custom_call.1} parent=11 // pred_region
          _
        $region24: #{tpu_custom_call.1} parent=11 // pred_fallthru
          _
        // Predicated region
        $region25: #{tpu_custom_call.1} parent=11 // pred_check
          %p284 = pneg %p129
        $region26: #{tpu_custom_call.1} parent=11 // pred_check_branch
          %286 = sbr.rel (%p284) target = $region28
        $region27: #{tpu_custom_call.1} parent=11 // pred_region
          _
        $region28: #{tpu_custom_call.1} parent=11 // pred_fallthru
          _
        // Predicated region
        $region29: #{tpu_custom_call.1} parent=11 // pred_check
          %p287 = pneg %p150
        $region30: #{tpu_custom_call.1} parent=11 // pred_check_branch
          %289 = sbr.rel (%p287) target = $region32
        $region31: #{tpu_custom_call.1} parent=11 // pred_region
          _
        $region32: #{tpu_custom_call.1} parent=11 // pred_fallthru
          _
        // Predicated region
        $region33: #{tpu_custom_call.1} parent=11 // pred_check
          %p290 = pneg %p171
        $region34: #{tpu_custom_call.1} parent=11 // pred_check_branch
          %292 = sbr.rel (%p290) target = $region36
        $region35: #{tpu_custom_call.1} parent=11 // pred_region
          _
        $region36: #{tpu_custom_call.1} parent=11 // pred_fallthru
          _
        // Predicated region
        $region37: #{tpu_custom_call.1} parent=11 // pred_check
          %p293 = pneg %p192
        $region38: #{tpu_custom_call.1} parent=11 // pred_check_branch
          %295 = sbr.rel (%p293) target = $region40
        $region39: #{tpu_custom_call.1} parent=11 // pred_region
          _
        $region40: #{tpu_custom_call.1} parent=11 // pred_fallthru
          _
        // Predicated region
        $region41: #{tpu_custom_call.1} parent=11 // pred_check
          %p296 = pneg %p213
        $region42: #{tpu_custom_call.1} parent=11 // pred_check_branch
          %298 = sbr.rel (%p296) target = $region44
        $region43: #{tpu_custom_call.1} parent=11 // pred_region
          _
        $region44: #{tpu_custom_call.1} parent=11 // pred_fallthru
          _
        // Predicated region
        $region45: #{tpu_custom_call.1} parent=11 // pred_check
          %p299 = pneg %p234
        $region46: #{tpu_custom_call.1} parent=11 // pred_check_branch
          %301 = sbr.rel (%p299) target = $region48
        $region47: #{tpu_custom_call.1} parent=11 // pred_region
          _
        $region48: #{tpu_custom_call.1} parent=11 // pred_fallthru
          _
      $region12: #{tpu_custom_call.1} parent=5 // pred_fallthru
        _
      %p302 = scmp.lt.s32.totalorder %s19, 2
      // Predicated region
      $region49: #{tpu_custom_call.1} parent=5 // pred_check
        %p303 = pneg %p302
      $region50: #{tpu_custom_call.1} parent=5 // pred_check_branch
        %305 = sbr.rel (%p303) target = $region52
      $region51: #{tpu_custom_call.1} parent=5 // pred_region
        // Predicated region
        $region53: #{tpu_custom_call.1} parent=51 // pred_check
          %p306 = pneg %p39
        $region54: #{tpu_custom_call.1} parent=51 // pred_check_branch
          %308 = sbr.rel (%p306) target = $region56
        $region55: #{tpu_custom_call.1} parent=51 // pred_region
          %p309 = scmp.lt.s32.totalorder %s19, 1
          %s310 = scalar_select %p309, %s19, 1
          %s311 = smul.addr %s310, 8
          %s312 = scalar_lea.vmem %s0, %s311
        $region56: #{tpu_custom_call.1} parent=51 // pred_fallthru
          _
      $region52: #{tpu_custom_call.1} parent=5 // pred_fallthru
        _
      %p313 = scmp.le.s32.totalorder 1, %s19
      %p314 = scmp.lt.s32.totalorder %s19, 3
      %p315 = pnand %p313, %p314
      %p316 = pneg %p315
      // Predicated region
      $region57: #{tpu_custom_call.1} parent=5 // pred_check
        _
      $region58: #{tpu_custom_call.1} parent=5 // pred_check_branch
        %318 = sbr.rel (%p315) target = $region60
      $region59: #{tpu_custom_call.1} parent=5 // pred_region
        %s319 = ssub.s32 %s19, 1
        %p320 = scmp.lt.s32.totalorder %s24, 1
        %s321 = scalar_select %p320, %s24, 1
        %s322 = smul.addr %s321, 8
        %s323 = scalar_lea.vmem %s0, %s322
        %p324 = pneg %p45
        %p325 = pneg %p42
        %p326 = pneg %p66
        %p327 = pneg %p63
        %p328 = pneg %p87
        %p329 = pneg %p84
        %p330 = pneg %p108
        %p331 = pneg %p105
        %p332 = pneg %p129
        %p333 = pneg %p126
        %p334 = pneg %p150
        %p335 = pneg %p147
        %p336 = pneg %p171
        %p337 = pneg %p168
        %p338 = pneg %p192
        %p339 = pneg %p189
        %p340 = pneg %p213
        %p341 = pneg %p210
        %p342 = pneg %p234
        %p343 = pneg %p231
        %p344 = pneg %p260
        %p345 = pneg %p257
        %s346 = sand.u32 %s247, 1
        %s347 = scalar_lea.sflag [#allocation3], %s346
        %s348 = sand.u32 %s247, 1
        %s349 = smul.addr %s348, 8
        %s350 = scalar_lea.vmem [#allocation2], %s349
        %p351 = scmp.lt.s32.totalorder %s24, 1
        %s352 = scalar_select %p351, %s24, 1
        %s353 = smul.addr %s352, 8
        %s354 = scalar_lea.vmem %s0, %s353
        %v355 = vld [vmem:[%s354] sm:$0xff]
        %v356 = vld [vmem:[%s1] sm:$0x1]
        %v357 = vld [vmem:[%s2] sm:$0x1]
        %vm358 = vcmask 261120
        %v359 = vsel %vm358, %v355, 0.0
        %360 = vadd.xlane.f32.xlu0 %v359
        %v361 = vpop.xlane.xlu0 %360
        %v362 = vrcp.pop 32.0
        %v363 = vmul.f32 %v361, %v362
        %v364 = vsub.f32 %v355, %v363
        %v365 = vmul.f32 %v364, %v364
        %v366 = vsel %vm358, %v365, 0.0
        %367 = vadd.xlane.f32.xlu0 %v366
        %v368 = vpop.xlane.xlu0 %367
        %v369 = vmul.f32 %v368, %v362
        %v370 = vadd.f32 %v369, 1e-05
        %v371 = vrsqrt.pop %v370
        %v372 = vmul.f32 %v364, %v371
        %v374 = vlaneseq
        %v375 = vshrl.u32 %v374, 7
        %v376 = vsub.s32 0, %v375
        %v377 = vrot.slane %v356, %v376
        %v379 = vmul.f32 %v372, %v377
        %v381 = vlaneseq
        %v382 = vshrl.u32 %v381, 7
        %v383 = vsub.s32 0, %v382
        %v384 = vrot.slane %v357, %v383
        %v386 = vadd.f32 %v379, %v384
        %v387 = vld [vmem:[%s3] sm:$0xff]
        %v388 = vld [vmem:[%s3 + $0x8] sm:$0xff]
        %v389 = vld [vmem:[%s3 + $0x10] sm:$0xff]
        %v390 = vld [vmem:[%s3 + $0x18] sm:$0xff]
        %v392 = vsel %vm358, %v386, 0
        %394 = vmatprep.subr.mxu0 0.0
        %395 = vmatpush1.msra.mxu0 %v387
        %396 = vmatprep.subr.mxu0 0.0
        %397 = vmatpush1.msra.mxu0 %v388
        %398 = vmatprep.subr.mxu0 0.0
        %399 = vmatpush1.msra.mxu0 %v389
        %400 = vmatprep.subr.mxu0 0.0
        %401 = vmatpush1.msra.mxu0 %v390
        %402 = vmatprep.subr.mxu0 0.0
        %403 = vmatpush1.msra.mxu0 0.0
        %404 = vmatprep.subr.mxu0 0.0
        %405 = vmatpush1.msra.mxu0 0.0
        %406 = vmatprep.subr.mxu0 0.0
        %407 = vmatpush1.msra.mxu0 0.0
        %408 = vmatprep.subr.mxu0 0.0
        %409 = vmatpush1.msra.mxu0 0.0
        %410 = vmatprep.subr.mxu0 0.0
        %411 = vmatpush1.msra.mxu0 0.0
        %412 = vmatprep.subr.mxu0 0.0
        %413 = vmatpush1.msra.mxu0 0.0
        %414 = vmatprep.subr.mxu0 0.0
        %415 = vmatpush1.msra.mxu0 0.0
        %416 = vmatprep.subr.mxu0 0.0
        %417 = vmatpush1.msra.mxu0 0.0
        %418 = vmatprep.subr.mxu0 0.0
        %419 = vmatpush1.msra.mxu0 0.0
        %420 = vmatprep.subr.mxu0 0.0
        %421 = vmatpush1.msra.mxu0 0.0
        %422 = vmatprep.subr.mxu0 0.0
        %423 = vmatpush1.msra.mxu0 0.0
        %424 = vmatprep.subr.mxu0 0.0
        %425 = vmatpush1.msra.mxu0 0.0
        %426 = vmatprep.subr.mxu0 0.0
        %427 = vmatpush1.msra.mxu0 0.0
        %428 = vmatprep.subr.mxu0 0.0
        %429 = vmatpush1.msra.mxu0 0.0
        %430 = vmatprep.subr.mxu0 0.0
        %431 = vmatpush1.msra.mxu0 0.0
        %432 = vmatprep.subr.mxu0 0.0
        %433 = vmatpush1.msra.mxu0 0.0
        %434 = vmatprep.subr.mxu0 0.0
        %435 = vmatpush1.msra.mxu0 0.0
        %436 = vmatprep.subr.mxu0 0.0
        %437 = vmatpush1.msra.mxu0 0.0
        %438 = vmatprep.subr.mxu0 0.0
        %439 = vmatpush1.msra.mxu0 0.0
        %440 = vmatprep.subr.mxu0 0.0
        %441 = vmatpush1.msra.mxu0 0.0
        %442 = vmatprep.subr.mxu0 0.0
        %443 = vmatpush1.msra.mxu0 0.0
        %444 = vmatprep.subr.mxu0 0.0
        %445 = vmatpush1.msra.mxu0 0.0
        %446 = vmatprep.subr.mxu0 0.0
        %447 = vmatpush1.msra.mxu0 0.0
        %448 = vmatprep.subr.mxu0 0.0
        %449 = vmatpush1.msra.mxu0 0.0
        %450 = vmatprep.subr.mxu0 0.0
        %451 = vmatpush1.msra.mxu0 0.0
        %452 = vmatprep.subr.mxu0 0.0
        %453 = vmatpush1.msra.mxu0 0.0
        %454 = vmatprep.subr.mxu0 0.0
        %455 = vmatpush1.msra.mxu0 0.0
        %456 = vmatprep.subr.mxu0 0.0
        %457 = vmatpush1.msra.mxu0 0.0
        %458 = vmatprep.mubr.f32.mxu0 0.0
        %459 = vmatmul.mubr.f32.gmra.mrb[0].mxu0 %v392
        %v460 = vpop.f32.mrb[0].mxu0
        %v461 = vadd.f32 0.0, %v460
        %v462 = vpop.f32.mrb[0].mxu0
        %463 = vdwg.mxu0
        %v464 = vlaneseq
        %v465 = vshrl.u32 %v464, 7
        %v466 = vlaneseq
        %v467 = vand.u32 %v466, 127
        %vm468 = vcmp.le.s32.totalorder %v467, %v465
        %v469 = vsel %vm468, 0.0, -1e+30
        %471 = vrot.lane.b32.xlu0 %v461, 120
        %v472 = vpop.permute.xlu0 %471
        %473 = vrot.lane.b32.xlu0 %v461, 112
        %v474 = vpop.permute.xlu0 %473
        %475 = vrot.lane.b32.xlu0 %v461, 104
        %v476 = vpop.permute.xlu0 %475
        %477 = vrot.lane.b32.xlu0 %v461, 96
        %v478 = vpop.permute.xlu0 %477
        %vm479 = vcmask 64512
        %v480 = vsel %vm479, %v461, 0
        %v482 = vsel %vm479, %v478, 0
        %484 = vmatprep.subr.mxu0 0.0
        %485 = vmatpush1.xpose.msra.mxu0 %v482
        %486 = vmatprep.subr.mxu0 0.0
        %487 = vmatpush1.xpose.msra.mxu0 0.0
        %488 = vmatprep.subr.mxu0 0.0
        %489 = vmatpush1.xpose.msra.mxu0 0.0
        %490 = vmatprep.subr.mxu0 0.0
        %491 = vmatpush1.xpose.msra.mxu0 0.0
        %492 = vmatprep.subr.mxu0 0.0
        %493 = vmatpush1.xpose.msra.mxu0 0.0
        %494 = vmatprep.subr.mxu0 0.0
        %495 = vmatpush1.xpose.msra.mxu0 0.0
        %496 = vmatprep.subr.mxu0 0.0
        %497 = vmatpush1.xpose.msra.mxu0 0.0
        %498 = vmatprep.subr.mxu0 0.0
        %499 = vmatpush1.xpose.msra.mxu0 0.0
        %500 = vmatprep.subr.mxu0 0.0
        %501 = vmatpush1.xpose.msra.mxu0 0.0
        %502 = vmatprep.subr.mxu0 0.0
        %503 = vmatpush1.xpose.msra.mxu0 0.0
        %504 = vmatprep.subr.mxu0 0.0
        %505 = vmatpush1.xpose.msra.mxu0 0.0
        %506 = vmatprep.subr.mxu0 0.0
        %507 = vmatpush1.xpose.msra.mxu0 0.0
        %508 = vmatprep.subr.mxu0 0.0
        %509 = vmatpush1.xpose.msra.mxu0 0.0
        %510 = vmatprep.subr.mxu0 0.0
        %511 = vmatpush1.xpose.msra.mxu0 0.0
        %512 = vmatprep.subr.mxu0 0.0
        %513 = vmatpush1.xpose.msra.mxu0 0.0
        %514 = vmatprep.subr.mxu0 0.0
        %515 = vmatpush1.xpose.msra.mxu0 0.0
        %516 = vmatprep.subr.mxu0 0.0
        %517 = vmatpush1.xpose.msra.mxu0 0.0
        %518 = vmatprep.subr.mxu0 0.0
        %519 = vmatpush1.xpose.msra.mxu0 0.0
        %520 = vmatprep.subr.mxu0 0.0
        %521 = vmatpush1.xpose.msra.mxu0 0.0
        %522 = vmatprep.subr.mxu0 0.0
        %523 = vmatpush1.xpose.msra.mxu0 0.0
        %524 = vmatprep.subr.mxu0 0.0
        %525 = vmatpush1.xpose.msra.mxu0 0.0
        %526 = vmatprep.subr.mxu0 0.0
        %527 = vmatpush1.xpose.msra.mxu0 0.0
        %528 = vmatprep.subr.mxu0 0.0
        %529 = vmatpush1.xpose.msra.mxu0 0.0
        %530 = vmatprep.subr.mxu0 0.0
        %531 = vmatpush1.xpose.msra.mxu0 0.0
        %532 = vmatprep.subr.mxu0 0.0
        %533 = vmatpush1.xpose.msra.mxu0 0.0
        %534 = vmatprep.subr.mxu0 0.0
        %535 = vmatpush1.xpose.msra.mxu0 0.0
        %536 = vmatprep.subr.mxu0 0.0
        %537 = vmatpush1.xpose.msra.mxu0 0.0
        %538 = vmatprep.subr.mxu0 0.0
        %539 = vmatpush1.xpose.msra.mxu0 0.0
        %540 = vmatprep.subr.mxu0 0.0
        %541 = vmatpush1.xpose.msra.mxu0 0.0
        %542 = vmatprep.subr.mxu0 0.0
        %543 = vmatpush1.xpose.msra.mxu0 0.0
        %544 = vmatprep.subr.mxu0 0.0
        %545 = vmatpush1.xpose.msra.mxu0 0.0
        %546 = vmatprep.subr.mxu0 0.0
        %547 = vmatpush1.xpose.msra.mxu0 0.0
        %548 = vmatprep.mubr.f32.mxu0 0.0
        %549 = vmatmul.mubr.f32.gmra.mrb[0].mxu0 %v480
        %v550 = vpop.f32.mrb[0].mxu0
        %v551 = vadd.f32 %v469, %v550
        %v552 = vpop.f32.mrb[0].mxu0
        %553 = vdwg.mxu0
        %554 = vrot.lane.b32.xlu0 %v472, 96
        %v555 = vpop.permute.xlu0 %554
        %v556 = vsel %vm479, %v472, 0
        %v558 = vsel %vm479, %v555, 0
        %560 = vmatprep.subr.mxu0 0.0
        %561 = vmatpush1.xpose.msra.mxu0 %v558
        %562 = vmatprep.subr.mxu0 0.0
        %563 = vmatpush1.xpose.msra.mxu0 0.0
        %564 = vmatprep.subr.mxu0 0.0
        %565 = vmatpush1.xpose.msra.mxu0 0.0
        %566 = vmatprep.subr.mxu0 0.0
        %567 = vmatpush1.xpose.msra.mxu0 0.0
        %568 = vmatprep.subr.mxu0 0.0
        %569 = vmatpush1.xpose.msra.mxu0 0.0
        %570 = vmatprep.subr.mxu0 0.0
        %571 = vmatpush1.xpose.msra.mxu0 0.0
        %572 = vmatprep.subr.mxu0 0.0
        %573 = vmatpush1.xpose.msra.mxu0 0.0
        %574 = vmatprep.subr.mxu0 0.0
        %575 = vmatpush1.xpose.msra.mxu0 0.0
        %576 = vmatprep.subr.mxu0 0.0
        %577 = vmatpush1.xpose.msra.mxu0 0.0
        %578 = vmatprep.subr.mxu0 0.0
        %579 = vmatpush1.xpose.msra.mxu0 0.0
        %580 = vmatprep.subr.mxu0 0.0
        %581 = vmatpush1.xpose.msra.mxu0 0.0
        %582 = vmatprep.subr.mxu0 0.0
        %583 = vmatpush1.xpose.msra.mxu0 0.0
        %584 = vmatprep.subr.mxu0 0.0
        %585 = vmatpush1.xpose.msra.mxu0 0.0
        %586 = vmatprep.subr.mxu0 0.0
        %587 = vmatpush1.xpose.msra.mxu0 0.0
        %588 = vmatprep.subr.mxu0 0.0
        %589 = vmatpush1.xpose.msra.mxu0 0.0
        %590 = vmatprep.subr.mxu0 0.0
        %591 = vmatpush1.xpose.msra.mxu0 0.0
        %592 = vmatprep.subr.mxu0 0.0
        %593 = vmatpush1.xpose.msra.mxu0 0.0
        %594 = vmatprep.subr.mxu0 0.0
        %595 = vmatpush1.xpose.msra.mxu0 0.0
        %596 = vmatprep.subr.mxu0 0.0
        %597 = vmatpush1.xpose.msra.mxu0 0.0
        %598 = vmatprep.subr.mxu0 0.0
        %599 = vmatpush1.xpose.msra.mxu0 0.0
        %600 = vmatprep.subr.mxu0 0.0
        %601 = vmatpush1.xpose.msra.mxu0 0.0
        %602 = vmatprep.subr.mxu0 0.0
        %603 = vmatpush1.xpose.msra.mxu0 0.0
        %604 = vmatprep.subr.mxu0 0.0
        %605 = vmatpush1.xpose.msra.mxu0 0.0
        %606 = vmatprep.subr.mxu0 0.0
        %607 = vmatpush1.xpose.msra.mxu0 0.0
        %608 = vmatprep.subr.mxu0 0.0
        %609 = vmatpush1.xpose.msra.mxu0 0.0
        %610 = vmatprep.subr.mxu0 0.0
        %611 = vmatpush1.xpose.msra.mxu0 0.0
        %612 = vmatprep.subr.mxu0 0.0
        %613 = vmatpush1.xpose.msra.mxu0 0.0
        %614 = vmatprep.subr.mxu0 0.0
        %615 = vmatpush1.xpose.msra.mxu0 0.0
        %616 = vmatprep.subr.mxu0 0.0
        %617 = vmatpush1.xpose.msra.mxu0 0.0
        %618 = vmatprep.subr.mxu0 0.0
        %619 = vmatpush1.xpose.msra.mxu0 0.0
        %620 = vmatprep.subr.mxu0 0.0
        %621 = vmatpush1.xpose.msra.mxu0 0.0
        %622 = vmatprep.subr.mxu0 0.0
        %623 = vmatpush1.xpose.msra.mxu0 0.0
        %624 = vmatprep.mubr.f32.mxu0 0.0
        %625 = vmatmul.mubr.f32.gmra.mrb[0].mxu0 %v556
        %v626 = vpop.f32.mrb[0].mxu0
        %v627 = vadd.f32 %v469, %v626
        %v628 = vpop.f32.mrb[0].mxu0
        %629 = vdwg.mxu0
        %630 = vrot.lane.b32.xlu0 %v474, 96
        %v631 = vpop.permute.xlu0 %630
        %v632 = vsel %vm479, %v474, 0
        %v634 = vsel %vm479, %v631, 0
        %636 = vmatprep.subr.mxu0 0.0
        %637 = vmatpush1.xpose.msra.mxu0 %v634
        %638 = vmatprep.subr.mxu0 0.0
        %639 = vmatpush1.xpose.msra.mxu0 0.0
        %640 = vmatprep.subr.mxu0 0.0
        %641 = vmatpush1.xpose.msra.mxu0 0.0
        %642 = vmatprep.subr.mxu0 0.0
        %643 = vmatpush1.xpose.msra.mxu0 0.0
        %644 = vmatprep.subr.mxu0 0.0
        %645 = vmatpush1.xpose.msra.mxu0 0.0
        %646 = vmatprep.subr.mxu0 0.0
        %647 = vmatpush1.xpose.msra.mxu0 0.0
        %648 = vmatprep.subr.mxu0 0.0
        %649 = vmatpush1.xpose.msra.mxu0 0.0
        %650 = vmatprep.subr.mxu0 0.0
        %651 = vmatpush1.xpose.msra.mxu0 0.0
        %652 = vmatprep.subr.mxu0 0.0
        %653 = vmatpush1.xpose.msra.mxu0 0.0
        %654 = vmatprep.subr.mxu0 0.0
        %655 = vmatpush1.xpose.msra.mxu0 0.0
        %656 = vmatprep.subr.mxu0 0.0
        %657 = vmatpush1.xpose.msra.mxu0 0.0
        %658 = vmatprep.subr.mxu0 0.0
        %659 = vmatpush1.xpose.msra.mxu0 0.0
        %660 = vmatprep.subr.mxu0 0.0
        %661 = vmatpush1.xpose.msra.mxu0 0.0
        %662 = vmatprep.subr.mxu0 0.0
        %663 = vmatpush1.xpose.msra.mxu0 0.0
        %664 = vmatprep.subr.mxu0 0.0
        %665 = vmatpush1.xpose.msra.mxu0 0.0
        %666 = vmatprep.subr.mxu0 0.0
        %667 = vmatpush1.xpose.msra.mxu0 0.0
        %668 = vmatprep.subr.mxu0 0.0
        %669 = vmatpush1.xpose.msra.mxu0 0.0
        %670 = vmatprep.subr.mxu0 0.0
        %671 = vmatpush1.xpose.msra.mxu0 0.0
        %672 = vmatprep.subr.mxu0 0.0
        %673 = vmatpush1.xpose.msra.mxu0 0.0
        %674 = vmatprep.subr.mxu0 0.0
        %675 = vmatpush1.xpose.msra.mxu0 0.0
        %676 = vmatprep.subr.mxu0 0.0
        %677 = vmatpush1.xpose.msra.mxu0 0.0
        %678 = vmatprep.subr.mxu0 0.0
        %679 = vmatpush1.xpose.msra.mxu0 0.0
        %680 = vmatprep.subr.mxu0 0.0
        %681 = vmatpush1.xpose.msra.mxu0 0.0
        %682 = vmatprep.subr.mxu0 0.0
        %683 = vmatpush1.xpose.msra.mxu0 0.0
        %684 = vmatprep.subr.mxu0 0.0
        %685 = vmatpush1.xpose.msra.mxu0 0.0
        %686 = vmatprep.subr.mxu0 0.0
        %687 = vmatpush1.xpose.msra.mxu0 0.0
        %688 = vmatprep.subr.mxu0 0.0
        %689 = vmatpush1.xpose.msra.mxu0 0.0
        %690 = vmatprep.subr.mxu0 0.0
        %691 = vmatpush1.xpose.msra.mxu0 0.0
        %692 = vmatprep.subr.mxu0 0.0
        %693 = vmatpush1.xpose.msra.mxu0 0.0
        %694 = vmatprep.subr.mxu0 0.0
        %695 = vmatpush1.xpose.msra.mxu0 0.0
        %696 = vmatprep.subr.mxu0 0.0
        %697 = vmatpush1.xpose.msra.mxu0 0.0
        %698 = vmatprep.subr.mxu0 0.0
        %699 = vmatpush1.xpose.msra.mxu0 0.0
        %700 = vmatprep.mubr.f32.mxu0 0.0
        %701 = vmatmul.mubr.f32.gmra.mrb[0].mxu0 %v632
        %v702 = vpop.f32.mrb[0].mxu0
        %v703 = vadd.f32 %v469, %v702
        %v704 = vpop.f32.mrb[0].mxu0
        %705 = vdwg.mxu0
        %706 = vrot.lane.b32.xlu0 %v476, 96
        %v707 = vpop.permute.xlu0 %706
        %v708 = vsel %vm479, %v476, 0
        %v710 = vsel %vm479, %v707, 0
        %712 = vmatprep.subr.mxu0 0.0
        %713 = vmatpush1.xpose.msra.mxu0 %v710
        %714 = vmatprep.subr.mxu0 0.0
        %715 = vmatpush1.xpose.msra.mxu0 0.0
        %716 = vmatprep.subr.mxu0 0.0
        %717 = vmatpush1.xpose.msra.mxu0 0.0
        %718 = vmatprep.subr.mxu0 0.0
        %719 = vmatpush1.xpose.msra.mxu0 0.0
        %720 = vmatprep.subr.mxu0 0.0
        %721 = vmatpush1.xpose.msra.mxu0 0.0
        %722 = vmatprep.subr.mxu0 0.0
        %723 = vmatpush1.xpose.msra.mxu0 0.0
        %724 = vmatprep.subr.mxu0 0.0
        %725 = vmatpush1.xpose.msra.mxu0 0.0
        %726 = vmatprep.subr.mxu0 0.0
        %727 = vmatpush1.xpose.msra.mxu0 0.0
        %728 = vmatprep.subr.mxu0 0.0
        %729 = vmatpush1.xpose.msra.mxu0 0.0
        %730 = vmatprep.subr.mxu0 0.0
        %731 = vmatpush1.xpose.msra.mxu0 0.0
        %732 = vmatprep.subr.mxu0 0.0
        %733 = vmatpush1.xpose.msra.mxu0 0.0
        %734 = vmatprep.subr.mxu0 0.0
        %735 = vmatpush1.xpose.msra.mxu0 0.0
        %736 = vmatprep.subr.mxu0 0.0
        %737 = vmatpush1.xpose.msra.mxu0 0.0
        %738 = vmatprep.subr.mxu0 0.0
        %739 = vmatpush1.xpose.msra.mxu0 0.0
        %740 = vmatprep.subr.mxu0 0.0
        %741 = vmatpush1.xpose.msra.mxu0 0.0
        %742 = vmatprep.subr.mxu0 0.0
        %743 = vmatpush1.xpose.msra.mxu0 0.0
        %744 = vmatprep.subr.mxu0 0.0
        %745 = vmatpush1.xpose.msra.mxu0 0.0
        %746 = vmatprep.subr.mxu0 0.0
        %747 = vmatpush1.xpose.msra.mxu0 0.0
        %748 = vmatprep.subr.mxu0 0.0
        %749 = vmatpush1.xpose.msra.mxu0 0.0
        %750 = vmatprep.subr.mxu0 0.0
        %751 = vmatpush1.xpose.msra.mxu0 0.0
        %752 = vmatprep.subr.mxu0 0.0
        %753 = vmatpush1.xpose.msra.mxu0 0.0
        %754 = vmatprep.subr.mxu0 0.0
        %755 = vmatpush1.xpose.msra.mxu0 0.0
        %756 = vmatprep.subr.mxu0 0.0
        %757 = vmatpush1.xpose.msra.mxu0 0.0
        %758 = vmatprep.subr.mxu0 0.0
        %759 = vmatpush1.xpose.msra.mxu0 0.0
        %760 = vmatprep.subr.mxu0 0.0
        %761 = vmatpush1.xpose.msra.mxu0 0.0
        %762 = vmatprep.subr.mxu0 0.0
        %763 = vmatpush1.xpose.msra.mxu0 0.0
        %764 = vmatprep.subr.mxu0 0.0
        %765 = vmatpush1.xpose.msra.mxu0 0.0
        %766 = vmatprep.subr.mxu0 0.0
        %767 = vmatpush1.xpose.msra.mxu0 0.0
        %768 = vmatprep.subr.mxu0 0.0
        %769 = vmatpush1.xpose.msra.mxu0 0.0
        %770 = vmatprep.subr.mxu0 0.0
        %771 = vmatpush1.xpose.msra.mxu0 0.0
        %772 = vmatprep.subr.mxu0 0.0
        %773 = vmatpush1.xpose.msra.mxu0 0.0
        %774 = vmatprep.subr.mxu0 0.0
        %775 = vmatpush1.xpose.msra.mxu0 0.0
        %776 = vmatprep.mubr.f32.mxu0 0.0
        %777 = vmatmul.mubr.f32.gmra.mrb[0].mxu0 %v708
        %v778 = vpop.f32.mrb[0].mxu0
        %v779 = vadd.f32 %v469, %v778
        %v780 = vpop.f32.mrb[0].mxu0
        %781 = vdwg.mxu0
        %v782 = vsel %vm479, %v551, -inf
        %783 = vmax.xlane.f32.xlu0 %v782
        %v784 = vpop.xlane.xlu0 %783
        %v785 = vsel %vm479, %v627, -inf
        %786 = vmax.xlane.f32.xlu0 %v785
        %v787 = vpop.xlane.xlu0 %786
        %v788 = vsel %vm479, %v703, -inf
        %789 = vmax.xlane.f32.xlu0 %v788
        %v790 = vpop.xlane.xlu0 %789
        %v791 = vsel %vm479, %v779, -inf
        %792 = vmax.xlane.f32.xlu0 %v791
        %v793 = vpop.xlane.xlu0 %792
        %v794 = vsub.f32 %v551, %v784
        %v795 = vsub.f32 %v627, %v787
        %v796 = vsub.f32 %v703, %v790
        %v797 = vsub.f32 %v779, %v793
        %v798 = vmul.f32 %v794, 1.442695
        %v799 = vpow.pop %v798
        %v800 = vmul.f32 %v795, 1.442695
        %v801 = vpow.pop %v800
        %v802 = vmul.f32 %v796, 1.442695
        %v803 = vpow.pop %v802
        %v804 = vmul.f32 %v797, 1.442695
        %v805 = vpow.pop %v804
        %v806 = vsel %vm479, %v799, 0.0
        %807 = vadd.xlane.f32.xlu0 %v806
        %v808 = vpop.xlane.xlu0 %807
        %v809 = vsel %vm479, %v801, 0.0
        %810 = vadd.xlane.f32.xlu0 %v809
        %v811 = vpop.xlane.xlu0 %810
        %v812 = vsel %vm479, %v803, 0.0
        %813 = vadd.xlane.f32.xlu0 %v812
        %v814 = vpop.xlane.xlu0 %813
        %v815 = vsel %vm479, %v805, 0.0
        %816 = vadd.xlane.f32.xlu0 %v815
        %v817 = vpop.xlane.xlu0 %816
        %v818 = vrcp.pop %v808
        %v819 = vrcp.pop %v811
        %v820 = vrcp.pop %v814
        %v821 = vrcp.pop %v817
        %v822 = vmul.f32 %v799, %v818
        %v823 = vmul.f32 %v801, %v819
        %v824 = vmul.f32 %v803, %v820
        %v825 = vmul.f32 %v805, %v821
        %826 = vrot.lane.b32.xlu0 %v461, 64
        %v827 = vpop.permute.xlu0 %826
        %v830 = vsel %vm479, %v822, 0
        %832 = vmatprep.subr.mxu0 0.0
        %833 = vmatpush1.msra.mxu0 %v827
        %834 = vmatprep.subr.mxu0 0.0
        %835 = vmatpush1.msra.mxu0 0.0
        %836 = vmatprep.subr.mxu0 0.0
        %837 = vmatpush1.msra.mxu0 0.0
        %838 = vmatprep.subr.mxu0 0.0
        %839 = vmatpush1.msra.mxu0 0.0
        %840 = vmatprep.subr.mxu0 0.0
        %841 = vmatpush1.msra.mxu0 0.0
        %842 = vmatprep.subr.mxu0 0.0
        %843 = vmatpush1.msra.mxu0 0.0
        %844 = vmatprep.subr.mxu0 0.0
        %845 = vmatpush1.msra.mxu0 0.0
        %846 = vmatprep.subr.mxu0 0.0
        %847 = vmatpush1.msra.mxu0 0.0
        %848 = vmatprep.subr.mxu0 0.0
        %849 = vmatpush1.msra.mxu0 0.0
        %850 = vmatprep.subr.mxu0 0.0
        %851 = vmatpush1.msra.mxu0 0.0
        %852 = vmatprep.subr.mxu0 0.0
        %853 = vmatpush1.msra.mxu0 0.0
        %854 = vmatprep.subr.mxu0 0.0
        %855 = vmatpush1.msra.mxu0 0.0
        %856 = vmatprep.subr.mxu0 0.0
        %857 = vmatpush1.msra.mxu0 0.0
        %858 = vmatprep.subr.mxu0 0.0
        %859 = vmatpush1.msra.mxu0 0.0
        %860 = vmatprep.subr.mxu0 0.0
        %861 = vmatpush1.msra.mxu0 0.0
        %862 = vmatprep.subr.mxu0 0.0
        %863 = vmatpush1.msra.mxu0 0.0
        %864 = vmatprep.subr.mxu0 0.0
        %865 = vmatpush1.msra.mxu0 0.0
        %866 = vmatprep.subr.mxu0 0.0
        %867 = vmatpush1.msra.mxu0 0.0
        %868 = vmatprep.subr.mxu0 0.0
        %869 = vmatpush1.msra.mxu0 0.0
        %870 = vmatprep.subr.mxu0 0.0
        %871 = vmatpush1.msra.mxu0 0.0
        %872 = vmatprep.subr.mxu0 0.0
        %873 = vmatpush1.msra.mxu0 0.0
        %874 = vmatprep.subr.mxu0 0.0
        %875 = vmatpush1.msra.mxu0 0.0
        %876 = vmatprep.subr.mxu0 0.0
        %877 = vmatpush1.msra.mxu0 0.0
        %878 = vmatprep.subr.mxu0 0.0
        %879 = vmatpush1.msra.mxu0 0.0
        %880 = vmatprep.subr.mxu0 0.0
        %881 = vmatpush1.msra.mxu0 0.0
        %882 = vmatprep.subr.mxu0 0.0
        %883 = vmatpush1.msra.mxu0 0.0
        %884 = vmatprep.subr.mxu0 0.0
        %885 = vmatpush1.msra.mxu0 0.0
        %886 = vmatprep.subr.mxu0 0.0
        %887 = vmatpush1.msra.mxu0 0.0
        %888 = vmatprep.subr.mxu0 0.0
        %889 = vmatpush1.msra.mxu0 0.0
        %890 = vmatprep.subr.mxu0 0.0
        %891 = vmatpush1.msra.mxu0 0.0
        %892 = vmatprep.subr.mxu0 0.0
        %893 = vmatpush1.msra.mxu0 0.0
        %894 = vmatprep.subr.mxu0 0.0
        %895 = vmatpush1.msra.mxu0 0.0
        %896 = vmatprep.mubr.f32.mxu0 0.0
        %897 = vmatmul.mubr.f32.gmra.mrb[0].mxu0 %v830
        %v898 = vpop.f32.mrb[0].mxu0
        %v899 = vadd.f32 0.0, %v898
        %v900 = vpop.f32.mrb[0].mxu0
        %901 = vdwg.mxu0
        %902 = vrot.lane.b32.xlu0 %v472, 64
        %v903 = vpop.permute.xlu0 %902
        %v906 = vsel %vm479, %v823, 0
        %908 = vmatprep.subr.mxu0 0.0
        %909 = vmatpush1.msra.mxu0 %v903
        %910 = vmatprep.subr.mxu0 0.0
        %911 = vmatpush1.msra.mxu0 0.0
        %912 = vmatprep.subr.mxu0 0.0
        %913 = vmatpush1.msra.mxu0 0.0
        %914 = vmatprep.subr.mxu0 0.0
        %915 = vmatpush1.msra.mxu0 0.0
        %916 = vmatprep.subr.mxu0 0.0
        %917 = vmatpush1.msra.mxu0 0.0
        %918 = vmatprep.subr.mxu0 0.0
        %919 = vmatpush1.msra.mxu0 0.0
        %920 = vmatprep.subr.mxu0 0.0
        %921 = vmatpush1.msra.mxu0 0.0
        %922 = vmatprep.subr.mxu0 0.0
        %923 = vmatpush1.msra.mxu0 0.0
        %924 = vmatprep.subr.mxu0 0.0
        %925 = vmatpush1.msra.mxu0 0.0
        %926 = vmatprep.subr.mxu0 0.0
        %927 = vmatpush1.msra.mxu0 0.0
        %928 = vmatprep.subr.mxu0 0.0
        %929 = vmatpush1.msra.mxu0 0.0
        %930 = vmatprep.subr.mxu0 0.0
        %931 = vmatpush1.msra.mxu0 0.0
        %932 = vmatprep.subr.mxu0 0.0
        %933 = vmatpush1.msra.mxu0 0.0
        %934 = vmatprep.subr.mxu0 0.0
        %935 = vmatpush1.msra.mxu0 0.0
        %936 = vmatprep.subr.mxu0 0.0
        %937 = vmatpush1.msra.mxu0 0.0
        %938 = vmatprep.subr.mxu0 0.0
        %939 = vmatpush1.msra.mxu0 0.0
        %940 = vmatprep.subr.mxu0 0.0
        %941 = vmatpush1.msra.mxu0 0.0
        %942 = vmatprep.subr.mxu0 0.0
        %943 = vmatpush1.msra.mxu0 0.0
        %944 = vmatprep.subr.mxu0 0.0
        %945 = vmatpush1.msra.mxu0 0.0
        %946 = vmatprep.subr.mxu0 0.0
        %947 = vmatpush1.msra.mxu0 0.0
        %948 = vmatprep.subr.mxu0 0.0
        %949 = vmatpush1.msra.mxu0 0.0
        %950 = vmatprep.subr.mxu0 0.0
        %951 = vmatpush1.msra.mxu0 0.0
        %952 = vmatprep.subr.mxu0 0.0
        %953 = vmatpush1.msra.mxu0 0.0
        %954 = vmatprep.subr.mxu0 0.0
        %955 = vmatpush1.msra.mxu0 0.0
        %956 = vmatprep.subr.mxu0 0.0
        %957 = vmatpush1.msra.mxu0 0.0
        %958 = vmatprep.subr.mxu0 0.0
        %959 = vmatpush1.msra.mxu0 0.0
        %960 = vmatprep.subr.mxu0 0.0
        %961 = vmatpush1.msra.mxu0 0.0
        %962 = vmatprep.subr.mxu0 0.0
        %963 = vmatpush1.msra.mxu0 0.0
        %964 = vmatprep.subr.mxu0 0.0
        %965 = vmatpush1.msra.mxu0 0.0
        %966 = vmatprep.subr.mxu0 0.0
        %967 = vmatpush1.msra.mxu0 0.0
        %968 = vmatprep.subr.mxu0 0.0
        %969 = vmatpush1.msra.mxu0 0.0
        %970 = vmatprep.subr.mxu0 0.0
        %971 = vmatpush1.msra.mxu0 0.0
        %972 = vmatprep.mubr.f32.mxu0 0.0
        %973 = vmatmul.mubr.f32.gmra.mrb[0].mxu0 %v906
        %v974 = vpop.f32.mrb[0].mxu0
        %v975 = vadd.f32 0.0, %v974
        %v976 = vpop.f32.mrb[0].mxu0
        %977 = vdwg.mxu0
        %978 = vrot.lane.b32.xlu0 %v474, 64
        %v979 = vpop.permute.xlu0 %978
        %v982 = vsel %vm479, %v824, 0
        %984 = vmatprep.subr.mxu0 0.0
        %985 = vmatpush1.msra.mxu0 %v979
        %986 = vmatprep.subr.mxu0 0.0
        %987 = vmatpush1.msra.mxu0 0.0
        %988 = vmatprep.subr.mxu0 0.0
        %989 = vmatpush1.msra.mxu0 0.0
        %990 = vmatprep.subr.mxu0 0.0
        %991 = vmatpush1.msra.mxu0 0.0
        %992 = vmatprep.subr.mxu0 0.0
        %993 = vmatpush1.msra.mxu0 0.0
        %994 = vmatprep.subr.mxu0 0.0
        %995 = vmatpush1.msra.mxu0 0.0
        %996 = vmatprep.subr.mxu0 0.0
        %997 = vmatpush1.msra.mxu0 0.0
        %998 = vmatprep.subr.mxu0 0.0
        %999 = vmatpush1.msra.mxu0 0.0
        %1000 = vmatprep.subr.mxu0 0.0
        %1001 = vmatpush1.msra.mxu0 0.0
        %1002 = vmatprep.subr.mxu0 0.0
        %1003 = vmatpush1.msra.mxu0 0.0
        %1004 = vmatprep.subr.mxu0 0.0
        %1005 = vmatpush1.msra.mxu0 0.0
        %1006 = vmatprep.subr.mxu0 0.0
        %1007 = vmatpush1.msra.mxu0 0.0
        %1008 = vmatprep.subr.mxu0 0.0
        %1009 = vmatpush1.msra.mxu0 0.0
        %1010 = vmatprep.subr.mxu0 0.0
        %1011 = vmatpush1.msra.mxu0 0.0
        %1012 = vmatprep.subr.mxu0 0.0
        %1013 = vmatpush1.msra.mxu0 0.0
        %1014 = vmatprep.subr.mxu0 0.0
        %1015 = vmatpush1.msra.mxu0 0.0
        %1016 = vmatprep.subr.mxu0 0.0
        %1017 = vmatpush1.msra.mxu0 0.0
        %1018 = vmatprep.subr.mxu0 0.0
        %1019 = vmatpush1.msra.mxu0 0.0
        %1020 = vmatprep.subr.mxu0 0.0
        %1021 = vmatpush1.msra.mxu0 0.0
        %1022 = vmatprep.subr.mxu0 0.0
        %1023 = vmatpush1.msra.mxu0 0.0
        %1024 = vmatprep.subr.mxu0 0.0
        %1025 = vmatpush1.msra.mxu0 0.0
        %1026 = vmatprep.subr.mxu0 0.0
        %1027 = vmatpush1.msra.mxu0 0.0
        %1028 = vmatprep.subr.mxu0 0.0
        %1029 = vmatpush1.msra.mxu0 0.0
        %1030 = vmatprep.subr.mxu0 0.0
        %1031 = vmatpush1.msra.mxu0 0.0
        %1032 = vmatprep.subr.mxu0 0.0
        %1033 = vmatpush1.msra.mxu0 0.0
        %1034 = vmatprep.subr.mxu0 0.0
        %1035 = vmatpush1.msra.mxu0 0.0
        %1036 = vmatprep.subr.mxu0 0.0
        %1037 = vmatpush1.msra.mxu0 0.0
        %1038 = vmatprep.subr.mxu0 0.0
        %1039 = vmatpush1.msra.mxu0 0.0
        %1040 = vmatprep.subr.mxu0 0.0
        %1041 = vmatpush1.msra.mxu0 0.0
        %1042 = vmatprep.subr.mxu0 0.0
        %1043 = vmatpush1.msra.mxu0 0.0
        %1044 = vmatprep.subr.mxu0 0.0
        %1045 = vmatpush1.msra.mxu0 0.0
        %1046 = vmatprep.subr.mxu0 0.0
        %1047 = vmatpush1.msra.mxu0 0.0
        %1048 = vmatprep.mubr.f32.mxu0 0.0
        %1049 = vmatmul.mubr.f32.gmra.mrb[0].mxu0 %v982
        %v1050 = vpop.f32.mrb[0].mxu0
        %v1051 = vadd.f32 0.0, %v1050
        %v1052 = vpop.f32.mrb[0].mxu0
        %1053 = vdwg.mxu0
        %1054 = vrot.lane.b32.xlu0 %v476, 64
        %v1055 = vpop.permute.xlu0 %1054
        %v1058 = vsel %vm479, %v825, 0
        %1060 = vmatprep.subr.mxu0 0.0
        %1061 = vmatpush1.msra.mxu0 %v1055
        %1062 = vmatprep.subr.mxu0 0.0
        %1063 = vmatpush1.msra.mxu0 0.0
        %1064 = vmatprep.subr.mxu0 0.0
        %1065 = vmatpush1.msra.mxu0 0.0
        %1066 = vmatprep.subr.mxu0 0.0
        %1067 = vmatpush1.msra.mxu0 0.0
        %1068 = vmatprep.subr.mxu0 0.0
        %1069 = vmatpush1.msra.mxu0 0.0
        %1070 = vmatprep.subr.mxu0 0.0
        %1071 = vmatpush1.msra.mxu0 0.0
        %1072 = vmatprep.subr.mxu0 0.0
        %1073 = vmatpush1.msra.mxu0 0.0
        %1074 = vmatprep.subr.mxu0 0.0
        %1075 = vmatpush1.msra.mxu0 0.0
        %1076 = vmatprep.subr.mxu0 0.0
        %1077 = vmatpush1.msra.mxu0 0.0
        %1078 = vmatprep.subr.mxu0 0.0
        %1079 = vmatpush1.msra.mxu0 0.0
        %1080 = vmatprep.subr.mxu0 0.0
        %1081 = vmatpush1.msra.mxu0 0.0
        %1082 = vmatprep.subr.mxu0 0.0
        %1083 = vmatpush1.msra.mxu0 0.0
        %1084 = vmatprep.subr.mxu0 0.0
        %1085 = vmatpush1.msra.mxu0 0.0
        %1086 = vmatprep.subr.mxu0 0.0
        %1087 = vmatpush1.msra.mxu0 0.0
        %1088 = vmatprep.subr.mxu0 0.0
        %1089 = vmatpush1.msra.mxu0 0.0
        %1090 = vmatprep.subr.mxu0 0.0
        %1091 = vmatpush1.msra.mxu0 0.0
        %1092 = vmatprep.subr.mxu0 0.0
        %1093 = vmatpush1.msra.mxu0 0.0
        %1094 = vmatprep.subr.mxu0 0.0
        %1095 = vmatpush1.msra.mxu0 0.0
        %1096 = vmatprep.subr.mxu0 0.0
        %1097 = vmatpush1.msra.mxu0 0.0
        %1098 = vmatprep.subr.mxu0 0.0
        %1099 = vmatpush1.msra.mxu0 0.0
        %1100 = vmatprep.subr.mxu0 0.0
        %1101 = vmatpush1.msra.mxu0 0.0
        %1102 = vmatprep.subr.mxu0 0.0
        %1103 = vmatpush1.msra.mxu0 0.0
        %1104 = vmatprep.subr.mxu0 0.0
        %1105 = vmatpush1.msra.mxu0 0.0
        %1106 = vmatprep.subr.mxu0 0.0
        %1107 = vmatpush1.msra.mxu0 0.0
        %1108 = vmatprep.subr.mxu0 0.0
        %1109 = vmatpush1.msra.mxu0 0.0
        %1110 = vmatprep.subr.mxu0 0.0
        %1111 = vmatpush1.msra.mxu0 0.0
        %1112 = vmatprep.subr.mxu0 0.0
        %1113 = vmatpush1.msra.mxu0 0.0
        %1114 = vmatprep.subr.mxu0 0.0
        %1115 = vmatpush1.msra.mxu0 0.0
        %1116 = vmatprep.subr.mxu0 0.0
        %1117 = vmatpush1.msra.mxu0 0.0
        %1118 = vmatprep.subr.mxu0 0.0
        %1119 = vmatpush1.msra.mxu0 0.0
        %1120 = vmatprep.subr.mxu0 0.0
        %1121 = vmatpush1.msra.mxu0 0.0
        %1122 = vmatprep.subr.mxu0 0.0
        %1123 = vmatpush1.msra.mxu0 0.0
        %1124 = vmatprep.mubr.f32.mxu0 0.0
        %1125 = vmatmul.mubr.f32.gmra.mrb[0].mxu0 %v1058
        %v1126 = vpop.f32.mrb[0].mxu0
        %v1127 = vadd.f32 0.0, %v1126
        %v1128 = vpop.f32.mrb[0].mxu0
        %1129 = vdwg.mxu0
        %1131 = vrot.lane.b32.xlu0 %v975, 8
        %v1132 = vpop.permute.xlu0 %1131
        %1135 = vrot.lane.b32.xlu0 %v1051, 16
        %v1136 = vpop.permute.xlu0 %1135
        %1139 = vrot.lane.b32.xlu0 %v1127, 24
        %v1140 = vpop.permute.xlu0 %1139
        %v1142 = vsel %vm479, %v899, %v1132
        %vm1143 = vcmask 130048
        %v1144 = vsel %vm1143, %v1142, %v1136
        %vm1145 = vcmask 195584
        %v1146 = vsel %vm1145, %v1144, %v1140
        %v1147 = vadd.f32 %v355, %v1146
        %v1148 = vld [vmem:[%s4] sm:$0x1]
        %v1149 = vld [vmem:[%s5] sm:$0x1]
        %v1150 = vsel %vm358, %v1147, 0.0
        %1151 = vadd.xlane.f32.xlu0 %v1150
        %v1152 = vpop.xlane.xlu0 %1151
        %v1153 = vmul.f32 %v1152, %v362
        %v1154 = vsub.f32 %v1147, %v1153
        %v1155 = vmul.f32 %v1154, %v1154
        %v1156 = vsel %vm358, %v1155, 0.0
        %1157 = vadd.xlane.f32.xlu0 %v1156
        %v1158 = vpop.xlane.xlu0 %1157
        %v1159 = vmul.f32 %v1158, %v362
        %v1160 = vadd.f32 %v1159, 1e-05
        %v1161 = vrsqrt.pop %v1160
        %v1162 = vmul.f32 %v1154, %v1161
        %v1164 = vlaneseq
        %v1165 = vshrl.u32 %v1164, 7
        %v1166 = vsub.s32 0, %v1165
        %v1167 = vrot.slane %v1148, %v1166
        %v1169 = vmul.f32 %v1162, %v1167
        %v1171 = vlaneseq
        %v1172 = vshrl.u32 %v1171, 7
        %v1173 = vsub.s32 0, %v1172
        %v1174 = vrot.slane %v1149, %v1173
        %v1176 = vadd.f32 %v1169, %v1174
        %v1177 = vld [vmem:[%s6] sm:$0xff]
        %v1178 = vld [vmem:[%s6 + $0x8] sm:$0xff]
        %v1179 = vld [vmem:[%s6 + $0x10] sm:$0xff]
        %v1180 = vld [vmem:[%s6 + $0x18] sm:$0xff]
        %v1181 = vld [vmem:[%s7] sm:$0x1]
        %v1183 = vlaneseq
        %v1184 = vshrl.u32 %v1183, 7
        %v1185 = vsub.s32 0, %v1184
        %v1186 = vrot.slane %v1181, %v1185
        %v1189 = vsel %vm358, %v1176, 0
        %1191 = vmatprep.subr.mxu0 0.0
        %1192 = vmatpush1.msra.mxu0 %v1177
        %1193 = vmatprep.subr.mxu0 0.0
        %1194 = vmatpush1.msra.mxu0 %v1178
        %1195 = vmatprep.subr.mxu0 0.0
        %1196 = vmatpush1.msra.mxu0 %v1179
        %1197 = vmatprep.subr.mxu0 0.0
        %1198 = vmatpush1.msra.mxu0 %v1180
        %1199 = vmatprep.subr.mxu0 0.0
        %1200 = vmatpush1.msra.mxu0 0.0
        %1201 = vmatprep.subr.mxu0 0.0
        %1202 = vmatpush1.msra.mxu0 0.0
        %1203 = vmatprep.subr.mxu0 0.0
        %1204 = vmatpush1.msra.mxu0 0.0
        %1205 = vmatprep.subr.mxu0 0.0
        %1206 = vmatpush1.msra.mxu0 0.0
        %1207 = vmatprep.subr.mxu0 0.0
        %1208 = vmatpush1.msra.mxu0 0.0
        %1209 = vmatprep.subr.mxu0 0.0
        %1210 = vmatpush1.msra.mxu0 0.0
        %1211 = vmatprep.subr.mxu0 0.0
        %1212 = vmatpush1.msra.mxu0 0.0
        %1213 = vmatprep.subr.mxu0 0.0
        %1214 = vmatpush1.msra.mxu0 0.0
        %1215 = vmatprep.subr.mxu0 0.0
        %1216 = vmatpush1.msra.mxu0 0.0
        %1217 = vmatprep.subr.mxu0 0.0
        %1218 = vmatpush1.msra.mxu0 0.0
        %1219 = vmatprep.subr.mxu0 0.0
        %1220 = vmatpush1.msra.mxu0 0.0
        %1221 = vmatprep.subr.mxu0 0.0
        %1222 = vmatpush1.msra.mxu0 0.0
        %1223 = vmatprep.subr.mxu0 0.0
        %1224 = vmatpush1.msra.mxu0 0.0
        %1225 = vmatprep.subr.mxu0 0.0
        %1226 = vmatpush1.msra.mxu0 0.0
        %1227 = vmatprep.subr.mxu0 0.0
        %1228 = vmatpush1.msra.mxu0 0.0
        %1229 = vmatprep.subr.mxu0 0.0
        %1230 = vmatpush1.msra.mxu0 0.0
        %1231 = vmatprep.subr.mxu0 0.0
        %1232 = vmatpush1.msra.mxu0 0.0
        %1233 = vmatprep.subr.mxu0 0.0
        %1234 = vmatpush1.msra.mxu0 0.0
        %1235 = vmatprep.subr.mxu0 0.0
        %1236 = vmatpush1.msra.mxu0 0.0
        %1237 = vmatprep.subr.mxu0 0.0
        %1238 = vmatpush1.msra.mxu0 0.0
        %1239 = vmatprep.subr.mxu0 0.0
        %1240 = vmatpush1.msra.mxu0 0.0
        %1241 = vmatprep.subr.mxu0 0.0
        %1242 = vmatpush1.msra.mxu0 0.0
        %1243 = vmatprep.subr.mxu0 0.0
        %1244 = vmatpush1.msra.mxu0 0.0
        %1245 = vmatprep.subr.mxu0 0.0
        %1246 = vmatpush1.msra.mxu0 0.0
        %1247 = vmatprep.subr.mxu0 0.0
        %1248 = vmatpush1.msra.mxu0 0.0
        %1249 = vmatprep.subr.mxu0 0.0
        %1250 = vmatpush1.msra.mxu0 0.0
        %1251 = vmatprep.subr.mxu0 0.0
        %1252 = vmatpush1.msra.mxu0 0.0
        %1253 = vmatprep.subr.mxu0 0.0
        %1254 = vmatpush1.msra.mxu0 0.0
        %1255 = vmatprep.mubr.f32.mxu0 0.0
        %1256 = vmatmul.mubr.f32.gmra.mrb[0].mxu0 %v1189
        %v1257 = vpop.f32.mrb[0].mxu0
        %v1258 = vadd.f32 %v1186, %v1257
        %v1259 = vpop.f32.mrb[0].mxu0
        %1260 = vdwg.mxu0
        %v1261 = vmax.f32 %v1258, 0.0
        %v1262 = vld [vmem:[%s8] sm:$0xff]
        %v1263 = vld [vmem:[%s8 + $0x8] sm:$0xff]
        %v1264 = vld [vmem:[%s8 + $0x10] sm:$0xff]
        %v1265 = vld [vmem:[%s8 + $0x18] sm:$0xff]
        %v1266 = vld [vmem:[%s8 + $0x20] sm:$0xff]
        %v1267 = vld [vmem:[%s8 + $0x28] sm:$0xff]
        %v1268 = vld [vmem:[%s8 + $0x30] sm:$0xff]
        %v1269 = vld [vmem:[%s8 + $0x38] sm:$0xff]
        %v1270 = vld [vmem:[%s8 + $0x40] sm:$0xff]
        %v1271 = vld [vmem:[%s8 + $0x48] sm:$0xff]
        %v1272 = vld [vmem:[%s8 + $0x50] sm:$0xff]
        %v1273 = vld [vmem:[%s8 + $0x58] sm:$0xff]
        %v1274 = vld [vmem:[%s8 + $0x60] sm:$0xff]
        %v1275 = vld [vmem:[%s8 + $0x68] sm:$0xff]
        %v1276 = vld [vmem:[%s8 + $0x70] sm:$0xff]
        %v1277 = vld [vmem:[%s8 + $0x78] sm:$0xff]
        %v1278 = vld [vmem:[%s9] sm:$0x1]
        %v1280 = vlaneseq
        %v1281 = vshrl.u32 %v1280, 7
        %v1282 = vsub.s32 0, %v1281
        %v1283 = vrot.slane %v1278, %v1282
        %1285 = vmatprep.subr.mxu0 0.0
        %1286 = vmatpush1.msra.mxu0 %v1262
        %1287 = vmatprep.subr.mxu0 0.0
        %1288 = vmatpush1.msra.mxu0 %v1263
        %1289 = vmatprep.subr.mxu0 0.0
        %1290 = vmatpush1.msra.mxu0 %v1264
        %1291 = vmatprep.subr.mxu0 0.0
        %1292 = vmatpush1.msra.mxu0 %v1265
        %1293 = vmatprep.subr.mxu0 0.0
        %1294 = vmatpush1.msra.mxu0 %v1266
        %1295 = vmatprep.subr.mxu0 0.0
        %1296 = vmatpush1.msra.mxu0 %v1267
        %1297 = vmatprep.subr.mxu0 0.0
        %1298 = vmatpush1.msra.mxu0 %v1268
        %1299 = vmatprep.subr.mxu0 0.0
        %1300 = vmatpush1.msra.mxu0 %v1269
        %1301 = vmatprep.subr.mxu0 0.0
        %1302 = vmatpush1.msra.mxu0 %v1270
        %1303 = vmatprep.subr.mxu0 0.0
        %1304 = vmatpush1.msra.mxu0 %v1271
        %1305 = vmatprep.subr.mxu0 0.0
        %1306 = vmatpush1.msra.mxu0 %v1272
        %1307 = vmatprep.subr.mxu0 0.0
        %1308 = vmatpush1.msra.mxu0 %v1273
        %1309 = vmatprep.subr.mxu0 0.0
        %1310 = vmatpush1.msra.mxu0 %v1274
        %1311 = vmatprep.subr.mxu0 0.0
        %1312 = vmatpush1.msra.mxu0 %v1275
        %1313 = vmatprep.subr.mxu0 0.0
        %1314 = vmatpush1.msra.mxu0 %v1276
        %1315 = vmatprep.subr.mxu0 0.0
        %1316 = vmatpush1.msra.mxu0 %v1277
        %1317 = vmatprep.subr.mxu0 0.0
        %1318 = vmatpush1.msra.mxu0 0.0
        %1319 = vmatprep.subr.mxu0 0.0
        %1320 = vmatpush1.msra.mxu0 0.0
        %1321 = vmatprep.subr.mxu0 0.0
        %1322 = vmatpush1.msra.mxu0 0.0
        %1323 = vmatprep.subr.mxu0 0.0
        %1324 = vmatpush1.msra.mxu0 0.0
        %1325 = vmatprep.subr.mxu0 0.0
        %1326 = vmatpush1.msra.mxu0 0.0
        %1327 = vmatprep.subr.mxu0 0.0
        %1328 = vmatpush1.msra.mxu0 0.0
        %1329 = vmatprep.subr.mxu0 0.0
        %1330 = vmatpush1.msra.mxu0 0.0
        %1331 = vmatprep.subr.mxu0 0.0
        %1332 = vmatpush1.msra.mxu0 0.0
        %1333 = vmatprep.subr.mxu0 0.0
        %1334 = vmatpush1.msra.mxu0 0.0
        %1335 = vmatprep.subr.mxu0 0.0
        %1336 = vmatpush1.msra.mxu0 0.0
        %1337 = vmatprep.subr.mxu0 0.0
        %1338 = vmatpush1.msra.mxu0 0.0
        %1339 = vmatprep.subr.mxu0 0.0
        %1340 = vmatpush1.msra.mxu0 0.0
        %1341 = vmatprep.subr.mxu0 0.0
        %1342 = vmatpush1.msra.mxu0 0.0
        %1343 = vmatprep.subr.mxu0 0.0
        %1344 = vmatpush1.msra.mxu0 0.0
        %1345 = vmatprep.subr.mxu0 0.0
        %1346 = vmatpush1.msra.mxu0 0.0
        %1347 = vmatprep.subr.mxu0 0.0
        %1348 = vmatpush1.msra.mxu0 0.0
        %1349 = vmatprep.mubr.f32.mxu0 0.0
        %1350 = vmatmul.mubr.f32.gmra.mrb[0].mxu0 %v1261
        %v1351 = vpop.f32.mrb[0].mxu0
        %v1352 = vadd.f32 %v1283, %v1351
        %v1353 = vpop.f32.mrb[0].mxu0
        %1354 = vdwg.mxu0
        %v1355 = vadd.f32 %v1147, %v1352
        %1356 = vst.msk [vmem:[%s350] sm:$0xff] %vm358, %v1355
        %s1357 = sand.u32 %s247, 1
        %s1358 = scalar_lea.sflag [#allocation3], %s1357
        %s1359 = sand.u32 %s247, 1
        %s1360 = smul.addr %s1359, 8
        %s1361 = scalar_lea.vmem [#allocation2], %s1360
        // Predicated region
        $region61: #{tpu_custom_call.1} parent=59 // pred_check
          %p1362 = pneg %p257
        $region62: #{tpu_custom_call.1} parent=59 // pred_check_branch
          %1364 = sbr.rel (%p1362) target = $region64
        $region63: #{tpu_custom_call.1} parent=59 // pred_region
          %s1366 = ssub.s32 128, 128
          %1367 = vsyncadd %s1358, %s1366
          %s1368 = smul.addr %s24, 128
          %s1369 = scalar_lea.hbm %s10, %s1368
          %s1371 = sshll.u32 %s1361, 4
          %s1372 = int_to_ptr.vmem [resolvable:$true] %s1371
          %1374 = dma.vmem_to_hbm [thread:$0]  %s1372, 128, %s1369, %s1358
        $region64: #{tpu_custom_call.1} parent=59 // pred_fallthru
          _
      $region60: #{tpu_custom_call.1} parent=5 // pred_fallthru
        _
      %p1375 = scmp.le.s32.totalorder 2, %s19
      // Predicated region
      $region65: #{tpu_custom_call.1} parent=5 // pred_check
        %p1376 = pneg %p1375
      $region66: #{tpu_custom_call.1} parent=5 // pred_check_branch
        %1378 = sbr.rel (%p1376) target = $region68
      $region67: #{tpu_custom_call.1} parent=5 // pred_region
        %s1379 = ssub.s32 %s19, 2
        // Predicated region
        $region69: #{tpu_custom_call.1} parent=67 // pred_check
          %p1380 = pneg %p263
        $region70: #{tpu_custom_call.1} parent=67 // pred_check_branch
          %1382 = sbr.rel (%p1380) target = $region72
        $region71: #{tpu_custom_call.1} parent=67 // pred_region
          %s1383 = sand.u32 %s248, 1
          %s1384 = scalar_lea.sflag [#allocation3], %s1383
          %s1385 = sand.u32 %s248, 1
          %s1386 = smul.addr %s1385, 8
          %s1387 = scalar_lea.vmem [#allocation2], %s1386
          %1388 = dma.done %s1384, 128
        $region72: #{tpu_custom_call.1} parent=67 // pred_fallthru
          _
      $region68: #{tpu_custom_call.1} parent=5 // pred_fallthru
        _
    $region6: #{tpu_custom_call.1} parent=1 // loop_footer
      %s23 = sadd.s32 1, %s19
    $region7: #{tpu_custom_call.1} parent=1 // loop_footer_branch
      %18 = sbr.rel target = $region3
    $region8: #{tpu_custom_call.1} parent=1 // loop_exit
      _
    %1389 = vsyncpa [#allocation3], 1
    %s1390 = scalar_lea.sflag [#allocation3], 1
    %1391 = vsyncpa %s1390, 1

// kernel: tpu_custom_call.1
$region0: #{tpu_custom_call.1}
  #allocation0 [shape = 'u32[]', space=smem, size = 0x4, offset = 0x4, fixed_abs, tag = 'smem constant byte address 0x4 - core index']
  #allocation1 [shape = 'u32[144,128]{1,0:T(1,128)}', space=vmem, size = 0x12000, scoped, tag = 'internal scratch']
  %s0 = inlined_call_operand.vmem [shape: f32[16,32], index: 0, kind: input, shape index: {}]
  %s1 = inlined_call_operand.vmem [shape: f32[1,32], index: 1, kind: input, shape index: {}]
  %s2 = inlined_call_operand.vmem [shape: f32[1,32], index: 2, kind: input, shape index: {}]
  %s3 = inlined_call_operand.vmem [shape: f32[32,96], index: 3, kind: input, shape index: {}]
  %s4 = inlined_call_operand.vmem [shape: f32[1,32], index: 4, kind: input, shape index: {}]
  %s5 = inlined_call_operand.vmem [shape: f32[1,32], index: 5, kind: input, shape index: {}]
  %s6 = inlined_call_operand.vmem [shape: f32[32,128], index: 6, kind: input, shape index: {}]
  %s7 = inlined_call_operand.vmem [shape: f32[1,128], index: 7, kind: input, shape index: {}]
  %s8 = inlined_call_operand.vmem [shape: f32[128,32], index: 8, kind: input, shape index: {}]
  %s9 = inlined_call_operand.vmem [shape: f32[1,32], index: 9, kind: input, shape index: {}]
  %s10 = inlined_call_operand.hbm [shape: f32[16,32], index: 10, kind: output, shape index: {}]
  %s11 = sld [smem:[#allocation0]]
  $region73: #{tpu_custom_call.1} parent=0
    _
  %s13 = ssub.s32 1, %s11
  %s14 = scalar_select 0, %s13, %s11
  $region1: #{tpu_custom_call.1} parent=0
    #allocation2 [shape = 'u8[8192]{0}', space=vmem, size = 0x2000, scoped, tag = 'output window, operand 0']
    #allocation3 [shape = 's32[2]{0}', space=sflag, size = 0x8, scoped, tag = 'scoped memory for tpu_custom_call.1']
    %15 = vsyncpa [#allocation3], 0
    %s16 = scalar_lea.sflag [#allocation3], 1
    %17 = vsyncpa %s16, 0
    loop: start=0, step=1, limit=4
    $region2: #{tpu_custom_call.1} parent=1 // loop_pre_header
      _
    $region3: #{tpu_custom_call.1} parent=1 // loop_header
      %s19 = sphi 0, %s23
      %p20 = scmp.ge.s32.totalorder %s19, 4
      %s29 = sphi 0, %s31
      %s32 = sphi 0, %s29
      %s33 = sphi 0, %s32
      %s49 = sphi 0, %s33
      %s53 = sphi 0, %s53
      %s55 = sphi 0, %s53
      %s56 = sphi 0, %s55
      %s70 = sphi 0, %s56
      %s74 = sphi 0, %s74
      %s76 = sphi 0, %s74
      %s77 = sphi 0, %s76
      %s91 = sphi 0, %s77
      %s95 = sphi 0, %s95
      %s97 = sphi 0, %s95
      %s98 = sphi 0, %s97
      %s112 = sphi 0, %s98
      %s116 = sphi 0, %s116
      %s118 = sphi 0, %s116
      %s119 = sphi 0, %s118
      %s133 = sphi 0, %s119
      %s137 = sphi 0, %s137
      %s139 = sphi 0, %s137
      %s140 = sphi 0, %s139
      %s154 = sphi 0, %s140
      %s158 = sphi 0, %s158
      %s160 = sphi 0, %s158
      %s161 = sphi 0, %s160
      %s175 = sphi 0, %s161
      %s179 = sphi 0, %s179
      %s181 = sphi 0, %s179
      %s182 = sphi 0, %s181
      %s196 = sphi 0, %s182
      %s200 = sphi 0, %s200
      %s202 = sphi 0, %s200
      %s203 = sphi 0, %s202
      %s217 = sphi 0, %s203
      %s221 = sphi 0, %s221
      %s223 = sphi 0, %s221
      %s224 = sphi 0, %s223
      %s238 = sphi 0, %s224
      %s244 = sphi 0, %s246
      %s247 = sphi 0, %s244
      %s248 = sphi 0, %s247
      %s264 = sphi 0, %s248
    $region4: #{tpu_custom_call.1} parent=1 // loop_header_branch
      %22 = sbr.rel (%p20) target = $region8
    $region5: #{tpu_custom_call.1} parent=1 // loop_body
      %s24 = ssub.s32 %s19, 1
      %s25 = ssub.s32 %s19, 2
      %s26 = sadd.s32 %s19, 1
      %s27 = ssub.s32 %s19, %s26
      %p28 = scmp.eq.s32.totalorder %s27, 0
      %s30 = sadd.s32 %s29, 1
      %s31 = scalar_select %p28, %s29, %s30
      %p34 = pneg %p28
      %p35 = scmp.eq.s32.totalorder %s19, 1
      %p36 = por %p34, %p35
      %p37 = scmp.ne.s32.totalorder %s29, %s32
      %p38 = scmp.eq.s32.totalorder %s19, 0
      %p39 = por %p37, %p38
      %p40 = scmp.ne.s32.totalorder %s29, %s32
      %p41 = scmp.eq.s32.totalorder %s24, 1
      %p42 = por %p40, %p41
      %p43 = scmp.ne.s32.totalorder %s32, %s33
      %p44 = scmp.eq.s32.totalorder %s24, 0
      %p45 = por %p43, %p44
      %p46 = scmp.ne.s32.totalorder %s32, %s33
      %p47 = scmp.eq.s32.totalorder %s25, 1
      %p48 = por %p46, %p47
      %p50 = scmp.ne.s32.totalorder %s33, %s49
      %p51 = scmp.eq.s32.totalorder %s25, 0
      %p52 = por %p50, %p51
      %s54 = sadd.s32 %s53, 1
      %p57 = scmp.eq.s32.totalorder %s19, 1
      %p58 = scmp.ne.s32.totalorder %s53, %s55
      %p59 = scmp.eq.s32.totalorder %s19, 0
      %p60 = por %p58, %p59
      %p61 = scmp.ne.s32.totalorder %s53, %s55
      %p62 = scmp.eq.s32.totalorder %s24, 1
      %p63 = por %p61, %p62
      %p64 = scmp.ne.s32.totalorder %s55, %s56
      %p65 = scmp.eq.s32.totalorder %s24, 0
      %p66 = por %p64, %p65
      %p67 = scmp.ne.s32.totalorder %s55, %s56
      %p68 = scmp.eq.s32.totalorder %s25, 1
      %p69 = por %p67, %p68
      %p71 = scmp.ne.s32.totalorder %s56, %s70
      %p72 = scmp.eq.s32.totalorder %s25, 0
      %p73 = por %p71, %p72
      %s75 = sadd.s32 %s74, 1
      %p78 = scmp.eq.s32.totalorder %s19, 1
      %p79 = scmp.ne.s32.totalorder %s74, %s76
      %p80 = scmp.eq.s32.totalorder %s19, 0
      %p81 = por %p79, %p80
      %p82 = scmp.ne.s32.totalorder %s74, %s76
      %p83 = scmp.eq.s32.totalorder %s24, 1
      %p84 = por %p82, %p83
      %p85 = scmp.ne.s32.totalorder %s76, %s77
      %p86 = scmp.eq.s32.totalorder %s24, 0
      %p87 = por %p85, %p86
      %p88 = scmp.ne.s32.totalorder %s76, %s77
      %p89 = scmp.eq.s32.totalorder %s25, 1
      %p90 = por %p88, %p89
      %p92 = scmp.ne.s32.totalorder %s77, %s91
      %p93 = scmp.eq.s32.totalorder %s25, 0
      %p94 = por %p92, %p93
      %s96 = sadd.s32 %s95, 1
      %p99 = scmp.eq.s32.totalorder %s19, 1
      %p100 = scmp.ne.s32.totalorder %s95, %s97
      %p101 = scmp.eq.s32.totalorder %s19, 0
      %p102 = por %p100, %p101
      %p103 = scmp.ne.s32.totalorder %s95, %s97
      %p104 = scmp.eq.s32.totalorder %s24, 1
      %p105 = por %p103, %p104
      %p106 = scmp.ne.s32.totalorder %s97, %s98
      %p107 = scmp.eq.s32.totalorder %s24, 0
      %p108 = por %p106, %p107
      %p109 = scmp.ne.s32.totalorder %s97, %s98
      %p110 = scmp.eq.s32.totalorder %s25, 1
      %p111 = por %p109, %p110
      %p113 = scmp.ne.s32.totalorder %s98, %s112
      %p114 = scmp.eq.s32.totalorder %s25, 0
      %p115 = por %p113, %p114
      %s117 = sadd.s32 %s116, 1
      %p120 = scmp.eq.s32.totalorder %s19, 1
      %p121 = scmp.ne.s32.totalorder %s116, %s118
      %p122 = scmp.eq.s32.totalorder %s19, 0
      %p123 = por %p121, %p122
      %p124 = scmp.ne.s32.totalorder %s116, %s118
      %p125 = scmp.eq.s32.totalorder %s24, 1
      %p126 = por %p124, %p125
      %p127 = scmp.ne.s32.totalorder %s118, %s119
      %p128 = scmp.eq.s32.totalorder %s24, 0
      %p129 = por %p127, %p128
      %p130 = scmp.ne.s32.totalorder %s118, %s119
      %p131 = scmp.eq.s32.totalorder %s25, 1
      %p132 = por %p130, %p131
      %p134 = scmp.ne.s32.totalorder %s119, %s133
      %p135 = scmp.eq.s32.totalorder %s25, 0
      %p136 = por %p134, %p135
      %s138 = sadd.s32 %s137, 1
      %p141 = scmp.eq.s32.totalorder %s19, 1
      %p142 = scmp.ne.s32.totalorder %s137, %s139
      %p143 = scmp.eq.s32.totalorder %s19, 0
      %p144 = por %p142, %p143
      %p145 = scmp.ne.s32.totalorder %s137, %s139
      %p146 = scmp.eq.s32.totalorder %s24, 1
      %p147 = por %p145, %p146
      %p148 = scmp.ne.s32.totalorder %s139, %s140
      %p149 = scmp.eq.s32.totalorder %s24, 0
      %p150 = por %p148, %p149
      %p151 = scmp.ne.s32.totalorder %s139, %s140
      %p152 = scmp.eq.s32.totalorder %s25, 1
      %p153 = por %p151, %p152
      %p155 = scmp.ne.s32.totalorder %s140, %s154
      %p156 = scmp.eq.s32.totalorder %s25, 0
      %p157 = por %p155, %p156
      %s159 = sadd.s32 %s158, 1
      %p162 = scmp.eq.s32.totalorder %s19, 1
      %p163 = scmp.ne.s32.totalorder %s158, %s160
      %p164 = scmp.eq.s32.totalorder %s19, 0
      %p165 = por %p163, %p164
      %p166 = scmp.ne.s32.totalorder %s158, %s160
      %p167 = scmp.eq.s32.totalorder %s24, 1
      %p168 = por %p166, %p167
      %p169 = scmp.ne.s32.totalorder %s160, %s161
      %p170 = scmp.eq.s32.totalorder %s24, 0
      %p171 = por %p169, %p170
      %p172 = scmp.ne.s32.totalorder %s160, %s161
      %p173 = scmp.eq.s32.totalorder %s25, 1
      %p174 = por %p172, %p173
      %p176 = scmp.ne.s32.totalorder %s161, %s175
      %p177 = scmp.eq.s32.totalorder %s25, 0
      %p178 = por %p176, %p177
      %s180 = sadd.s32 %s179, 1
      %p183 = scmp.eq.s32.totalorder %s19, 1
      %p184 = scmp.ne.s32.totalorder %s179, %s181
      %p185 = scmp.eq.s32.totalorder %s19, 0
      %p186 = por %p184, %p185
      %p187 = scmp.ne.s32.totalorder %s179, %s181
      %p188 = scmp.eq.s32.totalorder %s24, 1
      %p189 = por %p187, %p188
      %p190 = scmp.ne.s32.totalorder %s181, %s182
      %p191 = scmp.eq.s32.totalorder %s24, 0
      %p192 = por %p190, %p191
      %p193 = scmp.ne.s32.totalorder %s181, %s182
      %p194 = scmp.eq.s32.totalorder %s25, 1
      %p195 = por %p193, %p194
      %p197 = scmp.ne.s32.totalorder %s182, %s196
      %p198 = scmp.eq.s32.totalorder %s25, 0
      %p199 = por %p197, %p198
      %s201 = sadd.s32 %s200, 1
      %p204 = scmp.eq.s32.totalorder %s19, 1
      %p205 = scmp.ne.s32.totalorder %s200, %s202
      %p206 = scmp.eq.s32.totalorder %s19, 0
      %p207 = por %p205, %p206
      %p208 = scmp.ne.s32.totalorder %s200, %s202
      %p209 = scmp.eq.s32.totalorder %s24, 1
      %p210 = por %p208, %p209
      %p211 = scmp.ne.s32.totalorder %s202, %s203
      %p212 = scmp.eq.s32.totalorder %s24, 0
      %p213 = por %p211, %p212
      %p214 = scmp.ne.s32.totalorder %s202, %s203
      %p215 = scmp.eq.s32.totalorder %s25, 1
      %p216 = por %p214, %p215
      %p218 = scmp.ne.s32.totalorder %s203, %s217
      %p219 = scmp.eq.s32.totalorder %s25, 0
      %p220 = por %p218, %p219
      %s222 = sadd.s32 %s221, 1
      %p225 = scmp.eq.s32.totalorder %s19, 1
      %p226 = scmp.ne.s32.totalorder %s221, %s223
      %p227 = scmp.eq.s32.totalorder %s19, 0
      %p228 = por %p226, %p227
      %p229 = scmp.ne.s32.totalorder %s221, %s223
      %p230 = scmp.eq.s32.totalorder %s24, 1
      %p231 = por %p229, %p230
      %p232 = scmp.ne.s32.totalorder %s223, %s224
      %p233 = scmp.eq.s32.totalorder %s24, 0
      %p234 = por %p232, %p233
      %p235 = scmp.ne.s32.totalorder %s223, %s224
      %p236 = scmp.eq.s32.totalorder %s25, 1
      %p237 = por %p235, %p236
      %p239 = scmp.ne.s32.totalorder %s224, %s238
      %p240 = scmp.eq.s32.totalorder %s25, 0
      %p241 = por %p239, %p240
      %s242 = ssub.s32 %s19, %s26
      %p243 = scmp.eq.s32.totalorder %s242, 0
      %s245 = sadd.s32 %s244, 1
      %s246 = scalar_select %p243, %s244, %s245
      %p249 = pneg %p243
      %p250 = scmp.eq.s32.totalorder %s19, 1
      %p251 = por %p249, %p250
      %p252 = scmp.ne.s32.totalorder %s244, %s247
      %p253 = scmp.eq.s32.totalorder %s19, 0
      %p254 = por %p252, %p253
      %p255 = scmp.ne.s32.totalorder %s244, %s247
      %p256 = scmp.eq.s32.totalorder %s24, 1
      %p257 = por %p255, %p256
      %p258 = scmp.ne.s32.totalorder %s247, %s248
      %p259 = scmp.eq.s32.totalorder %s24, 0
      %p260 = por %p258, %p259
      %p261 = scmp.ne.s32.totalorder %s247, %s248
      %p262 = scmp.eq.s32.totalorder %s25, 1
      %p263 = por %p261, %p262
      %p265 = scmp.ne.s32.totalorder %s248, %s264
      %p266 = scmp.eq.s32.totalorder %s25, 0
      %p267 = por %p265, %p266
      %p268 = scmp.le.s32.totalorder 1, %s19
      %p269 = scmp.lt.s32.totalorder %s19, 3
      %p270 = pnand %p268, %p269
      %p271 = pneg %p270
      // Predicated region
      $region9: #{tpu_custom_call.1} parent=5 // pred_check
        _
      $region10: #{tpu_custom_call.1} parent=5 // pred_check_branch
        %273 = sbr.rel (%p270) target = $region12
      $region11: #{tpu_custom_call.1} parent=5 // pred_region
        %s274 = ssub.s32 %s19, 1
        // Predicated region
        $region13: #{tpu_custom_call.1} parent=11 // pred_check
          %p275 = pneg %p66
        $region14: #{tpu_custom_call.1} parent=11 // pred_check_branch
          %277 = sbr.rel (%p275) target = $region16
        $region15: #{tpu_custom_call.1} parent=11 // pred_region
          _
        $region16: #{tpu_custom_call.1} parent=11 // pred_fallthru
          _
        // Predicated region
        $region17: #{tpu_custom_call.1} parent=11 // pred_check
          %p278 = pneg %p87
        $region18: #{tpu_custom_call.1} parent=11 // pred_check_branch
          %280 = sbr.rel (%p278) target = $region20
        $region19: #{tpu_custom_call.1} parent=11 // pred_region
          _
        $region20: #{tpu_custom_call.1} parent=11 // pred_fallthru
          _
        // Predicated region
        $region21: #{tpu_custom_call.1} parent=11 // pred_check
          %p281 = pneg %p108
        $region22: #{tpu_custom_call.1} parent=11 // pred_check_branch
          %283 = sbr.rel (%p281) target = $region24
        $region23: #{tpu_custom_call.1} parent=11 // pred_region
          _
        $region24: #{tpu_custom_call.1} parent=11 // pred_fallthru
          _
        // Predicated region
        $region25: #{tpu_custom_call.1} parent=11 // pred_check
          %p284 = pneg %p129
        $region26: #{tpu_custom_call.1} parent=11 // pred_check_branch
          %286 = sbr.rel (%p284) target = $region28
        $region27: #{tpu_custom_call.1} parent=11 // pred_region
          _
        $region28: #{tpu_custom_call.1} parent=11 // pred_fallthru
          _
        // Predicated region
        $region29: #{tpu_custom_call.1} parent=11 // pred_check
          %p287 = pneg %p150
        $region30: #{tpu_custom_call.1} parent=11 // pred_check_branch
          %289 = sbr.rel (%p287) target = $region32
        $region31: #{tpu_custom_call.1} parent=11 // pred_region
          _
        $region32: #{tpu_custom_call.1} parent=11 // pred_fallthru
          _
        // Predicated region
        $region33: #{tpu_custom_call.1} parent=11 // pred_check
          %p290 = pneg %p171
        $region34: #{tpu_custom_call.1} parent=11 // pred_check_branch
          %292 = sbr.rel (%p290) target = $region36
        $region35: #{tpu_custom_call.1} parent=11 // pred_region
          _
        $region36: #{tpu_custom_call.1} parent=11 // pred_fallthru
          _
        // Predicated region
        $region37: #{tpu_custom_call.1} parent=11 // pred_check
          %p293 = pneg %p192
        $region38: #{tpu_custom_call.1} parent=11 // pred_check_branch
          %295 = sbr.rel (%p293) target = $region40
        $region39: #{tpu_custom_call.1} parent=11 // pred_region
          _
        $region40: #{tpu_custom_call.1} parent=11 // pred_fallthru
          _
        // Predicated region
        $region41: #{tpu_custom_call.1} parent=11 // pred_check
          %p296 = pneg %p213
        $region42: #{tpu_custom_call.1} parent=11 // pred_check_branch
          %298 = sbr.rel (%p296) target = $region44
        $region43: #{tpu_custom_call.1} parent=11 // pred_region
          _
        $region44: #{tpu_custom_call.1} parent=11 // pred_fallthru
          _
        // Predicated region
        $region45: #{tpu_custom_call.1} parent=11 // pred_check
          %p299 = pneg %p234
        $region46: #{tpu_custom_call.1} parent=11 // pred_check_branch
          %301 = sbr.rel (%p299) target = $region48
        $region47: #{tpu_custom_call.1} parent=11 // pred_region
          _
        $region48: #{tpu_custom_call.1} parent=11 // pred_fallthru
          _
      $region12: #{tpu_custom_call.1} parent=5 // pred_fallthru
        _
      %p302 = scmp.lt.s32.totalorder %s19, 2
      // Predicated region
      $region49: #{tpu_custom_call.1} parent=5 // pred_check
        %p303 = pneg %p302
      $region50: #{tpu_custom_call.1} parent=5 // pred_check_branch
        %305 = sbr.rel (%p303) target = $region52
      $region51: #{tpu_custom_call.1} parent=5 // pred_region
        // Predicated region
        $region53: #{tpu_custom_call.1} parent=51 // pred_check
          %p306 = pneg %p39
        $region54: #{tpu_custom_call.1} parent=51 // pred_check_branch
          %308 = sbr.rel (%p306) target = $region56
        $region55: #{tpu_custom_call.1} parent=51 // pred_region
          %p309 = scmp.lt.s32.totalorder %s19, 1
          %s310 = scalar_select %p309, %s19, 1
          %s311 = smul.addr %s310, 8
          %s312 = scalar_lea.vmem %s0, %s311
        $region56: #{tpu_custom_call.1} parent=51 // pred_fallthru
          _
      $region52: #{tpu_custom_call.1} parent=5 // pred_fallthru
        _
      %p313 = scmp.le.s32.totalorder 1, %s19
      %p314 = scmp.lt.s32.totalorder %s19, 3
      %p315 = pnand %p313, %p314
      %p316 = pneg %p315
      // Predicated region
      $region57: #{tpu_custom_call.1} parent=5 // pred_check
        _
      $region58: #{tpu_custom_call.1} parent=5 // pred_check_branch
        %318 = sbr.rel (%p315) target = $region60
      $region59: #{tpu_custom_call.1} parent=5 // pred_region
        %s319 = ssub.s32 %s19, 1
        %p320 = scmp.lt.s32.totalorder %s24, 1
        %s321 = scalar_select %p320, %s24, 1
        %s322 = smul.addr %s321, 8
        %s323 = scalar_lea.vmem %s0, %s322
        %p324 = pneg %p45
        %p325 = pneg %p42
        %p326 = pneg %p66
        %p327 = pneg %p63
        %p328 = pneg %p87
        %p329 = pneg %p84
        %p330 = pneg %p108
        %p331 = pneg %p105
        %p332 = pneg %p129
        %p333 = pneg %p126
        %p334 = pneg %p150
        %p335 = pneg %p147
        %p336 = pneg %p171
        %p337 = pneg %p168
        %p338 = pneg %p192
        %p339 = pneg %p189
        %p340 = pneg %p213
        %p341 = pneg %p210
        %p342 = pneg %p234
        %p343 = pneg %p231
        %p344 = pneg %p260
        %p345 = pneg %p257
        %s346 = sand.u32 %s247, 1
        %s347 = scalar_lea.sflag [#allocation3], %s346
        %s348 = sand.u32 %s247, 1
        %s349 = smul.addr %s348, 8
        %s350 = scalar_lea.vmem [#allocation2], %s349
        %p351 = scmp.lt.s32.totalorder %s24, 1
        %s352 = scalar_select %p351, %s24, 1
        %s353 = smul.addr %s352, 8
        %s354 = scalar_lea.vmem %s0, %s353
        %v355 = vld [vmem:[%s354] sm:$0xff]
        %v356 = vld [vmem:[%s1] sm:$0x1]
        %v357 = vld [vmem:[%s2] sm:$0x1]
        %vm358 = vcmask 261120
        %v359 = vsel %vm358, %v355, 0.0
        %360 = vadd.xlane.f32.xlu0 %v359
        %v361 = vpop.xlane.xlu0 %360
        %v362 = vrcp.pop 32.0
        %v363 = vmul.f32 %v361, %v362
        %v364 = vsub.f32 %v355, %v363
        %v365 = vmul.f32 %v364, %v364
        %v366 = vsel %vm358, %v365, 0.0
        %367 = vadd.xlane.f32.xlu0 %v366
        %v368 = vpop.xlane.xlu0 %367
        %v369 = vmul.f32 %v368, %v362
        %v370 = vadd.f32 %v369, 1e-05
        %v371 = vrsqrt.pop %v370
        %v372 = vmul.f32 %v364, %v371
        %v374 = vlaneseq
        %v375 = vshrl.u32 %v374, 7
        %v376 = vsub.s32 0, %v375
        %v377 = vrot.slane %v356, %v376
        %v379 = vmul.f32 %v372, %v377
        %v381 = vlaneseq
        %v382 = vshrl.u32 %v381, 7
        %v383 = vsub.s32 0, %v382
        %v384 = vrot.slane %v357, %v383
        %v386 = vadd.f32 %v379, %v384
        %v387 = vld [vmem:[%s3] sm:$0xff]
        %v388 = vld [vmem:[%s3 + $0x8] sm:$0xff]
        %v389 = vld [vmem:[%s3 + $0x10] sm:$0xff]
        %v390 = vld [vmem:[%s3 + $0x18] sm:$0xff]
        %v392 = vsel %vm358, %v386, 0
        %394 = vmatprep.subr.mxu0 0.0
        %395 = vmatpush1.msra.mxu0 %v387
        %396 = vmatprep.subr.mxu0 0.0
        %397 = vmatpush1.msra.mxu0 %v388
        %398 = vmatprep.subr.mxu0 0.0
        %399 = vmatpush1.msra.mxu0 %v389
        %400 = vmatprep.subr.mxu0 0.0
        %401 = vmatpush1.msra.mxu0 %v390
        %402 = vmatprep.subr.mxu0 0.0
        %403 = vmatpush1.msra.mxu0 0.0
        %404 = vmatprep.subr.mxu0 0.0
        %405 = vmatpush1.msra.mxu0 0.0
        %406 = vmatprep.subr.mxu0 0.0
        %407 = vmatpush1.msra.mxu0 0.0
        %408 = vmatprep.subr.mxu0 0.0
        %409 = vmatpush1.msra.mxu0 0.0
        %410 = vmatprep.subr.mxu0 0.0
        %411 = vmatpush1.msra.mxu0 0.0
        %412 = vmatprep.subr.mxu0 0.0
        %413 = vmatpush1.msra.mxu0 0.0
        %414 = vmatprep.subr.mxu0 0.0
        %415 = vmatpush1.msra.mxu0 0.0
        %416 = vmatprep.subr.mxu0 0.0
        %417 = vmatpush1.msra.mxu0 0.0
        %418 = vmatprep.subr.mxu0 0.0
        %419 = vmatpush1.msra.mxu0 0.0
        %420 = vmatprep.subr.mxu0 0.0
        %421 = vmatpush1.msra.mxu0 0.0
        %422 = vmatprep.subr.mxu0 0.0
        %423 = vmatpush1.msra.mxu0 0.0
        %424 = vmatprep.subr.mxu0 0.0
        %425 = vmatpush1.msra.mxu0 0.0
        %426 = vmatprep.subr.mxu0 0.0
        %427 = vmatpush1.msra.mxu0 0.0
        %428 = vmatprep.subr.mxu0 0.0
        %429 = vmatpush1.msra.mxu0 0.0
        %430 = vmatprep.subr.mxu0 0.0
        %431 = vmatpush1.msra.mxu0 0.0
        %432 = vmatprep.subr.mxu0 0.0
        %433 = vmatpush1.msra.mxu0 0.0
        %434 = vmatprep.subr.mxu0 0.0
        %435 = vmatpush1.msra.mxu0 0.0
        %436 = vmatprep.subr.mxu0 0.0
        %437 = vmatpush1.msra.mxu0 0.0
        %438 = vmatprep.subr.mxu0 0.0
        %439 = vmatpush1.msra.mxu0 0.0
        %440 = vmatprep.subr.mxu0 0.0
        %441 = vmatpush1.msra.mxu0 0.0
        %442 = vmatprep.subr.mxu0 0.0
        %443 = vmatpush1.msra.mxu0 0.0
        %444 = vmatprep.subr.mxu0 0.0
        %445 = vmatpush1.msra.mxu0 0.0
        %446 = vmatprep.subr.mxu0 0.0
        %447 = vmatpush1.msra.mxu0 0.0
        %448 = vmatprep.subr.mxu0 0.0
        %449 = vmatpush1.msra.mxu0 0.0
        %450 = vmatprep.subr.mxu0 0.0
        %451 = vmatpush1.msra.mxu0 0.0
        %452 = vmatprep.subr.mxu0 0.0
        %453 = vmatpush1.msra.mxu0 0.0
        %454 = vmatprep.subr.mxu0 0.0
        %455 = vmatpush1.msra.mxu0 0.0
        %456 = vmatprep.subr.mxu0 0.0
        %457 = vmatpush1.msra.mxu0 0.0
        %458 = vmatprep.mubr.f32.mxu0 0.0
        %459 = vmatmul.mubr.f32.gmra.mrb[0].mxu0 %v392
        %v460 = vpop.f32.mrb[0].mxu0
        %v461 = vadd.f32 0.0, %v460
        %v462 = vpop.f32.mrb[0].mxu0
        %463 = vdwg.mxu0
        %v464 = vlaneseq
        %v465 = vshrl.u32 %v464, 7
        %v466 = vlaneseq
        %v467 = vand.u32 %v466, 127
        %vm468 = vcmp.le.s32.totalorder %v467, %v465
        %v469 = vsel %vm468, 0.0, -1e+30
        %471 = vrot.lane.b32.xlu0 %v461, 120
        %v472 = vpop.permute.xlu0 %471
        %473 = vrot.lane.b32.xlu0 %v461, 112
        %v474 = vpop.permute.xlu0 %473
        %475 = vrot.lane.b32.xlu0 %v461, 104
        %v476 = vpop.permute.xlu0 %475
        %477 = vrot.lane.b32.xlu0 %v461, 96
        %v478 = vpop.permute.xlu0 %477
        %vm479 = vcmask 64512
        %v480 = vsel %vm479, %v461, 0
        %v482 = vsel %vm479, %v478, 0
        %484 = vmatprep.subr.mxu0 0.0
        %485 = vmatpush1.xpose.msra.mxu0 %v482
        %486 = vmatprep.subr.mxu0 0.0
        %487 = vmatpush1.xpose.msra.mxu0 0.0
        %488 = vmatprep.subr.mxu0 0.0
        %489 = vmatpush1.xpose.msra.mxu0 0.0
        %490 = vmatprep.subr.mxu0 0.0
        %491 = vmatpush1.xpose.msra.mxu0 0.0
        %492 = vmatprep.subr.mxu0 0.0
        %493 = vmatpush1.xpose.msra.mxu0 0.0
        %494 = vmatprep.subr.mxu0 0.0
        %495 = vmatpush1.xpose.msra.mxu0 0.0
        %496 = vmatprep.subr.mxu0 0.0
        %497 = vmatpush1.xpose.msra.mxu0 0.0
        %498 = vmatprep.subr.mxu0 0.0
        %499 = vmatpush1.xpose.msra.mxu0 0.0
        %500 = vmatprep.subr.mxu0 0.0
        %501 = vmatpush1.xpose.msra.mxu0 0.0
        %502 = vmatprep.subr.mxu0 0.0
        %503 = vmatpush1.xpose.msra.mxu0 0.0
        %504 = vmatprep.subr.mxu0 0.0
        %505 = vmatpush1.xpose.msra.mxu0 0.0
        %506 = vmatprep.subr.mxu0 0.0
        %507 = vmatpush1.xpose.msra.mxu0 0.0
        %508 = vmatprep.subr.mxu0 0.0
        %509 = vmatpush1.xpose.msra.mxu0 0.0
        %510 = vmatprep.subr.mxu0 0.0
        %511 = vmatpush1.xpose.msra.mxu0 0.0
        %512 = vmatprep.subr.mxu0 0.0
        %513 = vmatpush1.xpose.msra.mxu0 0.0
        %514 = vmatprep.subr.mxu0 0.0
        %515 = vmatpush1.xpose.msra.mxu0 0.0
        %516 = vmatprep.subr.mxu0 0.0
        %517 = vmatpush1.xpose.msra.mxu0 0.0
        %518 = vmatprep.subr.mxu0 0.0
        %519 = vmatpush1.xpose.msra.mxu0 0.0
        %520 = vmatprep.subr.mxu0 0.0
        %521 = vmatpush1.xpose.msra.mxu0 0.0
        %522 = vmatprep.subr.mxu0 0.0
        %523 = vmatpush1.xpose.msra.mxu0 0.0
        %524 = vmatprep.subr.mxu0 0.0
        %525 = vmatpush1.xpose.msra.mxu0 0.0
        %526 = vmatprep.subr.mxu0 0.0
        %527 = vmatpush1.xpose.msra.mxu0 0.0
        %528 = vmatprep.subr.mxu0 0.0
        %529 = vmatpush1.xpose.msra.mxu0 0.0
        %530 = vmatprep.subr.mxu0 0.0
        %531 = vmatpush1.xpose.msra.mxu0 0.0
        %532 = vmatprep.subr.mxu0 0.0
        %533 = vmatpush1.xpose.msra.mxu0 0.0
        %534 = vmatprep.subr.mxu0 0.0
        %535 = vmatpush1.xpose.msra.mxu0 0.0
        %536 = vmatprep.subr.mxu0 0.0
        %537 = vmatpush1.xpose.msra.mxu0 0.0
        %538 = vmatprep.subr.mxu0 0.0
        %539 = vmatpush1.xpose.msra.mxu0 0.0
        %540 = vmatprep.subr.mxu0 0.0
        %541 = vmatpush1.xpose.msra.mxu0 0.0
        %542 = vmatprep.subr.mxu0 0.0
        %543 = vmatpush1.xpose.msra.mxu0 0.0
        %544 = vmatprep.subr.mxu0 0.0
        %545 = vmatpush1.xpose.msra.mxu0 0.0
        %546 = vmatprep.subr.mxu0 0.0
        %547 = vmatpush1.xpose.msra.mxu0 0.0
        %548 = vmatprep.mubr.f32.mxu0 0.0
        %549 = vmatmul.mubr.f32.gmra.mrb[0].mxu0 %v480
        %v550 = vpop.f32.mrb[0].mxu0
        %v551 = vadd.f32 %v469, %v550
        %v552 = vpop.f32.mrb[0].mxu0
        %553 = vdwg.mxu0
        %554 = vrot.lane.b32.xlu0 %v472, 96
        %v555 = vpop.permute.xlu0 %554
        %v556 = vsel %vm479, %v472, 0
        %v558 = vsel %vm479, %v555, 0
        %560 = vmatprep.subr.mxu0 0.0
        %561 = vmatpush1.xpose.msra.mxu0 %v558
        %562 = vmatprep.subr.mxu0 0.0
        %563 = vmatpush1.xpose.msra.mxu0 0.0
        %564 = vmatprep.subr.mxu0 0.0
        %565 = vmatpush1.xpose.msra.mxu0 0.0
        %566 = vmatprep.subr.mxu0 0.0
        %567 = vmatpush1.xpose.msra.mxu0 0.0
        %568 = vmatprep.subr.mxu0 0.0
        %569 = vmatpush1.xpose.msra.mxu0 0.0
        %570 = vmatprep.subr.mxu0 0.0
        %571 = vmatpush1.xpose.msra.mxu0 0.0
        %572 = vmatprep.subr.mxu0 0.0
        %573 = vmatpush1.xpose.msra.mxu0 0.0
        %574 = vmatprep.subr.mxu0 0.0
        %575 = vmatpush1.xpose.msra.mxu0 0.0
        %576 = vmatprep.subr.mxu0 0.0
        %577 = vmatpush1.xpose.msra.mxu0 0.0
        %578 = vmatprep.subr.mxu0 0.0
        %579 = vmatpush1.xpose.msra.mxu0 0.0
        %580 = vmatprep.subr.mxu0 0.0
        %581 = vmatpush1.xpose.msra.mxu0 0.0
        %582 = vmatprep.subr.mxu0 0.0
        %583 = vmatpush1.xpose.msra.mxu0 0.0
        %584 = vmatprep.subr.mxu0 0.0
        %585 = vmatpush1.xpose.msra.mxu0 0.0
        %586 = vmatprep.subr.mxu0 0.0
        %587 = vmatpush1.xpose.msra.mxu0 0.0
        %588 = vmatprep.subr.mxu0 0.0
        %589 = vmatpush1.xpose.msra.mxu0 0.0
        %590 = vmatprep.subr.mxu0 0.0
        %591 = vmatpush1.xpose.msra.mxu0 0.0
        %592 = vmatprep.subr.mxu0 0.0
        %593 = vmatpush1.xpose.msra.mxu0 0.0
        %594 = vmatprep.subr.mxu0 0.0
        %595 = vmatpush1.xpose.msra.mxu0 0.0
        %596 = vmatprep.subr.mxu0 0.0
        %597 = vmatpush1.xpose.msra.mxu0 0.0
        %598 = vmatprep.subr.mxu0 0.0
        %599 = vmatpush1.xpose.msra.mxu0 0.0
        %600 = vmatprep.subr.mxu0 0.0
        %601 = vmatpush1.xpose.msra.mxu0 0.0
        %602 = vmatprep.subr.mxu0 0.0
        %603 = vmatpush1.xpose.msra.mxu0 0.0
        %604 = vmatprep.subr.mxu0 0.0
        %605 = vmatpush1.xpose.msra.mxu0 0.0
        %606 = vmatprep.subr.mxu0 0.0
        %607 = vmatpush1.xpose.msra.mxu0 0.0
        %608 = vmatprep.subr.mxu0 0.0
        %609 = vmatpush1.xpose.msra.mxu0 0.0
        %610 = vmatprep.subr.mxu0 0.0
        %611 = vmatpush1.xpose.msra.mxu0 0.0
        %612 = vmatprep.subr.mxu0 0.0
        %613 = vmatpush1.xpose.msra.mxu0 0.0
        %614 = vmatprep.subr.mxu0 0.0
        %615 = vmatpush1.xpose.msra.mxu0 0.0
        %616 = vmatprep.subr.mxu0 0.0
        %617 = vmatpush1.xpose.msra.mxu0 0.0
        %618 = vmatprep.subr.mxu0 0.0
        %619 = vmatpush1.xpose.msra.mxu0 0.0
        %620 = vmatprep.subr.mxu0 0.0
        %621 = vmatpush1.xpose.msra.mxu0 0.0
        %622 = vmatprep.subr.mxu0 0.0
        %623 = vmatpush1.xpose.msra.mxu0 0.0
        %624 = vmatprep.mubr.f32.mxu0 0.0
        %625 = vmatmul.mubr.f32.gmra.mrb[0].mxu0 %v556
        %v626 = vpop.f32.mrb[0].mxu0
        %v627 = vadd.f32 %v469, %v626
        %v628 = vpop.f32.mrb[0].mxu0
        %629 = vdwg.mxu0
        %630 = vrot.lane.b32.xlu0 %v474, 96
        %v631 = vpop.permute.xlu0 %630
        %v632 = vsel %vm479, %v474, 0
        %v634 = vsel %vm479, %v631, 0
        %636 = vmatprep.subr.mxu0 0.0
        %637 = vmatpush1.xpose.msra.mxu0 %v634
        %638 = vmatprep.subr.mxu0 0.0
        %639 = vmatpush1.xpose.msra.mxu0 0.0
        %640 = vmatprep.subr.mxu0 0.0
        %641 = vmatpush1.xpose.msra.mxu0 0.0
        %642 = vmatprep.subr.mxu0 0.0
        %643 = vmatpush1.xpose.msra.mxu0 0.0
        %644 = vmatprep.subr.mxu0 0.0
        %645 = vmatpush1.xpose.msra.mxu0 0.0
        %646 = vmatprep.subr.mxu0 0.0
        %647 = vmatpush1.xpose.msra.mxu0 0.0
        %648 = vmatprep.subr.mxu0 0.0
        %649 = vmatpush1.xpose.msra.mxu0 0.0
        %650 = vmatprep.subr.mxu0 0.0
        %651 = vmatpush1.xpose.msra.mxu0 0.0
        %652 = vmatprep.subr.mxu0 0.0
        %653 = vmatpush1.xpose.msra.mxu0 0.0
        %654 = vmatprep.subr.mxu0 0.0
        %655 = vmatpush1.xpose.msra.mxu0 0.0
        %656 = vmatprep.subr.mxu0 0.0
        %657 = vmatpush1.xpose.msra.mxu0 0.0
        %658 = vmatprep.subr.mxu0 0.0
        %659 = vmatpush1.xpose.msra.mxu0 0.0
        %660 = vmatprep.subr.mxu0 0.0
        %661 = vmatpush1.xpose.msra.mxu0 0.0
        %662 = vmatprep.subr.mxu0 0.0
        %663 = vmatpush1.xpose.msra.mxu0 0.0
        %664 = vmatprep.subr.mxu0 0.0
        %665 = vmatpush1.xpose.msra.mxu0 0.0
        %666 = vmatprep.subr.mxu0 0.0
        %667 = vmatpush1.xpose.msra.mxu0 0.0
        %668 = vmatprep.subr.mxu0 0.0
        %669 = vmatpush1.xpose.msra.mxu0 0.0
        %670 = vmatprep.subr.mxu0 0.0
        %671 = vmatpush1.xpose.msra.mxu0 0.0
        %672 = vmatprep.subr.mxu0 0.0
        %673 = vmatpush1.xpose.msra.mxu0 0.0
        %674 = vmatprep.subr.mxu0 0.0
        %675 = vmatpush1.xpose.msra.mxu0 0.0
        %676 = vmatprep.subr.mxu0 0.0
        %677 = vmatpush1.xpose.msra.mxu0 0.0
        %678 = vmatprep.subr.mxu0 0.0
        %679 = vmatpush1.xpose.msra.mxu0 0.0
        %680 = vmatprep.subr.mxu0 0.0
        %681 = vmatpush1.xpose.msra.mxu0 0.0
        %682 = vmatprep.subr.mxu0 0.0
        %683 = vmatpush1.xpose.msra.mxu0 0.0
        %684 = vmatprep.subr.mxu0 0.0
        %685 = vmatpush1.xpose.msra.mxu0 0.0
        %686 = vmatprep.subr.mxu0 0.0
        %687 = vmatpush1.xpose.msra.mxu0 0.0
        %688 = vmatprep.subr.mxu0 0.0
        %689 = vmatpush1.xpose.msra.mxu0 0.0
        %690 = vmatprep.subr.mxu0 0.0
        %691 = vmatpush1.xpose.msra.mxu0 0.0
        %692 = vmatprep.subr.mxu0 0.0
        %693 = vmatpush1.xpose.msra.mxu0 0.0
        %694 = vmatprep.subr.mxu0 0.0
        %695 = vmatpush1.xpose.msra.mxu0 0.0
        %696 = vmatprep.subr.mxu0 0.0
        %697 = vmatpush1.xpose.msra.mxu0 0.0
        %698 = vmatprep.subr.mxu0 0.0
        %699 = vmatpush1.xpose.msra.mxu0 0.0
        %700 = vmatprep.mubr.f32.mxu0 0.0
        %701 = vmatmul.mubr.f32.gmra.mrb[0].mxu0 %v632
        %v702 = vpop.f32.mrb[0].mxu0
        %v703 = vadd.f32 %v469, %v702
        %v704 = vpop.f32.mrb[0].mxu0
        %705 = vdwg.mxu0
        %706 = vrot.lane.b32.xlu0 %v476, 96
        %v707 = vpop.permute.xlu0 %706
        %v708 = vsel %vm479, %v476, 0
        %v710 = vsel %vm479, %v707, 0
        %712 = vmatprep.subr.mxu0 0.0
        %713 = vmatpush1.xpose.msra.mxu0 %v710
        %714 = vmatprep.subr.mxu0 0.0
        %715 = vmatpush1.xpose.msra.mxu0 0.0
        %716 = vmatprep.subr.mxu0 0.0
        %717 = vmatpush1.xpose.msra.mxu0 0.0
        %718 = vmatprep.subr.mxu0 0.0
        %719 = vmatpush1.xpose.msra.mxu0 0.0
        %720 = vmatprep.subr.mxu0 0.0
        %721 = vmatpush1.xpose.msra.mxu0 0.0
        %722 = vmatprep.subr.mxu0 0.0
        %723 = vmatpush1.xpose.msra.mxu0 0.0
        %724 = vmatprep.subr.mxu0 0.0
        %725 = vmatpush1.xpose.msra.mxu0 0.0
        %726 = vmatprep.subr.mxu0 0.0
        %727 = vmatpush1.xpose.msra.mxu0 0.0
        %728 = vmatprep.subr.mxu0 0.0
        %729 = vmatpush1.xpose.msra.mxu0 0.0
        %730 = vmatprep.subr.mxu0 0.0
        %731 = vmatpush1.xpose.msra.mxu0 0.0
        %732 = vmatprep.subr.mxu0 0.0
        %733 = vmatpush1.xpose.msra.mxu0 0.0
        %734 = vmatprep.subr.mxu0 0.0
        %735 = vmatpush1.xpose.msra.mxu0 0.0
        %736 = vmatprep.subr.mxu0 0.0
        %737 = vmatpush1.xpose.msra.mxu0 0.0
        %738 = vmatprep.subr.mxu0 0.0
        %739 = vmatpush1.xpose.msra.mxu0 0.0
        %740 = vmatprep.subr.mxu0 0.0
        %741 = vmatpush1.xpose.msra.mxu0 0.0
        %742 = vmatprep.subr.mxu0 0.0
        %743 = vmatpush1.xpose.msra.mxu0 0.0
        %744 = vmatprep.subr.mxu0 0.0
        %745 = vmatpush1.xpose.msra.mxu0 0.0
        %746 = vmatprep.subr.mxu0 0.0
        %747 = vmatpush1.xpose.msra.mxu0 0.0
        %748 = vmatprep.subr.mxu0 0.0
        %749 = vmatpush1.xpose.msra.mxu0 0.0
        %750 = vmatprep.subr.mxu0 0.0
        %751 = vmatpush1.xpose.msra.mxu0 0.0
        %752 = vmatprep.subr.mxu0 0.0
        %753 = vmatpush1.xpose.msra.mxu0 0.0
        %754 = vmatprep.subr.mxu0 0.0
        %755 = vmatpush1.xpose.msra.mxu0 0.0
        %756 = vmatprep.subr.mxu0 0.0
        %757 = vmatpush1.xpose.msra.mxu0 0.0
        %758 = vmatprep.subr.mxu0 0.0
        %759 = vmatpush1.xpose.msra.mxu0 0.0
        %760 = vmatprep.subr.mxu0 0.0
        %761 = vmatpush1.xpose.msra.mxu0 0.0
        %762 = vmatprep.subr.mxu0 0.0
        %763 = vmatpush1.xpose.msra.mxu0 0.0
        %764 = vmatprep.subr.mxu0 0.0
        %765 = vmatpush1.xpose.msra.mxu0 0.0
        %766 = vmatprep.subr.mxu0 0.0
        %767 = vmatpush1.xpose.msra.mxu0 0.0
        %768 = vmatprep.subr.mxu0 0.0
        %769 = vmatpush1.xpose.msra.mxu0 0.0
        %770 = vmatprep.subr.mxu0 0.0
        %771 = vmatpush1.xpose.msra.mxu0 0.0
        %772 = vmatprep.subr.mxu0 0.0
        %773 = vmatpush1.xpose.msra.mxu0 0.0
        %774 = vmatprep.subr.mxu0 0.0
        %775 = vmatpush1.xpose.msra.mxu0 0.0
        %776 = vmatprep.mubr.f32.mxu0 0.0
        %777 = vmatmul.mubr.f32.gmra.mrb[0].mxu0 %v708
        %v778 = vpop.f32.mrb[0].mxu0
        %v779 = vadd.f32 %v469, %v778
        %v780 = vpop.f32.mrb[0].mxu0
        %781 = vdwg.mxu0
        %v782 = vsel %vm479, %v551, -inf
        %783 = vmax.xlane.f32.xlu0 %v782
        %v784 = vpop.xlane.xlu0 %783
        %v785 = vsel %vm479, %v627, -inf
        %786 = vmax.xlane.f32.xlu0 %v785
        %v787 = vpop.xlane.xlu0 %786
        %v788 = vsel %vm479, %v703, -inf
        %789 = vmax.xlane.f32.xlu0 %v788
        %v790 = vpop.xlane.xlu0 %789
        %v791 = vsel %vm479, %v779, -inf
        %792 = vmax.xlane.f32.xlu0 %v791
        %v793 = vpop.xlane.xlu0 %792
        %v794 = vsub.f32 %v551, %v784
        %v795 = vsub.f32 %v627, %v787
        %v796 = vsub.f32 %v703, %v790
        %v797 = vsub.f32 %v779, %v793
        %v798 = vmul.f32 %v794, 1.442695
        %v799 = vpow.pop %v798
        %v800 = vmul.f32 %v795, 1.442695
        %v801 = vpow.pop %v800
        %v802 = vmul.f32 %v796, 1.442695
        %v803 = vpow.pop %v802
        %v804 = vmul.f32 %v797, 1.442695
        %v805 = vpow.pop %v804
        %v806 = vsel %vm479, %v799, 0.0
        %807 = vadd.xlane.f32.xlu0 %v806
        %v808 = vpop.xlane.xlu0 %807
        %v809 = vsel %vm479, %v801, 0.0
        %810 = vadd.xlane.f32.xlu0 %v809
        %v811 = vpop.xlane.xlu0 %810
        %v812 = vsel %vm479, %v803, 0.0
        %813 = vadd.xlane.f32.xlu0 %v812
        %v814 = vpop.xlane.xlu0 %813
        %v815 = vsel %vm479, %v805, 0.0
        %816 = vadd.xlane.f32.xlu0 %v815
        %v817 = vpop.xlane.xlu0 %816
        %v818 = vrcp.pop %v808
        %v819 = vrcp.pop %v811
        %v820 = vrcp.pop %v814
        %v821 = vrcp.pop %v817
        %v822 = vmul.f32 %v799, %v818
        %v823 = vmul.f32 %v801, %v819
        %v824 = vmul.f32 %v803, %v820
        %v825 = vmul.f32 %v805, %v821
        %826 = vrot.lane.b32.xlu0 %v461, 64
        %v827 = vpop.permute.xlu0 %826
        %v830 = vsel %vm479, %v822, 0
        %832 = vmatprep.subr.mxu0 0.0
        %833 = vmatpush1.msra.mxu0 %v827
        %834 = vmatprep.subr.mxu0 0.0
        %835 = vmatpush1.msra.mxu0 0.0
        %836 = vmatprep.subr.mxu0 0.0
        %837 = vmatpush1.msra.mxu0 0.0
        %838 = vmatprep.subr.mxu0 0.0
        %839 = vmatpush1.msra.mxu0 0.0
        %840 = vmatprep.subr.mxu0 0.0
        %841 = vmatpush1.msra.mxu0 0.0
        %842 = vmatprep.subr.mxu0 0.0
        %843 = vmatpush1.msra.mxu0 0.0
        %844 = vmatprep.subr.mxu0 0.0
        %845 = vmatpush1.msra.mxu0 0.0
        %846 = vmatprep.subr.mxu0 0.0
        %847 = vmatpush1.msra.mxu0 0.0
        %848 = vmatprep.subr.mxu0 0.0
        %849 = vmatpush1.msra.mxu0 0.0
        %850 = vmatprep.subr.mxu0 0.0
        %851 = vmatpush1.msra.mxu0 0.0
        %852 = vmatprep.subr.mxu0 0.0
        %853 = vmatpush1.msra.mxu0 0.0
        %854 = vmatprep.subr.mxu0 0.0
        %855 = vmatpush1.msra.mxu0 0.0
        %856 = vmatprep.subr.mxu0 0.0
        %857 = vmatpush1.msra.mxu0 0.0
        %858 = vmatprep.subr.mxu0 0.0
        %859 = vmatpush1.msra.mxu0 0.0
        %860 = vmatprep.subr.mxu0 0.0
        %861 = vmatpush1.msra.mxu0 0.0
        %862 = vmatprep.subr.mxu0 0.0
        %863 = vmatpush1.msra.mxu0 0.0
        %864 = vmatprep.subr.mxu0 0.0
        %865 = vmatpush1.msra.mxu0 0.0
        %866 = vmatprep.subr.mxu0 0.0
        %867 = vmatpush1.msra.mxu0 0.0
        %868 = vmatprep.subr.mxu0 0.0
        %869 = vmatpush1.msra.mxu0 0.0
        %870 = vmatprep.subr.mxu0 0.0
        %871 = vmatpush1.msra.mxu0 0.0
        %872 = vmatprep.subr.mxu0 0.0
        %873 = vmatpush1.msra.mxu0 0.0
        %874 = vmatprep.subr.mxu0 0.0
        %875 = vmatpush1.msra.mxu0 0.0
        %876 = vmatprep.subr.mxu0 0.0
        %877 = vmatpush1.msra.mxu0 0.0
        %878 = vmatprep.subr.mxu0 0.0
        %879 = vmatpush1.msra.mxu0 0.0
        %880 = vmatprep.subr.mxu0 0.0
        %881 = vmatpush1.msra.mxu0 0.0
        %882 = vmatprep.subr.mxu0 0.0
        %883 = vmatpush1.msra.mxu0 0.0
        %884 = vmatprep.subr.mxu0 0.0
        %885 = vmatpush1.msra.mxu0 0.0
        %886 = vmatprep.subr.mxu0 0.0
        %887 = vmatpush1.msra.mxu0 0.0
        %888 = vmatprep.subr.mxu0 0.0
        %889 = vmatpush1.msra.mxu0 0.0
        %890 = vmatprep.subr.mxu0 0.0
        %891 = vmatpush1.msra.mxu0 0.0
        %892 = vmatprep.subr.mxu0 0.0
        %893 = vmatpush1.msra.mxu0 0.0
        %894 = vmatprep.subr.mxu0 0.0
        %895 = vmatpush1.msra.mxu0 0.0
        %896 = vmatprep.mubr.f32.mxu0 0.0
        %897 = vmatmul.mubr.f32.gmra.mrb[0].mxu0 %v830
        %v898 = vpop.f32.mrb[0].mxu0
        %v899 = vadd.f32 0.0, %v898
        %v900 = vpop.f32.mrb[0].mxu0
        %901 = vdwg.mxu0
        %902 = vrot.lane.b32.xlu0 %v472, 64
        %v903 = vpop.permute.xlu0 %902
        %v906 = vsel %vm479, %v823, 0
        %908 = vmatprep.subr.mxu0 0.0
        %909 = vmatpush1.msra.mxu0 %v903
        %910 = vmatprep.subr.mxu0 0.0
        %911 = vmatpush1.msra.mxu0 0.0
        %912 = vmatprep.subr.mxu0 0.0
        %913 = vmatpush1.msra.mxu0 0.0
        %914 = vmatprep.subr.mxu0 0.0
        %915 = vmatpush1.msra.mxu0 0.0
        %916 = vmatprep.subr.mxu0 0.0
        %917 = vmatpush1.msra.mxu0 0.0
        %918 = vmatprep.subr.mxu0 0.0
        %919 = vmatpush1.msra.mxu0 0.0
        %920 = vmatprep.subr.mxu0 0.0
        %921 = vmatpush1.msra.mxu0 0.0
        %922 = vmatprep.subr.mxu0 0.0
        %923 = vmatpush1.msra.mxu0 0.0
        %924 = vmatprep.subr.mxu0 0.0
        %925 = vmatpush1.msra.mxu0 0.0
        %926 = vmatprep.subr.mxu0 0.0
        %927 = vmatpush1.msra.mxu0 0.0
        %928 = vmatprep.subr.mxu0 0.0
        %929 = vmatpush1.msra.mxu0 0.0
        %930 = vmatprep.subr.mxu0 0.0
        %931 = vmatpush1.msra.mxu0 0.0
        %932 = vmatprep.subr.mxu0 0.0
        %933 = vmatpush1.msra.mxu0 0.0
        %934 = vmatprep.subr.mxu0 0.0
        %935 = vmatpush1.msra.mxu0 0.0
        %936 = vmatprep.subr.mxu0 0.0
        %937 = vmatpush1.msra.mxu0 0.0
        %938 = vmatprep.subr.mxu0 0.0
        %939 = vmatpush1.msra.mxu0 0.0
        %940 = vmatprep.subr.mxu0 0.0
        %941 = vmatpush1.msra.mxu0 0.0
        %942 = vmatprep.subr.mxu0 0.0
        %943 = vmatpush1.msra.mxu0 0.0
        %944 = vmatprep.subr.mxu0 0.0
        %945 = vmatpush1.msra.mxu0 0.0
        %946 = vmatprep.subr.mxu0 0.0
        %947 = vmatpush1.msra.mxu0 0.0
        %948 = vmatprep.subr.mxu0 0.0
        %949 = vmatpush1.msra.mxu0 0.0
        %950 = vmatprep.subr.mxu0 0.0
        %951 = vmatpush1.msra.mxu0 0.0
        %952 = vmatprep.subr.mxu0 0.0
        %953 = vmatpush1.msra.mxu0 0.0
        %954 = vmatprep.subr.mxu0 0.0
        %955 = vmatpush1.msra.mxu0 0.0
        %956 = vmatprep.subr.mxu0 0.0
        %957 = vmatpush1.msra.mxu0 0.0
        %958 = vmatprep.subr.mxu0 0.0
        %959 = vmatpush1.msra.mxu0 0.0
        %960 = vmatprep.subr.mxu0 0.0
        %961 = vmatpush1.msra.mxu0 0.0
        %962 = vmatprep.subr.mxu0 0.0
        %963 = vmatpush1.msra.mxu0 0.0
        %964 = vmatprep.subr.mxu0 0.0
        %965 = vmatpush1.msra.mxu0 0.0
        %966 = vmatprep.subr.mxu0 0.0
        %967 = vmatpush1.msra.mxu0 0.0
        %968 = vmatprep.subr.mxu0 0.0
        %969 = vmatpush1.msra.mxu0 0.0
        %970 = vmatprep.subr.mxu0 0.0
        %971 = vmatpush1.msra.mxu0 0.0
        %972 = vmatprep.mubr.f32.mxu0 0.0
        %973 = vmatmul.mubr.f32.gmra.mrb[0].mxu0 %v906
        %v974 = vpop.f32.mrb[0].mxu0
        %v975 = vadd.f32 0.0, %v974
        %v976 = vpop.f32.mrb[0].mxu0
        %977 = vdwg.mxu0
        %978 = vrot.lane.b32.xlu0 %v474, 64
        %v979 = vpop.permute.xlu0 %978
        %v982 = vsel %vm479, %v824, 0
        %984 = vmatprep.subr.mxu0 0.0
        %985 = vmatpush1.msra.mxu0 %v979
        %986 = vmatprep.subr.mxu0 0.0
        %987 = vmatpush1.msra.mxu0 0.0
        %988 = vmatprep.subr.mxu0 0.0
        %989 = vmatpush1.msra.mxu0 0.0
        %990 = vmatprep.subr.mxu0 0.0
        %991 = vmatpush1.msra.mxu0 0.0
        %992 = vmatprep.subr.mxu0 0.0
        %993 = vmatpush1.msra.mxu0 0.0
        %994 = vmatprep.subr.mxu0 0.0
        %995 = vmatpush1.msra.mxu0 0.0
        %996 = vmatprep.subr.mxu0 0.0
        %997 = vmatpush1.msra.mxu0 0.0
        %998 = vmatprep.subr.mxu0 0.0
        %999 = vmatpush1.msra.mxu0 0.0
        %1000 = vmatprep.subr.mxu0 0.0
        %1001 = vmatpush1.msra.mxu0 0.0
        %1002 = vmatprep.subr.mxu0 0.0
        %1003 = vmatpush1.msra.mxu0 0.0
        %1004 = vmatprep.subr.mxu0 0.0
        %1005 = vmatpush1.msra.mxu0 0.0
        %1006 = vmatprep.subr.mxu0 0.0
        %1007 = vmatpush1.msra.mxu0 0.0
        %1008 = vmatprep.subr.mxu0 0.0
        %1009 = vmatpush1.msra.mxu0 0.0
        %1010 = vmatprep.subr.mxu0 0.0
        %1011 = vmatpush1.msra.mxu0 0.0
        %1012 = vmatprep.subr.mxu0 0.0
        %1013 = vmatpush1.msra.mxu0 0.0
        %1014 = vmatprep.subr.mxu0 0.0
        %1015 = vmatpush1.msra.mxu0 0.0
        %1016 = vmatprep.subr.mxu0 0.0
        %1017 = vmatpush1.msra.mxu0 0.0
        %1018 = vmatprep.subr.mxu0 0.0
        %1019 = vmatpush1.msra.mxu0 0.0
        %1020 = vmatprep.subr.mxu0 0.0
        %1021 = vmatpush1.msra.mxu0 0.0
        %1022 = vmatprep.subr.mxu0 0.0
        %1023 = vmatpush1.msra.mxu0 0.0
        %1024 = vmatprep.subr.mxu0 0.0
        %1025 = vmatpush1.msra.mxu0 0.0
        %1026 = vmatprep.subr.mxu0 0.0
        %1027 = vmatpush1.msra.mxu0 0.0
        %1028 = vmatprep.subr.mxu0 0.0
        %1029 = vmatpush1.msra.mxu0 0.0
        %1030 = vmatprep.subr.mxu0 0.0
        %1031 = vmatpush1.msra.mxu0 0.0
        %1032 = vmatprep.subr.mxu0 0.0
        %1033 = vmatpush1.msra.mxu0 0.0
        %1034 = vmatprep.subr.mxu0 0.0
        %1035 = vmatpush1.msra.mxu0 0.0
        %1036 = vmatprep.subr.mxu0 0.0
        %1037 = vmatpush1.msra.mxu0 0.0
        %1038 = vmatprep.subr.mxu0 0.0
        %1039 = vmatpush1.msra.mxu0 0.0
        %1040 = vmatprep.subr.mxu0 0.0
        %1041 = vmatpush1.msra.mxu0 0.0
        %1042 = vmatprep.subr.mxu0 0.0
        %1043 = vmatpush1.msra.mxu0 0.0
        %1044 = vmatprep.subr.mxu0 0.0
        %1045 = vmatpush1.msra.mxu0 0.0
        %1046 = vmatprep.subr.mxu0 0.0
        %1047 = vmatpush1.msra.mxu0 0.0
        %1048 = vmatprep.mubr.f32.mxu0 0.0
        %1049 = vmatmul.mubr.f32.gmra.mrb[0].mxu0 %v982
        %v1050 = vpop.f32.mrb[0].mxu0
        %v1051 = vadd.f32 0.0, %v1050
        %v1052 = vpop.f32.mrb[0].mxu0
        %1053 = vdwg.mxu0
        %1054 = vrot.lane.b32.xlu0 %v476, 64
        %v1055 = vpop.permute.xlu0 %1054
        %v1058 = vsel %vm479, %v825, 0
        %1060 = vmatprep.subr.mxu0 0.0
        %1061 = vmatpush1.msra.mxu0 %v1055
        %1062 = vmatprep.subr.mxu0 0.0
        %1063 = vmatpush1.msra.mxu0 0.0
        %1064 = vmatprep.subr.mxu0 0.0
        %1065 = vmatpush1.msra.mxu0 0.0
        %1066 = vmatprep.subr.mxu0 0.0
        %1067 = vmatpush1.msra.mxu0 0.0
        %1068 = vmatprep.subr.mxu0 0.0
        %1069 = vmatpush1.msra.mxu0 0.0
        %1070 = vmatprep.subr.mxu0 0.0
        %1071 = vmatpush1.msra.mxu0 0.0
        %1072 = vmatprep.subr.mxu0 0.0
        %1073 = vmatpush1.msra.mxu0 0.0
        %1074 = vmatprep.subr.mxu0 0.0
        %1075 = vmatpush1.msra.mxu0 0.0
        %1076 = vmatprep.subr.mxu0 0.0
        %1077 = vmatpush1.msra.mxu0 0.0
        %1078 = vmatprep.subr.mxu0 0.0
        %1079 = vmatpush1.msra.mxu0 0.0
        %1080 = vmatprep.subr.mxu0 0.0
        %1081 = vmatpush1.msra.mxu0 0.0
        %1082 = vmatprep.subr.mxu0 0.0
        %1083 = vmatpush1.msra.mxu0 0.0
        %1084 = vmatprep.subr.mxu0 0.0
        %1085 = vmatpush1.msra.mxu0 0.0
        %1086 = vmatprep.subr.mxu0 0.0
        %1087 = vmatpush1.msra.mxu0 0.0
        %1088 = vmatprep.subr.mxu0 0.0
        %1089 = vmatpush1.msra.mxu0 0.0
        %1090 = vmatprep.subr.mxu0 0.0
        %1091 = vmatpush1.msra.mxu0 0.0
        %1092 = vmatprep.subr.mxu0 0.0
        %1093 = vmatpush1.msra.mxu0 0.0
        %1094 = vmatprep.subr.mxu0 0.0
        %1095 = vmatpush1.msra.mxu0 0.0
        %1096 = vmatprep.subr.mxu0 0.0
        %1097 = vmatpush1.msra.mxu0 0.0
        %1098 = vmatprep.subr.mxu0 0.0
        %1099 = vmatpush1.msra.mxu0 0.0
        %1100 = vmatprep.subr.mxu0 0.0
        %1101 = vmatpush1.msra.mxu0 0.0
        %1102 = vmatprep.subr.mxu0 0.0
        %1103 = vmatpush1.msra.mxu0 0.0
        %1104 = vmatprep.subr.mxu0 0.0
        %1105 = vmatpush1.msra.mxu0 0.0
        %1106 = vmatprep.subr.mxu0 0.0
        %1107 = vmatpush1.msra.mxu0 0.0
        %1108 = vmatprep.subr.mxu0 0.0
        %1109 = vmatpush1.msra.mxu0 0.0
        %1110 = vmatprep.subr.mxu0 0.0
        %1111 = vmatpush1.msra.mxu0 0.0
        %1112 = vmatprep.subr.mxu0 0.0
        %1113 = vmatpush1.msra.mxu0 0.0
        %1114 = vmatprep.subr.mxu0 0.0
        %1115 = vmatpush1.msra.mxu0 0.0
        %1116 = vmatprep.subr.mxu0 0.0
        %1117 = vmatpush1.msra.mxu0 0.0
        %1118 = vmatprep.subr.mxu0 0.0
        %1119 = vmatpush1.msra.mxu0 0.0
        %1120 = vmatprep.subr.mxu0 0.0
        %1121 = vmatpush1.msra.mxu0 0.0
        %1122 = vmatprep.subr.mxu0 0.0
        %1123 = vmatpush1.msra.mxu0 0.0
        %1124 = vmatprep.mubr.f32.mxu0 0.0
        %1125 = vmatmul.mubr.f32.gmra.mrb[0].mxu0 %v1058
        %v1126 = vpop.f32.mrb[0].mxu0
        %v1127 = vadd.f32 0.0, %v1126
        %v1128 = vpop.f32.mrb[0].mxu0
        %1129 = vdwg.mxu0
        %1131 = vrot.lane.b32.xlu0 %v975, 8
        %v1132 = vpop.permute.xlu0 %1131
        %1135 = vrot.lane.b32.xlu0 %v1051, 16
        %v1136 = vpop.permute.xlu0 %1135
        %1139 = vrot.lane.b32.xlu0 %v1127, 24
        %v1140 = vpop.permute.xlu0 %1139
        %v1142 = vsel %vm479, %v899, %v1132
        %vm1143 = vcmask 130048
        %v1144 = vsel %vm1143, %v1142, %v1136
        %vm1145 = vcmask 195584
        %v1146 = vsel %vm1145, %v1144, %v1140
        %v1147 = vadd.f32 %v355, %v1146
        %v1148 = vld [vmem:[%s4] sm:$0x1]
        %v1149 = vld [vmem:[%s5] sm:$0x1]
        %v1150 = vsel %vm358, %v1147, 0.0
        %1151 = vadd.xlane.f32.xlu0 %v1150
        %v1152 = vpop.xlane.xlu0 %1151
        %v1153 = vmul.f32 %v1152, %v362
        %v1154 = vsub.f32 %v1147, %v1153
        %v1155 = vmul.f32 %v1154, %v1154
        %v1156 = vsel %vm358, %v1155, 0.0
        %1157 = vadd.xlane.f32.xlu0 %v1156
        %v1158 = vpop.xlane.xlu0 %1157
        %v1159 = vmul.f32 %v1158, %v362
        %v1160 = vadd.f32 %v1159, 1e-05
        %v1161 = vrsqrt.pop %v1160
        %v1162 = vmul.f32 %v1154, %v1161
        %v1164 = vlaneseq
        %v1165 = vshrl.u32 %v1164, 7
        %v1166 = vsub.s32 0, %v1165
        %v1167 = vrot.slane %v1148, %v1166
        %v1169 = vmul.f32 %v1162, %v1167
        %v1171 = vlaneseq
        %v1172 = vshrl.u32 %v1171, 7
        %v1173 = vsub.s32 0, %v1172
        %v1174 = vrot.slane %v1149, %v1173
        %v1176 = vadd.f32 %v1169, %v1174
        %v1177 = vld [vmem:[%s6] sm:$0xff]
        %v1178 = vld [vmem:[%s6 + $0x8] sm:$0xff]
        %v1179 = vld [vmem:[%s6 + $0x10] sm:$0xff]
        %v1180 = vld [vmem:[%s6 + $0x18] sm:$0xff]
        %v1181 = vld [vmem:[%s7] sm:$0x1]
        %v1183 = vlaneseq
        %v1184 = vshrl.u32 %v1183, 7
        %v1185 = vsub.s32 0, %v1184
        %v1186 = vrot.slane %v1181, %v1185
        %v1189 = vsel %vm358, %v1176, 0
        %1191 = vmatprep.subr.mxu0 0.0
        %1192 = vmatpush1.msra.mxu0 %v1177
        %1193 = vmatprep.subr.mxu0 0.0
        %1194 = vmatpush1.msra.mxu0 %v1178
        %1195 = vmatprep.subr.mxu0 0.0
        %1196 = vmatpush1.msra.mxu0 %v1179
        %1197 = vmatprep.subr.mxu0 0.0
        %1198 = vmatpush1.msra.mxu0 %v1180
        %1199 = vmatprep.subr.mxu0 0.0
        %1200 = vmatpush1.msra.mxu0 0.0
        %1201 = vmatprep.subr.mxu0 0.0
        %1202 = vmatpush1.msra.mxu0 0.0
        %1203 = vmatprep.subr.mxu0 0.0
        %1204 = vmatpush1.msra.mxu0 0.0
        %1205 = vmatprep.subr.mxu0 0.0
        %1206 = vmatpush1.msra.mxu0 0.0
        %1207 = vmatprep.subr.mxu0 0.0
        %1208 = vmatpush1.msra.mxu0 0.0
        %1209 = vmatprep.subr.mxu0 0.0
        %1210 = vmatpush1.msra.mxu0 0.0
        %1211 = vmatprep.subr.mxu0 0.0
        %1212 = vmatpush1.msra.mxu0 0.0
        %1213 = vmatprep.subr.mxu0 0.0
        %1214 = vmatpush1.msra.mxu0 0.0
        %1215 = vmatprep.subr.mxu0 0.0
        %1216 = vmatpush1.msra.mxu0 0.0
        %1217 = vmatprep.subr.mxu0 0.0
        %1218 = vmatpush1.msra.mxu0 0.0
        %1219 = vmatprep.subr.mxu0 0.0
        %1220 = vmatpush1.msra.mxu0 0.0
        %1221 = vmatprep.subr.mxu0 0.0
        %1222 = vmatpush1.msra.mxu0 0.0
        %1223 = vmatprep.subr.mxu0 0.0
        %1224 = vmatpush1.msra.mxu0 0.0
        %1225 = vmatprep.subr.mxu0 0.0
        %1226 = vmatpush1.msra.mxu0 0.0
        %1227 = vmatprep.subr.mxu0 0.0
        %1228 = vmatpush1.msra.mxu0 0.0
        %1229 = vmatprep.subr.mxu0 0.0
        %1230 = vmatpush1.msra.mxu0 0.0
        %1231 = vmatprep.subr.mxu0 0.0
        %1232 = vmatpush1.msra.mxu0 0.0
        %1233 = vmatprep.subr.mxu0 0.0
        %1234 = vmatpush1.msra.mxu0 0.0
        %1235 = vmatprep.subr.mxu0 0.0
        %1236 = vmatpush1.msra.mxu0 0.0
        %1237 = vmatprep.subr.mxu0 0.0
        %1238 = vmatpush1.msra.mxu0 0.0
        %1239 = vmatprep.subr.mxu0 0.0
        %1240 = vmatpush1.msra.mxu0 0.0
        %1241 = vmatprep.subr.mxu0 0.0
        %1242 = vmatpush1.msra.mxu0 0.0
        %1243 = vmatprep.subr.mxu0 0.0
        %1244 = vmatpush1.msra.mxu0 0.0
        %1245 = vmatprep.subr.mxu0 0.0
        %1246 = vmatpush1.msra.mxu0 0.0
        %1247 = vmatprep.subr.mxu0 0.0
        %1248 = vmatpush1.msra.mxu0 0.0
        %1249 = vmatprep.subr.mxu0 0.0
        %1250 = vmatpush1.msra.mxu0 0.0
        %1251 = vmatprep.subr.mxu0 0.0
        %1252 = vmatpush1.msra.mxu0 0.0
        %1253 = vmatprep.subr.mxu0 0.0
        %1254 = vmatpush1.msra.mxu0 0.0
        %1255 = vmatprep.mubr.f32.mxu0 0.0
        %1256 = vmatmul.mubr.f32.gmra.mrb[0].mxu0 %v1189
        %v1257 = vpop.f32.mrb[0].mxu0
        %v1258 = vadd.f32 %v1186, %v1257
        %v1259 = vpop.f32.mrb[0].mxu0
        %1260 = vdwg.mxu0
        %v1261 = vmax.f32 %v1258, 0.0
        %v1262 = vld [vmem:[%s8] sm:$0xff]
        %v1263 = vld [vmem:[%s8 + $0x8] sm:$0xff]
        %v1264 = vld [vmem:[%s8 + $0x10] sm:$0xff]
        %v1265 = vld [vmem:[%s8 + $0x18] sm:$0xff]
        %v1266 = vld [vmem:[%s8 + $0x20] sm:$0xff]
        %v1267 = vld [vmem:[%s8 + $0x28] sm:$0xff]
        %v1268 = vld [vmem:[%s8 + $0x30] sm:$0xff]
        %v1269 = vld [vmem:[%s8 + $0x38] sm:$0xff]
        %v1270 = vld [vmem:[%s8 + $0x40] sm:$0xff]
        %v1271 = vld [vmem:[%s8 + $0x48] sm:$0xff]
        %v1272 = vld [vmem:[%s8 + $0x50] sm:$0xff]
        %v1273 = vld [vmem:[%s8 + $0x58] sm:$0xff]
        %v1274 = vld [vmem:[%s8 + $0x60] sm:$0xff]
        %v1275 = vld [vmem:[%s8 + $0x68] sm:$0xff]
        %v1276 = vld [vmem:[%s8 + $0x70] sm:$0xff]
        %v1277 = vld [vmem:[%s8 + $0x78] sm:$0xff]
        %v1278 = vld [vmem:[%s9] sm:$0x1]
        %v1280 = vlaneseq
        %v1281 = vshrl.u32 %v1280, 7
        %v1282 = vsub.s32 0, %v1281
        %v1283 = vrot.slane %v1278, %v1282
        %1285 = vmatprep.subr.mxu0 0.0
        %1286 = vmatpush1.msra.mxu0 %v1262
        %1287 = vmatprep.subr.mxu0 0.0
        %1288 = vmatpush1.msra.mxu0 %v1263
        %1289 = vmatprep.subr.mxu0 0.0
        %1290 = vmatpush1.msra.mxu0 %v1264
        %1291 = vmatprep.subr.mxu0 0.0
        %1292 = vmatpush1.msra.mxu0 %v1265
        %1293 = vmatprep.subr.mxu0 0.0
        %1294 = vmatpush1.msra.mxu0 %v1266
        %1295 = vmatprep.subr.mxu0 0.0
        %1296 = vmatpush1.msra.mxu0 %v1267
        %1297 = vmatprep.subr.mxu0 0.0
        %1298 = vmatpush1.msra.mxu0 %v1268
        %1299 = vmatprep.subr.mxu0 0.0
        %1300 = vmatpush1.msra.mxu0 %v1269
        %1301 = vmatprep.subr.mxu0 0.0
        %1302 = vmatpush1.msra.mxu0 %v1270
        %1303 = vmatprep.subr.mxu0 0.0
        %1304 = vmatpush1.msra.mxu0 %v1271
        %1305 = vmatprep.subr.mxu0 0.0
        %1306 = vmatpush1.msra.mxu0 %v1272
        %1307 = vmatprep.subr.mxu0 0.0
        %1308 = vmatpush1.msra.mxu0 %v1273
        %1309 = vmatprep.subr.mxu0 0.0
        %1310 = vmatpush1.msra.mxu0 %v1274
        %1311 = vmatprep.subr.mxu0 0.0
        %1312 = vmatpush1.msra.mxu0 %v1275
        %1313 = vmatprep.subr.mxu0 0.0
        %1314 = vmatpush1.msra.mxu0 %v1276
        %1315 = vmatprep.subr.mxu0 0.0
        %1316 = vmatpush1.msra.mxu0 %v1277
        %1317 = vmatprep.subr.mxu0 0.0
        %1318 = vmatpush1.msra.mxu0 0.0
        %1319 = vmatprep.subr.mxu0 0.0
        %1320 = vmatpush1.msra.mxu0 0.0
        %1321 = vmatprep.subr.mxu0 0.0
        %1322 = vmatpush1.msra.mxu0 0.0
        %1323 = vmatprep.subr.mxu0 0.0
        %1324 = vmatpush1.msra.mxu0 0.0
        %1325 = vmatprep.subr.mxu0 0.0
        %1326 = vmatpush1.msra.mxu0 0.0
        %1327 = vmatprep.subr.mxu0 0.0
        %1328 = vmatpush1.msra.mxu0 0.0
        %1329 = vmatprep.subr.mxu0 0.0
        %1330 = vmatpush1.msra.mxu0 0.0
        %1331 = vmatprep.subr.mxu0 0.0
        %1332 = vmatpush1.msra.mxu0 0.0
        %1333 = vmatprep.subr.mxu0 0.0
        %1334 = vmatpush1.msra.mxu0 0.0
        %1335 = vmatprep.subr.mxu0 0.0
        %1336 = vmatpush1.msra.mxu0 0.0
        %1337 = vmatprep.subr.mxu0 0.0
        %1338 = vmatpush1.msra.mxu0 0.0
        %1339 = vmatprep.subr.mxu0 0.0
        %1340 = vmatpush1.msra.mxu0 0.0
        %1341 = vmatprep.subr.mxu0 0.0
        %1342 = vmatpush1.msra.mxu0 0.0
        %1343 = vmatprep.subr.mxu0 0.0
        %1344 = vmatpush1.msra.mxu0 0.0
        %1345 = vmatprep.subr.mxu0 0.0
        %1346 = vmatpush1.msra.mxu0 0.0
        %1347 = vmatprep.subr.mxu0 0.0
        %1348 = vmatpush1.msra.mxu0 0.0
        %1349 = vmatprep.mubr.f32.mxu0 0.0
        %1350 = vmatmul.mubr.f32.gmra.mrb[0].mxu0 %v1261
        %v1351 = vpop.f32.mrb[0].mxu0
        %v1352 = vadd.f32 %v1283, %v1351
        %v1353 = vpop.f32.mrb[0].mxu0
        %1354 = vdwg.mxu0
        %v1355 = vadd.f32 %v1147, %v1352
        %1356 = vst.msk [vmem:[%s350] sm:$0xff] %vm358, %v1355
        %s1357 = sand.u32 %s247, 1
        %s1358 = scalar_lea.sflag [#allocation3], %s1357
        %s1359 = sand.u32 %s247, 1
        %s1360 = smul.addr %s1359, 8
        %s1361 = scalar_lea.vmem [#allocation2], %s1360
        // Predicated region
        $region61: #{tpu_custom_call.1} parent=59 // pred_check
          %p1362 = pneg %p257
        $region62: #{tpu_custom_call.1} parent=59 // pred_check_branch
          %1364 = sbr.rel (%p1362) target = $region64
        $region63: #{tpu_custom_call.1} parent=59 // pred_region
          %s1366 = ssub.s32 128, 128
          %1367 = vsyncadd %s1358, %s1366
          %s1368 = smul.addr %s24, 128
          %s1369 = scalar_lea.hbm %s10, %s1368
          %s1371 = sshll.u32 %s1361, 4
          %s1372 = int_to_ptr.vmem [resolvable:$true] %s1371
          %1374 = dma.vmem_to_hbm [thread:$0]  %s1372, 128, %s1369, %s1358
        $region64: #{tpu_custom_call.1} parent=59 // pred_fallthru
          _
      $region60: #{tpu_custom_call.1} parent=5 // pred_fallthru
        _
      %p1375 = scmp.le.s32.totalorder 2, %s19
      // Predicated region
      $region65: #{tpu_custom_call.1} parent=5 // pred_check
        %p1376 = pneg %p1375
      $region66: #{tpu_custom_call.1} parent=5 // pred_check_branch
        %1378 = sbr.rel (%p1376) target = $region68
      $region67: #{tpu_custom_call.1} parent=5 // pred_region
        %s1379 = ssub.s32 %s19, 2
        // Predicated region
        $region69: #{tpu_custom_call.1} parent=67 // pred_check
          %p1380 = pneg %p263
        $region70: #{tpu_custom_call.1} parent=67 // pred_check_branch
          %1382 = sbr.rel (%p1380) target = $region72
        $region71: #{tpu_custom_call.1} parent=67 // pred_region
          %s1383 = sand.u32 %s248, 1
          %s1384 = scalar_lea.sflag [#allocation3], %s1383
          %s1385 = sand.u32 %s248, 1
          %s1386 = smul.addr %s1385, 8
          %s1387 = scalar_lea.vmem [#allocation2], %s1386
          %1388 = dma.done %s1384, 128
        $region72: #{tpu_custom_call.1} parent=67 // pred_fallthru
          _
      $region68: #{tpu_custom_call.1} parent=5 // pred_fallthru
        _
    $region6: #{tpu_custom_call.1} parent=1 // loop_footer
      %s23 = sadd.s32 1, %s19
    $region7: #{tpu_custom_call.1} parent=1 // loop_footer_branch
      %18 = sbr.rel target = $region3
    $region8: #{tpu_custom_call.1} parent=1 // loop_exit
      _
    %1389 = vsyncpa [#allocation3], 1
    %s1390 = scalar_lea.sflag [#allocation3], 1
    %1391 = vsyncpa %s1390, 1

</llo_original>
